<compile_context>
chip_gen: v7x
topology: tpu7x:2x2x1
jax: 0.10.0
libtpu: 0.0.40
codegen_flags: <defaults>
</compile_context>

<pallas_src>
import jax
import jax.numpy as jnp
from jax.experimental import pallas as pl
from jax.experimental.pallas import tpu as pltpu


# (in_channels, out_channels, stride) of every conv1x3, in forward order.
LAYER_SPECS = (
    (1, 20, 1),
    (20, 20, 1), (20, 20, 1), (20, 30, 2),
    (30, 30, 1), (30, 30, 1), (30, 40, 2),
    (40, 40, 1), (40, 40, 1), (40, 30, 2),
    (30, 30, 1), (30, 30, 1), (30, 20, 2),
    (20, 20, 1), (20, 20, 1), (20, 20, 2),
)
CMAX = 40        # max channel count -> row pitch of the packed weight taps
L_IN = 192       # Linear(6, 1) forces input length 192 (192 / 2**5 = 6)
W_WIDE = 256     # lane container while l_in == 192 (layers 0..3); 2 x 128
W_NARROW = 128   # lane container once l_in <= 96 (layers 4..15)


# ----------------------------------------------------------------------------
# Fused Pallas kernel: whole network for one batch item per grid step.
# ----------------------------------------------------------------------------
def _cnnd_kernel(x_ref, wv_ref, bb_ref, sel_w_ref, sel_n_ref, hw_ref, hb_ref,
                 o_ref):
    # x_ref    : (1, 1, 256)    input item, zero padded beyond column 192
    # wv_ref   : (16, 120, 40)  packed conv weights, tap k at rows [40k, 40k+oc)
    # bb_ref   : (40, 16)       conv biases, layer l in column l
    # sel_w_ref: (256, 128)     even-column selection matrix (wide container)
    # sel_n_ref: (128, 128)     even-column selection matrix (narrow container)
    # hw_ref   : (40, 128)      fused pool+fc weights (pool_w outer fc_w)
    # hb_ref   : (1, 1)         fused head bias (pool_b * sum(fc_w) + fc_b)
    # o_ref    : (1, 1, 1)      sigmoid output
    col_w = jax.lax.broadcasted_iota(jnp.int32, (1, W_WIDE), 1)
    col_n = jax.lax.broadcasted_iota(jnp.int32, (1, W_NARROW), 1)

    a = x_ref[0]                  # (1, 256); columns >= 192 are zero
    l_in = L_IN
    for l, (ic, oc, stride) in enumerate(LAYER_SPECS):
        width = a.shape[1]        # 256 or 128 (static per layer)
        wl = wv_ref[l]            # (120, 40); columns >= ic are zero
        if ic == 1:
            t = wl[:, 0:1] * a    # outer product == K=1 matmul, on the VPU
        else:
            t = jnp.dot(wl, a, preferred_element_type=jnp.float32)  # (120, W)
        # Conv taps: y[:, j] = W0 x[:, j-1] + W1 x[:, j] + W2 x[:, j+1].
        # The zero pad (pad=1) is free: columns [l_in, width) of `a` (hence of
        # t) are zero, so the lane rolls wrap zeros into cols 0 / l_in-1.
        t0 = t[0:CMAX]
        t1 = t[CMAX:2 * CMAX]
        t2 = t[2 * CMAX:3 * CMAX]
        y = (pltpu.roll(t0, 1, axis=1) + t1
             + pltpu.roll(t2, width - 1, axis=1))        # roll by -1 (XLU)
        l_out = l_in // stride
        if stride == 2:
            # Single downsample matmul against a 0/1 even-column selector;
            # junk columns >= l_out are cleaned up by the mask below.
            sel = sel_w_ref[...] if width == W_WIDE else sel_n_ref[...]
            y = jnp.dot(y, sel, preferred_element_type=jnp.float32)
        y = y + bb_ref[:, l:l + 1]                       # (40,1) lane broadcast
        col = col_w if y.shape[1] == W_WIDE else col_n
        # ReLU + re-zero the padding columns (keeps the zero-pad invariant).
        a = jnp.where(col < l_out, jnp.maximum(y, 0.0), 0.0)
        l_in = l_out

    # Fused head: sigmoid( sum(a * (pool_w ⊗ fc_w)) + pool_b*sum(fc_w) + fc_b )
    z = jnp.sum(a * hw_ref[...], axis=1, keepdims=True)   # (40, 1) lane reduce
    z = jnp.sum(z, axis=0, keepdims=True)                 # (1, 1) sublane reduce
    o_ref[0] = 1.0 / (1.0 + jnp.exp(-(z + hb_ref[...])))


# ----------------------------------------------------------------------------
# Host-side packing of all parameters (done once).
# ----------------------------------------------------------------------------
def _even_sel(rows, cols):
    r = jnp.arange(rows, dtype=jnp.int32)[:, None]
    c = jnp.arange(cols, dtype=jnp.int32)[None, :]
    return (r == 2 * c).astype(jnp.float32)


def pack_params(conv_params, pool_w, pool_b, fc_w, fc_b):
    nl = len(LAYER_SPECS)
    wv = jnp.zeros((nl, 3 * CMAX, CMAX), jnp.float32)
    bb = jnp.zeros((CMAX, nl), jnp.float32)              # lane-dense biases
    for l, ((w, b), (ic, oc, _)) in enumerate(zip(conv_params, LAYER_SPECS)):
        for k in range(3):
            wv = wv.at[l, k * CMAX:k * CMAX + oc, 0:ic].set(w[:, :, k])
        bb = bb.at[0:oc, l].set(b)
    sel_w = _even_sel(W_WIDE, W_NARROW)                   # (256, 128)
    sel_n = _even_sel(W_NARROW, W_NARROW)                 # (128, 128)
    # Fused pool(20->1, k=1) + Linear(6,1) head:
    #   z = sum_{c,j} pool_w[c]*fc_w[j]*a[c,j] + pool_b*sum(fc_w) + fc_b
    pw = pool_w.reshape(20)
    fw = fc_w.reshape(6)
    hw = jnp.zeros((CMAX, W_NARROW), jnp.float32)
    hw = hw.at[0:20, 0:6].set(pw[:, None] * fw[None, :])
    hb = (pool_b.reshape(()) * jnp.sum(fw) + fc_b.reshape(())).reshape(1, 1)
    return wv, bb, sel_w, sel_n, hw, hb


# ----------------------------------------------------------------------------
# Wrapper
# ----------------------------------------------------------------------------
@jax.jit
def cnnd_forward(x, packed):
    """x: (N, 1, 192) f32; packed = pack_params(...). Returns (N,) sigmoids."""
    wv, bb, sel_w, sel_n, hw, hb = packed
    n = x.shape[0]
    # Zero-pad the length to the 256-lane container once, on the XLA side.
    xp = jnp.zeros((n, 1, W_WIDE), jnp.float32).at[:, :, :L_IN].set(x)
    out = pl.pallas_call(
        _cnnd_kernel,
        out_shape=jax.ShapeDtypeStruct((n, 1, 1), jnp.float32),
        grid=(n,),
        in_specs=[
            pl.BlockSpec((1, 1, W_WIDE), lambda i: (i, 0, 0)),
            pl.BlockSpec(wv.shape, lambda i: (0, 0, 0)),     # weights: fetched
            pl.BlockSpec(bb.shape, lambda i: (0, 0)),        # once, resident
            pl.BlockSpec(sel_w.shape, lambda i: (0, 0)),
            pl.BlockSpec(sel_n.shape, lambda i: (0, 0)),
            pl.BlockSpec(hw.shape, lambda i: (0, 0)),
            pl.BlockSpec(hb.shape, lambda i: (0, 0)),
        ],
        out_specs=pl.BlockSpec((1, 1, 1), lambda i: (i, 0, 0)),
        compiler_params=pltpu.CompilerParams(
            dimension_semantics=("parallel",),   # batch items -> both v7x TCs
        ),
    )(xp, wv, bb, sel_w, sel_n, hw, hb)
    return out.reshape(-1)


# ----------------------------------------------------------------------------
# Deterministic parameter init (PyTorch-style uniform bounds)
# ----------------------------------------------------------------------------
def _init_conv(key, oc, ic, k):
    kw, kb = jax.random.split(key)
    bound = 1.0 / float(ic * k) ** 0.5
    w = jax.random.uniform(kw, (oc, ic, k), jnp.float32, -bound, bound)
    b = jax.random.uniform(kb, (oc,), jnp.float32, -bound, bound)
    return w, b


def make_params(key):
    conv_params = []
    for (ic, oc, _) in LAYER_SPECS:
        key, sub = jax.random.split(key)
        conv_params.append(_init_conv(sub, oc, ic, 3))
    key, sub = jax.random.split(key)
    pool_w, pool_b = _init_conv(sub, 1, 20, 1)          # Conv1d(20, 1, 1)
    key, sub = jax.random.split(key)
    kw, kb = jax.random.split(sub)
    bound = 1.0 / 6.0 ** 0.5
    fc_w = jax.random.uniform(kw, (1, 6), jnp.float32, -bound, bound)
    fc_b = jax.random.uniform(kb, (1,), jnp.float32, -bound, bound)
    strides = tuple(s for (_, _, s) in LAYER_SPECS)
    return conv_params, strides, pool_w, pool_b, fc_w, fc_b


# ----------------------------------------------------------------------------
# Pure-JAX reference (for verification)
# ----------------------------------------------------------------------------
def _ref_conv(x, w, b, stride, pad):
    y = jax.lax.conv_general_dilated(
        x, w, window_strides=(stride,), padding=[(pad, pad)],
        dimension_numbers=("NCH", "OIH", "NCH"))
    return y + b[None, :, None]


def ref_forward(x, conv_params, conv_strides, pool_w, pool_b, fc_w, fc_b):
    for (w, b), s in zip(conv_params, conv_strides):
        x = jax.nn.relu(_ref_conv(x, w, b, s, pad=1))
    pooled = _ref_conv(x, pool_w, pool_b, stride=1, pad=0)     # (N, 1, 6)
    flat = pooled.reshape(pooled.shape[0], -1)                 # (N, 6)
    z = flat @ fc_w.T + fc_b                                   # (N, 1)
    return jax.nn.sigmoid(z).reshape(-1)


# ----------------------------------------------------------------------------
if __name__ == "__main__":
    key = jax.random.PRNGKey(0)
    pkey, xkey = jax.random.split(key)

    conv_params, conv_strides, pool_w, pool_b, fc_w, fc_b = make_params(pkey)
    packed = pack_params(conv_params, pool_w, pool_b, fc_w, fc_b)

    # Linear(6, 1) forces input length 192. Batch = 2, 1 input channel.
    x = jax.random.normal(xkey, (2, 1, L_IN), dtype=jnp.float32)

    out = jax.block_until_ready(cnnd_forward(x, packed))
    ref = jax.block_until_ready(
        ref_forward(x, conv_params, conv_strides, pool_w, pool_b, fc_w, fc_b))

    assert out.shape == (2,), out.shape
    assert jnp.allclose(out, ref, rtol=1e-3, atol=1e-3), (out, ref)

    print("KERNEL_OK")
</pallas_src>

<mosaic_0001>
module attributes {stable_mosaic.version = 11 : i64} {
  func.func @_cnnd_kernel(%arg0: i32, %arg1: memref<1x1x256xf32, #tpu.memory_space<vmem>>, %arg2: memref<16x120x40xf32, #tpu.memory_space<vmem>>, %arg3: memref<40x16xf32, #tpu.memory_space<vmem>>, %arg4: memref<256x128xf32, #tpu.memory_space<vmem>>, %arg5: memref<128x128xf32, #tpu.memory_space<vmem>>, %arg6: memref<40x128xf32, #tpu.memory_space<vmem>>, %arg7: memref<1x1xf32, #tpu.memory_space<vmem>>, %arg8: memref<1x1x1xf32, #tpu.memory_space<vmem>>) attributes {dimension_semantics = [#tpu.dimension_semantics<parallel>], iteration_bounds = array<i64: 2>, scalar_prefetch = 0 : i64, scratch_operands = 0 : i64, tpu.core_type = #tpu.core_type<tc>, window_params = [{transform_indices = @transform_0, window_bounds = array<i64: 1, 1, 256>}, {pipeline_mode = #tpu.pipeline_mode<synchronous>, transform_indices = @transform_1, window_bounds = array<i64: 16, 120, 40>}, {pipeline_mode = #tpu.pipeline_mode<synchronous>, transform_indices = @transform_2, window_bounds = array<i64: 40, 16>}, {pipeline_mode = #tpu.pipeline_mode<synchronous>, transform_indices = @transform_3, window_bounds = array<i64: 256, 128>}, {pipeline_mode = #tpu.pipeline_mode<synchronous>, transform_indices = @transform_4, window_bounds = array<i64: 128, 128>}, {pipeline_mode = #tpu.pipeline_mode<synchronous>, transform_indices = @transform_5, window_bounds = array<i64: 40, 128>}, {pipeline_mode = #tpu.pipeline_mode<synchronous>, transform_indices = @transform_6, window_bounds = array<i64: 1, 1>}, {transform_indices = @transform_7, window_bounds = array<i64: 1, 1, 1>}]} {
    %0 = tpu.iota {dimensions = array<i32: 1>} : vector<1x256xi32>
    %1 = tpu.iota {dimensions = array<i32: 1>} : vector<1x128xi32>
    %c0 = arith.constant 0 : index
    %c0_0 = arith.constant 0 : index
    %c0_1 = arith.constant 0 : index
    %2 = vector.load %arg1[%c0, %c0_0, %c0_1] : memref<1x1x256xf32, #tpu.memory_space<vmem>>, vector<1x1x256xf32>
    %3 = vector.shape_cast %2 : vector<1x1x256xf32> to vector<1x256xf32>
    %c0_2 = arith.constant 0 : index
    %c0_3 = arith.constant 0 : index
    %c0_4 = arith.constant 0 : index
    %4 = vector.load %arg2[%c0_2, %c0_3, %c0_4] : memref<16x120x40xf32, #tpu.memory_space<vmem>>, vector<1x120x40xf32>
    %5 = vector.shape_cast %4 : vector<1x120x40xf32> to vector<120x40xf32>
    %6 = vector.extract_strided_slice %5 {offsets = [0, 0], sizes = [120, 1], strides = [1, 1]} : vector<120x40xf32> to vector<120x1xf32>
    %7 = vector.broadcast %6 : vector<120x1xf32> to vector<120x256xf32>
    %8 = vector.broadcast %3 : vector<1x256xf32> to vector<120x256xf32>
    %9 = arith.mulf %7, %8 : vector<120x256xf32>
    %10 = vector.extract_strided_slice %9 {offsets = [0, 0], sizes = [40, 256], strides = [1, 1]} : vector<120x256xf32> to vector<40x256xf32>
    %11 = vector.extract_strided_slice %9 {offsets = [40, 0], sizes = [40, 256], strides = [1, 1]} : vector<120x256xf32> to vector<40x256xf32>
    %12 = vector.extract_strided_slice %9 {offsets = [80, 0], sizes = [40, 256], strides = [1, 1]} : vector<120x256xf32> to vector<40x256xf32>
    %c1_i32 = arith.constant 1 : i32
    %13 = tpu.dynamic_rotate %10 by %c1_i32 dim 1 : vector<40x256xf32>, i32 -> vector<40x256xf32>
    %14 = arith.addf %13, %11 : vector<40x256xf32>
    %c255_i32 = arith.constant 255 : i32
    %15 = tpu.dynamic_rotate %12 by %c255_i32 dim 1 : vector<40x256xf32>, i32 -> vector<40x256xf32>
    %16 = arith.addf %14, %15 : vector<40x256xf32>
    %c0_5 = arith.constant 0 : index
    %c0_6 = arith.constant 0 : index
    %17 = vector.load %arg3[%c0_5, %c0_6] : memref<40x16xf32, #tpu.memory_space<vmem>>, vector<40x1xf32>
    %18 = vector.broadcast %17 : vector<40x1xf32> to vector<40x256xf32>
    %19 = arith.addf %16, %18 : vector<40x256xf32>
    %c192_i32 = arith.constant 192 : i32
    %20 = vector.broadcast %c192_i32 : i32 to vector<1x256xi32>
    %21 = arith.cmpi slt, %0, %20 : vector<1x256xi32>
    %cst = arith.constant 0.000000e+00 : f32
    %22 = vector.broadcast %cst : f32 to vector<40x256xf32>
    %23 = arith.maximumf %19, %22 : vector<40x256xf32>
    %cst_7 = arith.constant 0.000000e+00 : f32
    %24 = vector.shape_cast %21 : vector<1x256xi1> to vector<1x256xi1>
    %25 = vector.broadcast %24 : vector<1x256xi1> to vector<40x256xi1>
    %26 = vector.broadcast %cst_7 : f32 to vector<40x256xf32>
    %27 = arith.select %25, %23, %26 : vector<40x256xi1>, vector<40x256xf32>
    %c1 = arith.constant 1 : index
    %c0_8 = arith.constant 0 : index
    %c0_9 = arith.constant 0 : index
    %28 = vector.load %arg2[%c1, %c0_8, %c0_9] : memref<16x120x40xf32, #tpu.memory_space<vmem>>, vector<1x120x40xf32>
    %29 = vector.shape_cast %28 : vector<1x120x40xf32> to vector<120x40xf32>
    %cst_10 = arith.constant dense<0.000000e+00> : vector<120x256xf32>
    %30 = tpu.matmul %29, %27, %cst_10 {dimension_numbers = #tpu.dot_dimension_numbers<[1], [0], [0], [1], [0, 0, 1, 1], [], []>} : vector<120x40xf32>, vector<40x256xf32>, vector<120x256xf32> -> vector<120x256xf32>
    %31 = vector.extract_strided_slice %30 {offsets = [0, 0], sizes = [40, 256], strides = [1, 1]} : vector<120x256xf32> to vector<40x256xf32>
    %32 = vector.extract_strided_slice %30 {offsets = [40, 0], sizes = [40, 256], strides = [1, 1]} : vector<120x256xf32> to vector<40x256xf32>
    %33 = vector.extract_strided_slice %30 {offsets = [80, 0], sizes = [40, 256], strides = [1, 1]} : vector<120x256xf32> to vector<40x256xf32>
    %c1_i32_11 = arith.constant 1 : i32
    %34 = tpu.dynamic_rotate %31 by %c1_i32_11 dim 1 : vector<40x256xf32>, i32 -> vector<40x256xf32>
    %35 = arith.addf %34, %32 : vector<40x256xf32>
    %c255_i32_12 = arith.constant 255 : i32
    %36 = tpu.dynamic_rotate %33 by %c255_i32_12 dim 1 : vector<40x256xf32>, i32 -> vector<40x256xf32>
    %37 = arith.addf %35, %36 : vector<40x256xf32>
    %c0_13 = arith.constant 0 : index
    %c1_14 = arith.constant 1 : index
    %38 = vector.load %arg3[%c0_13, %c1_14] : memref<40x16xf32, #tpu.memory_space<vmem>>, vector<40x1xf32>
    %39 = vector.broadcast %38 : vector<40x1xf32> to vector<40x256xf32>
    %40 = arith.addf %37, %39 : vector<40x256xf32>
    %c192_i32_15 = arith.constant 192 : i32
    %41 = vector.broadcast %c192_i32_15 : i32 to vector<1x256xi32>
    %42 = arith.cmpi slt, %0, %41 : vector<1x256xi32>
    %cst_16 = arith.constant 0.000000e+00 : f32
    %43 = vector.broadcast %cst_16 : f32 to vector<40x256xf32>
    %44 = arith.maximumf %40, %43 : vector<40x256xf32>
    %cst_17 = arith.constant 0.000000e+00 : f32
    %45 = vector.shape_cast %42 : vector<1x256xi1> to vector<1x256xi1>
    %46 = vector.broadcast %45 : vector<1x256xi1> to vector<40x256xi1>
    %47 = vector.broadcast %cst_17 : f32 to vector<40x256xf32>
    %48 = arith.select %46, %44, %47 : vector<40x256xi1>, vector<40x256xf32>
    %c2 = arith.constant 2 : index
    %c0_18 = arith.constant 0 : index
    %c0_19 = arith.constant 0 : index
    %49 = vector.load %arg2[%c2, %c0_18, %c0_19] : memref<16x120x40xf32, #tpu.memory_space<vmem>>, vector<1x120x40xf32>
    %50 = vector.shape_cast %49 : vector<1x120x40xf32> to vector<120x40xf32>
    %cst_20 = arith.constant dense<0.000000e+00> : vector<120x256xf32>
    %51 = tpu.matmul %50, %48, %cst_20 {dimension_numbers = #tpu.dot_dimension_numbers<[1], [0], [0], [1], [0, 0, 1, 1], [], []>} : vector<120x40xf32>, vector<40x256xf32>, vector<120x256xf32> -> vector<120x256xf32>
    %52 = vector.extract_strided_slice %51 {offsets = [0, 0], sizes = [40, 256], strides = [1, 1]} : vector<120x256xf32> to vector<40x256xf32>
    %53 = vector.extract_strided_slice %51 {offsets = [40, 0], sizes = [40, 256], strides = [1, 1]} : vector<120x256xf32> to vector<40x256xf32>
    %54 = vector.extract_strided_slice %51 {offsets = [80, 0], sizes = [40, 256], strides = [1, 1]} : vector<120x256xf32> to vector<40x256xf32>
    %c1_i32_21 = arith.constant 1 : i32
    %55 = tpu.dynamic_rotate %52 by %c1_i32_21 dim 1 : vector<40x256xf32>, i32 -> vector<40x256xf32>
    %56 = arith.addf %55, %53 : vector<40x256xf32>
    %c255_i32_22 = arith.constant 255 : i32
    %57 = tpu.dynamic_rotate %54 by %c255_i32_22 dim 1 : vector<40x256xf32>, i32 -> vector<40x256xf32>
    %58 = arith.addf %56, %57 : vector<40x256xf32>
    %c0_23 = arith.constant 0 : index
    %c2_24 = arith.constant 2 : index
    %59 = vector.load %arg3[%c0_23, %c2_24] : memref<40x16xf32, #tpu.memory_space<vmem>>, vector<40x1xf32>
    %60 = vector.broadcast %59 : vector<40x1xf32> to vector<40x256xf32>
    %61 = arith.addf %58, %60 : vector<40x256xf32>
    %c192_i32_25 = arith.constant 192 : i32
    %62 = vector.broadcast %c192_i32_25 : i32 to vector<1x256xi32>
    %63 = arith.cmpi slt, %0, %62 : vector<1x256xi32>
    %cst_26 = arith.constant 0.000000e+00 : f32
    %64 = vector.broadcast %cst_26 : f32 to vector<40x256xf32>
    %65 = arith.maximumf %61, %64 : vector<40x256xf32>
    %cst_27 = arith.constant 0.000000e+00 : f32
    %66 = vector.shape_cast %63 : vector<1x256xi1> to vector<1x256xi1>
    %67 = vector.broadcast %66 : vector<1x256xi1> to vector<40x256xi1>
    %68 = vector.broadcast %cst_27 : f32 to vector<40x256xf32>
    %69 = arith.select %67, %65, %68 : vector<40x256xi1>, vector<40x256xf32>
    %c3 = arith.constant 3 : index
    %c0_28 = arith.constant 0 : index
    %c0_29 = arith.constant 0 : index
    %70 = vector.load %arg2[%c3, %c0_28, %c0_29] : memref<16x120x40xf32, #tpu.memory_space<vmem>>, vector<1x120x40xf32>
    %71 = vector.shape_cast %70 : vector<1x120x40xf32> to vector<120x40xf32>
    %cst_30 = arith.constant dense<0.000000e+00> : vector<120x256xf32>
    %72 = tpu.matmul %71, %69, %cst_30 {dimension_numbers = #tpu.dot_dimension_numbers<[1], [0], [0], [1], [0, 0, 1, 1], [], []>} : vector<120x40xf32>, vector<40x256xf32>, vector<120x256xf32> -> vector<120x256xf32>
    %73 = vector.extract_strided_slice %72 {offsets = [0, 0], sizes = [40, 256], strides = [1, 1]} : vector<120x256xf32> to vector<40x256xf32>
    %74 = vector.extract_strided_slice %72 {offsets = [40, 0], sizes = [40, 256], strides = [1, 1]} : vector<120x256xf32> to vector<40x256xf32>
    %75 = vector.extract_strided_slice %72 {offsets = [80, 0], sizes = [40, 256], strides = [1, 1]} : vector<120x256xf32> to vector<40x256xf32>
    %c1_i32_31 = arith.constant 1 : i32
    %76 = tpu.dynamic_rotate %73 by %c1_i32_31 dim 1 : vector<40x256xf32>, i32 -> vector<40x256xf32>
    %77 = arith.addf %76, %74 : vector<40x256xf32>
    %c255_i32_32 = arith.constant 255 : i32
    %78 = tpu.dynamic_rotate %75 by %c255_i32_32 dim 1 : vector<40x256xf32>, i32 -> vector<40x256xf32>
    %79 = arith.addf %77, %78 : vector<40x256xf32>
    %c0_33 = arith.constant 0 : index
    %c0_34 = arith.constant 0 : index
    %80 = vector.load %arg4[%c0_33, %c0_34] : memref<256x128xf32, #tpu.memory_space<vmem>>, vector<256x128xf32>
    %cst_35 = arith.constant dense<0.000000e+00> : vector<40x128xf32>
    %81 = tpu.matmul %79, %80, %cst_35 {dimension_numbers = #tpu.dot_dimension_numbers<[1], [0], [0], [1], [0, 0, 1, 1], [], []>} : vector<40x256xf32>, vector<256x128xf32>, vector<40x128xf32> -> vector<40x128xf32>
    %c0_36 = arith.constant 0 : index
    %c3_37 = arith.constant 3 : index
    %82 = vector.load %arg3[%c0_36, %c3_37] : memref<40x16xf32, #tpu.memory_space<vmem>>, vector<40x1xf32>
    %83 = vector.broadcast %82 : vector<40x1xf32> to vector<40x128xf32>
    %84 = arith.addf %81, %83 : vector<40x128xf32>
    %c96_i32 = arith.constant 96 : i32
    %85 = vector.broadcast %c96_i32 : i32 to vector<1x128xi32>
    %86 = arith.cmpi slt, %1, %85 : vector<1x128xi32>
    %cst_38 = arith.constant 0.000000e+00 : f32
    %87 = vector.broadcast %cst_38 : f32 to vector<40x128xf32>
    %88 = arith.maximumf %84, %87 : vector<40x128xf32>
    %cst_39 = arith.constant 0.000000e+00 : f32
    %89 = vector.shape_cast %86 : vector<1x128xi1> to vector<1x128xi1>
    %90 = vector.broadcast %89 : vector<1x128xi1> to vector<40x128xi1>
    %91 = vector.broadcast %cst_39 : f32 to vector<40x128xf32>
    %92 = arith.select %90, %88, %91 : vector<40x128xi1>, vector<40x128xf32>
    %c4 = arith.constant 4 : index
    %c0_40 = arith.constant 0 : index
    %c0_41 = arith.constant 0 : index
    %93 = vector.load %arg2[%c4, %c0_40, %c0_41] : memref<16x120x40xf32, #tpu.memory_space<vmem>>, vector<1x120x40xf32>
    %94 = vector.shape_cast %93 : vector<1x120x40xf32> to vector<120x40xf32>
    %cst_42 = arith.constant dense<0.000000e+00> : vector<120x128xf32>
    %95 = tpu.matmul %94, %92, %cst_42 {dimension_numbers = #tpu.dot_dimension_numbers<[1], [0], [0], [1], [0, 0, 1, 1], [], []>} : vector<120x40xf32>, vector<40x128xf32>, vector<120x128xf32> -> vector<120x128xf32>
    %96 = vector.extract_strided_slice %95 {offsets = [0, 0], sizes = [40, 128], strides = [1, 1]} : vector<120x128xf32> to vector<40x128xf32>
    %97 = vector.extract_strided_slice %95 {offsets = [40, 0], sizes = [40, 128], strides = [1, 1]} : vector<120x128xf32> to vector<40x128xf32>
    %98 = vector.extract_strided_slice %95 {offsets = [80, 0], sizes = [40, 128], strides = [1, 1]} : vector<120x128xf32> to vector<40x128xf32>
    %c1_i32_43 = arith.constant 1 : i32
    %99 = tpu.dynamic_rotate %96 by %c1_i32_43 dim 1 : vector<40x128xf32>, i32 -> vector<40x128xf32>
    %100 = arith.addf %99, %97 : vector<40x128xf32>
    %c127_i32 = arith.constant 127 : i32
    %101 = tpu.dynamic_rotate %98 by %c127_i32 dim 1 : vector<40x128xf32>, i32 -> vector<40x128xf32>
    %102 = arith.addf %100, %101 : vector<40x128xf32>
    %c0_44 = arith.constant 0 : index
    %c4_45 = arith.constant 4 : index
    %103 = vector.load %arg3[%c0_44, %c4_45] : memref<40x16xf32, #tpu.memory_space<vmem>>, vector<40x1xf32>
    %104 = vector.broadcast %103 : vector<40x1xf32> to vector<40x128xf32>
    %105 = arith.addf %102, %104 : vector<40x128xf32>
    %c96_i32_46 = arith.constant 96 : i32
    %106 = vector.broadcast %c96_i32_46 : i32 to vector<1x128xi32>
    %107 = arith.cmpi slt, %1, %106 : vector<1x128xi32>
    %cst_47 = arith.constant 0.000000e+00 : f32
    %108 = vector.broadcast %cst_47 : f32 to vector<40x128xf32>
    %109 = arith.maximumf %105, %108 : vector<40x128xf32>
    %cst_48 = arith.constant 0.000000e+00 : f32
    %110 = vector.shape_cast %107 : vector<1x128xi1> to vector<1x128xi1>
    %111 = vector.broadcast %110 : vector<1x128xi1> to vector<40x128xi1>
    %112 = vector.broadcast %cst_48 : f32 to vector<40x128xf32>
    %113 = arith.select %111, %109, %112 : vector<40x128xi1>, vector<40x128xf32>
    %c5 = arith.constant 5 : index
    %c0_49 = arith.constant 0 : index
    %c0_50 = arith.constant 0 : index
    %114 = vector.load %arg2[%c5, %c0_49, %c0_50] : memref<16x120x40xf32, #tpu.memory_space<vmem>>, vector<1x120x40xf32>
    %115 = vector.shape_cast %114 : vector<1x120x40xf32> to vector<120x40xf32>
    %cst_51 = arith.constant dense<0.000000e+00> : vector<120x128xf32>
    %116 = tpu.matmul %115, %113, %cst_51 {dimension_numbers = #tpu.dot_dimension_numbers<[1], [0], [0], [1], [0, 0, 1, 1], [], []>} : vector<120x40xf32>, vector<40x128xf32>, vector<120x128xf32> -> vector<120x128xf32>
    %117 = vector.extract_strided_slice %116 {offsets = [0, 0], sizes = [40, 128], strides = [1, 1]} : vector<120x128xf32> to vector<40x128xf32>
    %118 = vector.extract_strided_slice %116 {offsets = [40, 0], sizes = [40, 128], strides = [1, 1]} : vector<120x128xf32> to vector<40x128xf32>
    %119 = vector.extract_strided_slice %116 {offsets = [80, 0], sizes = [40, 128], strides = [1, 1]} : vector<120x128xf32> to vector<40x128xf32>
    %c1_i32_52 = arith.constant 1 : i32
    %120 = tpu.dynamic_rotate %117 by %c1_i32_52 dim 1 : vector<40x128xf32>, i32 -> vector<40x128xf32>
    %121 = arith.addf %120, %118 : vector<40x128xf32>
    %c127_i32_53 = arith.constant 127 : i32
    %122 = tpu.dynamic_rotate %119 by %c127_i32_53 dim 1 : vector<40x128xf32>, i32 -> vector<40x128xf32>
    %123 = arith.addf %121, %122 : vector<40x128xf32>
    %c0_54 = arith.constant 0 : index
    %c5_55 = arith.constant 5 : index
    %124 = vector.load %arg3[%c0_54, %c5_55] : memref<40x16xf32, #tpu.memory_space<vmem>>, vector<40x1xf32>
    %125 = vector.broadcast %124 : vector<40x1xf32> to vector<40x128xf32>
    %126 = arith.addf %123, %125 : vector<40x128xf32>
    %c96_i32_56 = arith.constant 96 : i32
    %127 = vector.broadcast %c96_i32_56 : i32 to vector<1x128xi32>
    %128 = arith.cmpi slt, %1, %127 : vector<1x128xi32>
    %cst_57 = arith.constant 0.000000e+00 : f32
    %129 = vector.broadcast %cst_57 : f32 to vector<40x128xf32>
    %130 = arith.maximumf %126, %129 : vector<40x128xf32>
    %cst_58 = arith.constant 0.000000e+00 : f32
    %131 = vector.shape_cast %128 : vector<1x128xi1> to vector<1x128xi1>
    %132 = vector.broadcast %131 : vector<1x128xi1> to vector<40x128xi1>
    %133 = vector.broadcast %cst_58 : f32 to vector<40x128xf32>
    %134 = arith.select %132, %130, %133 : vector<40x128xi1>, vector<40x128xf32>
    %c6 = arith.constant 6 : index
    %c0_59 = arith.constant 0 : index
    %c0_60 = arith.constant 0 : index
    %135 = vector.load %arg2[%c6, %c0_59, %c0_60] : memref<16x120x40xf32, #tpu.memory_space<vmem>>, vector<1x120x40xf32>
    %136 = vector.shape_cast %135 : vector<1x120x40xf32> to vector<120x40xf32>
    %cst_61 = arith.constant dense<0.000000e+00> : vector<120x128xf32>
    %137 = tpu.matmul %136, %134, %cst_61 {dimension_numbers = #tpu.dot_dimension_numbers<[1], [0], [0], [1], [0, 0, 1, 1], [], []>} : vector<120x40xf32>, vector<40x128xf32>, vector<120x128xf32> -> vector<120x128xf32>
    %138 = vector.extract_strided_slice %137 {offsets = [0, 0], sizes = [40, 128], strides = [1, 1]} : vector<120x128xf32> to vector<40x128xf32>
    %139 = vector.extract_strided_slice %137 {offsets = [40, 0], sizes = [40, 128], strides = [1, 1]} : vector<120x128xf32> to vector<40x128xf32>
    %140 = vector.extract_strided_slice %137 {offsets = [80, 0], sizes = [40, 128], strides = [1, 1]} : vector<120x128xf32> to vector<40x128xf32>
    %c1_i32_62 = arith.constant 1 : i32
    %141 = tpu.dynamic_rotate %138 by %c1_i32_62 dim 1 : vector<40x128xf32>, i32 -> vector<40x128xf32>
    %142 = arith.addf %141, %139 : vector<40x128xf32>
    %c127_i32_63 = arith.constant 127 : i32
    %143 = tpu.dynamic_rotate %140 by %c127_i32_63 dim 1 : vector<40x128xf32>, i32 -> vector<40x128xf32>
    %144 = arith.addf %142, %143 : vector<40x128xf32>
    %c0_64 = arith.constant 0 : index
    %c0_65 = arith.constant 0 : index
    %145 = vector.load %arg5[%c0_64, %c0_65] : memref<128x128xf32, #tpu.memory_space<vmem>>, vector<128x128xf32>
    %cst_66 = arith.constant dense<0.000000e+00> : vector<40x128xf32>
    %146 = tpu.matmul %144, %145, %cst_66 {dimension_numbers = #tpu.dot_dimension_numbers<[1], [0], [0], [1], [0, 0, 1, 1], [], []>} : vector<40x128xf32>, vector<128x128xf32>, vector<40x128xf32> -> vector<40x128xf32>
    %c0_67 = arith.constant 0 : index
    %c6_68 = arith.constant 6 : index
    %147 = vector.load %arg3[%c0_67, %c6_68] : memref<40x16xf32, #tpu.memory_space<vmem>>, vector<40x1xf32>
    %148 = vector.broadcast %147 : vector<40x1xf32> to vector<40x128xf32>
    %149 = arith.addf %146, %148 : vector<40x128xf32>
    %c48_i32 = arith.constant 48 : i32
    %150 = vector.broadcast %c48_i32 : i32 to vector<1x128xi32>
    %151 = arith.cmpi slt, %1, %150 : vector<1x128xi32>
    %cst_69 = arith.constant 0.000000e+00 : f32
    %152 = vector.broadcast %cst_69 : f32 to vector<40x128xf32>
    %153 = arith.maximumf %149, %152 : vector<40x128xf32>
    %cst_70 = arith.constant 0.000000e+00 : f32
    %154 = vector.shape_cast %151 : vector<1x128xi1> to vector<1x128xi1>
    %155 = vector.broadcast %154 : vector<1x128xi1> to vector<40x128xi1>
    %156 = vector.broadcast %cst_70 : f32 to vector<40x128xf32>
    %157 = arith.select %155, %153, %156 : vector<40x128xi1>, vector<40x128xf32>
    %c7 = arith.constant 7 : index
    %c0_71 = arith.constant 0 : index
    %c0_72 = arith.constant 0 : index
    %158 = vector.load %arg2[%c7, %c0_71, %c0_72] : memref<16x120x40xf32, #tpu.memory_space<vmem>>, vector<1x120x40xf32>
    %159 = vector.shape_cast %158 : vector<1x120x40xf32> to vector<120x40xf32>
    %cst_73 = arith.constant dense<0.000000e+00> : vector<120x128xf32>
    %160 = tpu.matmul %159, %157, %cst_73 {dimension_numbers = #tpu.dot_dimension_numbers<[1], [0], [0], [1], [0, 0, 1, 1], [], []>} : vector<120x40xf32>, vector<40x128xf32>, vector<120x128xf32> -> vector<120x128xf32>
    %161 = vector.extract_strided_slice %160 {offsets = [0, 0], sizes = [40, 128], strides = [1, 1]} : vector<120x128xf32> to vector<40x128xf32>
    %162 = vector.extract_strided_slice %160 {offsets = [40, 0], sizes = [40, 128], strides = [1, 1]} : vector<120x128xf32> to vector<40x128xf32>
    %163 = vector.extract_strided_slice %160 {offsets = [80, 0], sizes = [40, 128], strides = [1, 1]} : vector<120x128xf32> to vector<40x128xf32>
    %c1_i32_74 = arith.constant 1 : i32
    %164 = tpu.dynamic_rotate %161 by %c1_i32_74 dim 1 : vector<40x128xf32>, i32 -> vector<40x128xf32>
    %165 = arith.addf %164, %162 : vector<40x128xf32>
    %c127_i32_75 = arith.constant 127 : i32
    %166 = tpu.dynamic_rotate %163 by %c127_i32_75 dim 1 : vector<40x128xf32>, i32 -> vector<40x128xf32>
    %167 = arith.addf %165, %166 : vector<40x128xf32>
    %c0_76 = arith.constant 0 : index
    %c7_77 = arith.constant 7 : index
    %168 = vector.load %arg3[%c0_76, %c7_77] : memref<40x16xf32, #tpu.memory_space<vmem>>, vector<40x1xf32>
    %169 = vector.broadcast %168 : vector<40x1xf32> to vector<40x128xf32>
    %170 = arith.addf %167, %169 : vector<40x128xf32>
    %c48_i32_78 = arith.constant 48 : i32
    %171 = vector.broadcast %c48_i32_78 : i32 to vector<1x128xi32>
    %172 = arith.cmpi slt, %1, %171 : vector<1x128xi32>
    %cst_79 = arith.constant 0.000000e+00 : f32
    %173 = vector.broadcast %cst_79 : f32 to vector<40x128xf32>
    %174 = arith.maximumf %170, %173 : vector<40x128xf32>
    %cst_80 = arith.constant 0.000000e+00 : f32
    %175 = vector.shape_cast %172 : vector<1x128xi1> to vector<1x128xi1>
    %176 = vector.broadcast %175 : vector<1x128xi1> to vector<40x128xi1>
    %177 = vector.broadcast %cst_80 : f32 to vector<40x128xf32>
    %178 = arith.select %176, %174, %177 : vector<40x128xi1>, vector<40x128xf32>
    %c8 = arith.constant 8 : index
    %c0_81 = arith.constant 0 : index
    %c0_82 = arith.constant 0 : index
    %179 = vector.load %arg2[%c8, %c0_81, %c0_82] : memref<16x120x40xf32, #tpu.memory_space<vmem>>, vector<1x120x40xf32>
    %180 = vector.shape_cast %179 : vector<1x120x40xf32> to vector<120x40xf32>
    %cst_83 = arith.constant dense<0.000000e+00> : vector<120x128xf32>
    %181 = tpu.matmul %180, %178, %cst_83 {dimension_numbers = #tpu.dot_dimension_numbers<[1], [0], [0], [1], [0, 0, 1, 1], [], []>} : vector<120x40xf32>, vector<40x128xf32>, vector<120x128xf32> -> vector<120x128xf32>
    %182 = vector.extract_strided_slice %181 {offsets = [0, 0], sizes = [40, 128], strides = [1, 1]} : vector<120x128xf32> to vector<40x128xf32>
    %183 = vector.extract_strided_slice %181 {offsets = [40, 0], sizes = [40, 128], strides = [1, 1]} : vector<120x128xf32> to vector<40x128xf32>
    %184 = vector.extract_strided_slice %181 {offsets = [80, 0], sizes = [40, 128], strides = [1, 1]} : vector<120x128xf32> to vector<40x128xf32>
    %c1_i32_84 = arith.constant 1 : i32
    %185 = tpu.dynamic_rotate %182 by %c1_i32_84 dim 1 : vector<40x128xf32>, i32 -> vector<40x128xf32>
    %186 = arith.addf %185, %183 : vector<40x128xf32>
    %c127_i32_85 = arith.constant 127 : i32
    %187 = tpu.dynamic_rotate %184 by %c127_i32_85 dim 1 : vector<40x128xf32>, i32 -> vector<40x128xf32>
    %188 = arith.addf %186, %187 : vector<40x128xf32>
    %c0_86 = arith.constant 0 : index
    %c8_87 = arith.constant 8 : index
    %189 = vector.load %arg3[%c0_86, %c8_87] : memref<40x16xf32, #tpu.memory_space<vmem>>, vector<40x1xf32>
    %190 = vector.broadcast %189 : vector<40x1xf32> to vector<40x128xf32>
    %191 = arith.addf %188, %190 : vector<40x128xf32>
    %c48_i32_88 = arith.constant 48 : i32
    %192 = vector.broadcast %c48_i32_88 : i32 to vector<1x128xi32>
    %193 = arith.cmpi slt, %1, %192 : vector<1x128xi32>
    %cst_89 = arith.constant 0.000000e+00 : f32
    %194 = vector.broadcast %cst_89 : f32 to vector<40x128xf32>
    %195 = arith.maximumf %191, %194 : vector<40x128xf32>
    %cst_90 = arith.constant 0.000000e+00 : f32
    %196 = vector.shape_cast %193 : vector<1x128xi1> to vector<1x128xi1>
    %197 = vector.broadcast %196 : vector<1x128xi1> to vector<40x128xi1>
    %198 = vector.broadcast %cst_90 : f32 to vector<40x128xf32>
    %199 = arith.select %197, %195, %198 : vector<40x128xi1>, vector<40x128xf32>
    %c9 = arith.constant 9 : index
    %c0_91 = arith.constant 0 : index
    %c0_92 = arith.constant 0 : index
    %200 = vector.load %arg2[%c9, %c0_91, %c0_92] : memref<16x120x40xf32, #tpu.memory_space<vmem>>, vector<1x120x40xf32>
    %201 = vector.shape_cast %200 : vector<1x120x40xf32> to vector<120x40xf32>
    %cst_93 = arith.constant dense<0.000000e+00> : vector<120x128xf32>
    %202 = tpu.matmul %201, %199, %cst_93 {dimension_numbers = #tpu.dot_dimension_numbers<[1], [0], [0], [1], [0, 0, 1, 1], [], []>} : vector<120x40xf32>, vector<40x128xf32>, vector<120x128xf32> -> vector<120x128xf32>
    %203 = vector.extract_strided_slice %202 {offsets = [0, 0], sizes = [40, 128], strides = [1, 1]} : vector<120x128xf32> to vector<40x128xf32>
    %204 = vector.extract_strided_slice %202 {offsets = [40, 0], sizes = [40, 128], strides = [1, 1]} : vector<120x128xf32> to vector<40x128xf32>
    %205 = vector.extract_strided_slice %202 {offsets = [80, 0], sizes = [40, 128], strides = [1, 1]} : vector<120x128xf32> to vector<40x128xf32>
    %c1_i32_94 = arith.constant 1 : i32
    %206 = tpu.dynamic_rotate %203 by %c1_i32_94 dim 1 : vector<40x128xf32>, i32 -> vector<40x128xf32>
    %207 = arith.addf %206, %204 : vector<40x128xf32>
    %c127_i32_95 = arith.constant 127 : i32
    %208 = tpu.dynamic_rotate %205 by %c127_i32_95 dim 1 : vector<40x128xf32>, i32 -> vector<40x128xf32>
    %209 = arith.addf %207, %208 : vector<40x128xf32>
    %c0_96 = arith.constant 0 : index
    %c0_97 = arith.constant 0 : index
    %210 = vector.load %arg5[%c0_96, %c0_97] : memref<128x128xf32, #tpu.memory_space<vmem>>, vector<128x128xf32>
    %cst_98 = arith.constant dense<0.000000e+00> : vector<40x128xf32>
    %211 = tpu.matmul %209, %210, %cst_98 {dimension_numbers = #tpu.dot_dimension_numbers<[1], [0], [0], [1], [0, 0, 1, 1], [], []>} : vector<40x128xf32>, vector<128x128xf32>, vector<40x128xf32> -> vector<40x128xf32>
    %c0_99 = arith.constant 0 : index
    %c9_100 = arith.constant 9 : index
    %212 = vector.load %arg3[%c0_99, %c9_100] : memref<40x16xf32, #tpu.memory_space<vmem>>, vector<40x1xf32>
    %213 = vector.broadcast %212 : vector<40x1xf32> to vector<40x128xf32>
    %214 = arith.addf %211, %213 : vector<40x128xf32>
    %c24_i32 = arith.constant 24 : i32
    %215 = vector.broadcast %c24_i32 : i32 to vector<1x128xi32>
    %216 = arith.cmpi slt, %1, %215 : vector<1x128xi32>
    %cst_101 = arith.constant 0.000000e+00 : f32
    %217 = vector.broadcast %cst_101 : f32 to vector<40x128xf32>
    %218 = arith.maximumf %214, %217 : vector<40x128xf32>
    %cst_102 = arith.constant 0.000000e+00 : f32
    %219 = vector.shape_cast %216 : vector<1x128xi1> to vector<1x128xi1>
    %220 = vector.broadcast %219 : vector<1x128xi1> to vector<40x128xi1>
    %221 = vector.broadcast %cst_102 : f32 to vector<40x128xf32>
    %222 = arith.select %220, %218, %221 : vector<40x128xi1>, vector<40x128xf32>
    %c10 = arith.constant 10 : index
    %c0_103 = arith.constant 0 : index
    %c0_104 = arith.constant 0 : index
    %223 = vector.load %arg2[%c10, %c0_103, %c0_104] : memref<16x120x40xf32, #tpu.memory_space<vmem>>, vector<1x120x40xf32>
    %224 = vector.shape_cast %223 : vector<1x120x40xf32> to vector<120x40xf32>
    %cst_105 = arith.constant dense<0.000000e+00> : vector<120x128xf32>
    %225 = tpu.matmul %224, %222, %cst_105 {dimension_numbers = #tpu.dot_dimension_numbers<[1], [0], [0], [1], [0, 0, 1, 1], [], []>} : vector<120x40xf32>, vector<40x128xf32>, vector<120x128xf32> -> vector<120x128xf32>
    %226 = vector.extract_strided_slice %225 {offsets = [0, 0], sizes = [40, 128], strides = [1, 1]} : vector<120x128xf32> to vector<40x128xf32>
    %227 = vector.extract_strided_slice %225 {offsets = [40, 0], sizes = [40, 128], strides = [1, 1]} : vector<120x128xf32> to vector<40x128xf32>
    %228 = vector.extract_strided_slice %225 {offsets = [80, 0], sizes = [40, 128], strides = [1, 1]} : vector<120x128xf32> to vector<40x128xf32>
    %c1_i32_106 = arith.constant 1 : i32
    %229 = tpu.dynamic_rotate %226 by %c1_i32_106 dim 1 : vector<40x128xf32>, i32 -> vector<40x128xf32>
    %230 = arith.addf %229, %227 : vector<40x128xf32>
    %c127_i32_107 = arith.constant 127 : i32
    %231 = tpu.dynamic_rotate %228 by %c127_i32_107 dim 1 : vector<40x128xf32>, i32 -> vector<40x128xf32>
    %232 = arith.addf %230, %231 : vector<40x128xf32>
    %c0_108 = arith.constant 0 : index
    %c10_109 = arith.constant 10 : index
    %233 = vector.load %arg3[%c0_108, %c10_109] : memref<40x16xf32, #tpu.memory_space<vmem>>, vector<40x1xf32>
    %234 = vector.broadcast %233 : vector<40x1xf32> to vector<40x128xf32>
    %235 = arith.addf %232, %234 : vector<40x128xf32>
    %c24_i32_110 = arith.constant 24 : i32
    %236 = vector.broadcast %c24_i32_110 : i32 to vector<1x128xi32>
    %237 = arith.cmpi slt, %1, %236 : vector<1x128xi32>
    %cst_111 = arith.constant 0.000000e+00 : f32
    %238 = vector.broadcast %cst_111 : f32 to vector<40x128xf32>
    %239 = arith.maximumf %235, %238 : vector<40x128xf32>
    %cst_112 = arith.constant 0.000000e+00 : f32
    %240 = vector.shape_cast %237 : vector<1x128xi1> to vector<1x128xi1>
    %241 = vector.broadcast %240 : vector<1x128xi1> to vector<40x128xi1>
    %242 = vector.broadcast %cst_112 : f32 to vector<40x128xf32>
    %243 = arith.select %241, %239, %242 : vector<40x128xi1>, vector<40x128xf32>
    %c11 = arith.constant 11 : index
    %c0_113 = arith.constant 0 : index
    %c0_114 = arith.constant 0 : index
    %244 = vector.load %arg2[%c11, %c0_113, %c0_114] : memref<16x120x40xf32, #tpu.memory_space<vmem>>, vector<1x120x40xf32>
    %245 = vector.shape_cast %244 : vector<1x120x40xf32> to vector<120x40xf32>
    %cst_115 = arith.constant dense<0.000000e+00> : vector<120x128xf32>
    %246 = tpu.matmul %245, %243, %cst_115 {dimension_numbers = #tpu.dot_dimension_numbers<[1], [0], [0], [1], [0, 0, 1, 1], [], []>} : vector<120x40xf32>, vector<40x128xf32>, vector<120x128xf32> -> vector<120x128xf32>
    %247 = vector.extract_strided_slice %246 {offsets = [0, 0], sizes = [40, 128], strides = [1, 1]} : vector<120x128xf32> to vector<40x128xf32>
    %248 = vector.extract_strided_slice %246 {offsets = [40, 0], sizes = [40, 128], strides = [1, 1]} : vector<120x128xf32> to vector<40x128xf32>
    %249 = vector.extract_strided_slice %246 {offsets = [80, 0], sizes = [40, 128], strides = [1, 1]} : vector<120x128xf32> to vector<40x128xf32>
    %c1_i32_116 = arith.constant 1 : i32
    %250 = tpu.dynamic_rotate %247 by %c1_i32_116 dim 1 : vector<40x128xf32>, i32 -> vector<40x128xf32>
    %251 = arith.addf %250, %248 : vector<40x128xf32>
    %c127_i32_117 = arith.constant 127 : i32
    %252 = tpu.dynamic_rotate %249 by %c127_i32_117 dim 1 : vector<40x128xf32>, i32 -> vector<40x128xf32>
    %253 = arith.addf %251, %252 : vector<40x128xf32>
    %c0_118 = arith.constant 0 : index
    %c11_119 = arith.constant 11 : index
    %254 = vector.load %arg3[%c0_118, %c11_119] : memref<40x16xf32, #tpu.memory_space<vmem>>, vector<40x1xf32>
    %255 = vector.broadcast %254 : vector<40x1xf32> to vector<40x128xf32>
    %256 = arith.addf %253, %255 : vector<40x128xf32>
    %c24_i32_120 = arith.constant 24 : i32
    %257 = vector.broadcast %c24_i32_120 : i32 to vector<1x128xi32>
    %258 = arith.cmpi slt, %1, %257 : vector<1x128xi32>
    %cst_121 = arith.constant 0.000000e+00 : f32
    %259 = vector.broadcast %cst_121 : f32 to vector<40x128xf32>
    %260 = arith.maximumf %256, %259 : vector<40x128xf32>
    %cst_122 = arith.constant 0.000000e+00 : f32
    %261 = vector.shape_cast %258 : vector<1x128xi1> to vector<1x128xi1>
    %262 = vector.broadcast %261 : vector<1x128xi1> to vector<40x128xi1>
    %263 = vector.broadcast %cst_122 : f32 to vector<40x128xf32>
    %264 = arith.select %262, %260, %263 : vector<40x128xi1>, vector<40x128xf32>
    %c12 = arith.constant 12 : index
    %c0_123 = arith.constant 0 : index
    %c0_124 = arith.constant 0 : index
    %265 = vector.load %arg2[%c12, %c0_123, %c0_124] : memref<16x120x40xf32, #tpu.memory_space<vmem>>, vector<1x120x40xf32>
    %266 = vector.shape_cast %265 : vector<1x120x40xf32> to vector<120x40xf32>
    %cst_125 = arith.constant dense<0.000000e+00> : vector<120x128xf32>
    %267 = tpu.matmul %266, %264, %cst_125 {dimension_numbers = #tpu.dot_dimension_numbers<[1], [0], [0], [1], [0, 0, 1, 1], [], []>} : vector<120x40xf32>, vector<40x128xf32>, vector<120x128xf32> -> vector<120x128xf32>
    %268 = vector.extract_strided_slice %267 {offsets = [0, 0], sizes = [40, 128], strides = [1, 1]} : vector<120x128xf32> to vector<40x128xf32>
    %269 = vector.extract_strided_slice %267 {offsets = [40, 0], sizes = [40, 128], strides = [1, 1]} : vector<120x128xf32> to vector<40x128xf32>
    %270 = vector.extract_strided_slice %267 {offsets = [80, 0], sizes = [40, 128], strides = [1, 1]} : vector<120x128xf32> to vector<40x128xf32>
    %c1_i32_126 = arith.constant 1 : i32
    %271 = tpu.dynamic_rotate %268 by %c1_i32_126 dim 1 : vector<40x128xf32>, i32 -> vector<40x128xf32>
    %272 = arith.addf %271, %269 : vector<40x128xf32>
    %c127_i32_127 = arith.constant 127 : i32
    %273 = tpu.dynamic_rotate %270 by %c127_i32_127 dim 1 : vector<40x128xf32>, i32 -> vector<40x128xf32>
    %274 = arith.addf %272, %273 : vector<40x128xf32>
    %c0_128 = arith.constant 0 : index
    %c0_129 = arith.constant 0 : index
    %275 = vector.load %arg5[%c0_128, %c0_129] : memref<128x128xf32, #tpu.memory_space<vmem>>, vector<128x128xf32>
    %cst_130 = arith.constant dense<0.000000e+00> : vector<40x128xf32>
    %276 = tpu.matmul %274, %275, %cst_130 {dimension_numbers = #tpu.dot_dimension_numbers<[1], [0], [0], [1], [0, 0, 1, 1], [], []>} : vector<40x128xf32>, vector<128x128xf32>, vector<40x128xf32> -> vector<40x128xf32>
    %c0_131 = arith.constant 0 : index
    %c12_132 = arith.constant 12 : index
    %277 = vector.load %arg3[%c0_131, %c12_132] : memref<40x16xf32, #tpu.memory_space<vmem>>, vector<40x1xf32>
    %278 = vector.broadcast %277 : vector<40x1xf32> to vector<40x128xf32>
    %279 = arith.addf %276, %278 : vector<40x128xf32>
    %c12_i32 = arith.constant 12 : i32
    %280 = vector.broadcast %c12_i32 : i32 to vector<1x128xi32>
    %281 = arith.cmpi slt, %1, %280 : vector<1x128xi32>
    %cst_133 = arith.constant 0.000000e+00 : f32
    %282 = vector.broadcast %cst_133 : f32 to vector<40x128xf32>
    %283 = arith.maximumf %279, %282 : vector<40x128xf32>
    %cst_134 = arith.constant 0.000000e+00 : f32
    %284 = vector.shape_cast %281 : vector<1x128xi1> to vector<1x128xi1>
    %285 = vector.broadcast %284 : vector<1x128xi1> to vector<40x128xi1>
    %286 = vector.broadcast %cst_134 : f32 to vector<40x128xf32>
    %287 = arith.select %285, %283, %286 : vector<40x128xi1>, vector<40x128xf32>
    %c13 = arith.constant 13 : index
    %c0_135 = arith.constant 0 : index
    %c0_136 = arith.constant 0 : index
    %288 = vector.load %arg2[%c13, %c0_135, %c0_136] : memref<16x120x40xf32, #tpu.memory_space<vmem>>, vector<1x120x40xf32>
    %289 = vector.shape_cast %288 : vector<1x120x40xf32> to vector<120x40xf32>
    %cst_137 = arith.constant dense<0.000000e+00> : vector<120x128xf32>
    %290 = tpu.matmul %289, %287, %cst_137 {dimension_numbers = #tpu.dot_dimension_numbers<[1], [0], [0], [1], [0, 0, 1, 1], [], []>} : vector<120x40xf32>, vector<40x128xf32>, vector<120x128xf32> -> vector<120x128xf32>
    %291 = vector.extract_strided_slice %290 {offsets = [0, 0], sizes = [40, 128], strides = [1, 1]} : vector<120x128xf32> to vector<40x128xf32>
    %292 = vector.extract_strided_slice %290 {offsets = [40, 0], sizes = [40, 128], strides = [1, 1]} : vector<120x128xf32> to vector<40x128xf32>
    %293 = vector.extract_strided_slice %290 {offsets = [80, 0], sizes = [40, 128], strides = [1, 1]} : vector<120x128xf32> to vector<40x128xf32>
    %c1_i32_138 = arith.constant 1 : i32
    %294 = tpu.dynamic_rotate %291 by %c1_i32_138 dim 1 : vector<40x128xf32>, i32 -> vector<40x128xf32>
    %295 = arith.addf %294, %292 : vector<40x128xf32>
    %c127_i32_139 = arith.constant 127 : i32
    %296 = tpu.dynamic_rotate %293 by %c127_i32_139 dim 1 : vector<40x128xf32>, i32 -> vector<40x128xf32>
    %297 = arith.addf %295, %296 : vector<40x128xf32>
    %c0_140 = arith.constant 0 : index
    %c13_141 = arith.constant 13 : index
    %298 = vector.load %arg3[%c0_140, %c13_141] : memref<40x16xf32, #tpu.memory_space<vmem>>, vector<40x1xf32>
    %299 = vector.broadcast %298 : vector<40x1xf32> to vector<40x128xf32>
    %300 = arith.addf %297, %299 : vector<40x128xf32>
    %c12_i32_142 = arith.constant 12 : i32
    %301 = vector.broadcast %c12_i32_142 : i32 to vector<1x128xi32>
    %302 = arith.cmpi slt, %1, %301 : vector<1x128xi32>
    %cst_143 = arith.constant 0.000000e+00 : f32
    %303 = vector.broadcast %cst_143 : f32 to vector<40x128xf32>
    %304 = arith.maximumf %300, %303 : vector<40x128xf32>
    %cst_144 = arith.constant 0.000000e+00 : f32
    %305 = vector.shape_cast %302 : vector<1x128xi1> to vector<1x128xi1>
    %306 = vector.broadcast %305 : vector<1x128xi1> to vector<40x128xi1>
    %307 = vector.broadcast %cst_144 : f32 to vector<40x128xf32>
    %308 = arith.select %306, %304, %307 : vector<40x128xi1>, vector<40x128xf32>
    %c14 = arith.constant 14 : index
    %c0_145 = arith.constant 0 : index
    %c0_146 = arith.constant 0 : index
    %309 = vector.load %arg2[%c14, %c0_145, %c0_146] : memref<16x120x40xf32, #tpu.memory_space<vmem>>, vector<1x120x40xf32>
    %310 = vector.shape_cast %309 : vector<1x120x40xf32> to vector<120x40xf32>
    %cst_147 = arith.constant dense<0.000000e+00> : vector<120x128xf32>
    %311 = tpu.matmul %310, %308, %cst_147 {dimension_numbers = #tpu.dot_dimension_numbers<[1], [0], [0], [1], [0, 0, 1, 1], [], []>} : vector<120x40xf32>, vector<40x128xf32>, vector<120x128xf32> -> vector<120x128xf32>
    %312 = vector.extract_strided_slice %311 {offsets = [0, 0], sizes = [40, 128], strides = [1, 1]} : vector<120x128xf32> to vector<40x128xf32>
    %313 = vector.extract_strided_slice %311 {offsets = [40, 0], sizes = [40, 128], strides = [1, 1]} : vector<120x128xf32> to vector<40x128xf32>
    %314 = vector.extract_strided_slice %311 {offsets = [80, 0], sizes = [40, 128], strides = [1, 1]} : vector<120x128xf32> to vector<40x128xf32>
    %c1_i32_148 = arith.constant 1 : i32
    %315 = tpu.dynamic_rotate %312 by %c1_i32_148 dim 1 : vector<40x128xf32>, i32 -> vector<40x128xf32>
    %316 = arith.addf %315, %313 : vector<40x128xf32>
    %c127_i32_149 = arith.constant 127 : i32
    %317 = tpu.dynamic_rotate %314 by %c127_i32_149 dim 1 : vector<40x128xf32>, i32 -> vector<40x128xf32>
    %318 = arith.addf %316, %317 : vector<40x128xf32>
    %c0_150 = arith.constant 0 : index
    %c14_151 = arith.constant 14 : index
    %319 = vector.load %arg3[%c0_150, %c14_151] : memref<40x16xf32, #tpu.memory_space<vmem>>, vector<40x1xf32>
    %320 = vector.broadcast %319 : vector<40x1xf32> to vector<40x128xf32>
    %321 = arith.addf %318, %320 : vector<40x128xf32>
    %c12_i32_152 = arith.constant 12 : i32
    %322 = vector.broadcast %c12_i32_152 : i32 to vector<1x128xi32>
    %323 = arith.cmpi slt, %1, %322 : vector<1x128xi32>
    %cst_153 = arith.constant 0.000000e+00 : f32
    %324 = vector.broadcast %cst_153 : f32 to vector<40x128xf32>
    %325 = arith.maximumf %321, %324 : vector<40x128xf32>
    %cst_154 = arith.constant 0.000000e+00 : f32
    %326 = vector.shape_cast %323 : vector<1x128xi1> to vector<1x128xi1>
    %327 = vector.broadcast %326 : vector<1x128xi1> to vector<40x128xi1>
    %328 = vector.broadcast %cst_154 : f32 to vector<40x128xf32>
    %329 = arith.select %327, %325, %328 : vector<40x128xi1>, vector<40x128xf32>
    %c15 = arith.constant 15 : index
    %c0_155 = arith.constant 0 : index
    %c0_156 = arith.constant 0 : index
    %330 = vector.load %arg2[%c15, %c0_155, %c0_156] : memref<16x120x40xf32, #tpu.memory_space<vmem>>, vector<1x120x40xf32>
    %331 = vector.shape_cast %330 : vector<1x120x40xf32> to vector<120x40xf32>
    %cst_157 = arith.constant dense<0.000000e+00> : vector<120x128xf32>
    %332 = tpu.matmul %331, %329, %cst_157 {dimension_numbers = #tpu.dot_dimension_numbers<[1], [0], [0], [1], [0, 0, 1, 1], [], []>} : vector<120x40xf32>, vector<40x128xf32>, vector<120x128xf32> -> vector<120x128xf32>
    %333 = vector.extract_strided_slice %332 {offsets = [0, 0], sizes = [40, 128], strides = [1, 1]} : vector<120x128xf32> to vector<40x128xf32>
    %334 = vector.extract_strided_slice %332 {offsets = [40, 0], sizes = [40, 128], strides = [1, 1]} : vector<120x128xf32> to vector<40x128xf32>
    %335 = vector.extract_strided_slice %332 {offsets = [80, 0], sizes = [40, 128], strides = [1, 1]} : vector<120x128xf32> to vector<40x128xf32>
    %c1_i32_158 = arith.constant 1 : i32
    %336 = tpu.dynamic_rotate %333 by %c1_i32_158 dim 1 : vector<40x128xf32>, i32 -> vector<40x128xf32>
    %337 = arith.addf %336, %334 : vector<40x128xf32>
    %c127_i32_159 = arith.constant 127 : i32
    %338 = tpu.dynamic_rotate %335 by %c127_i32_159 dim 1 : vector<40x128xf32>, i32 -> vector<40x128xf32>
    %339 = arith.addf %337, %338 : vector<40x128xf32>
    %c0_160 = arith.constant 0 : index
    %c0_161 = arith.constant 0 : index
    %340 = vector.load %arg5[%c0_160, %c0_161] : memref<128x128xf32, #tpu.memory_space<vmem>>, vector<128x128xf32>
    %cst_162 = arith.constant dense<0.000000e+00> : vector<40x128xf32>
    %341 = tpu.matmul %339, %340, %cst_162 {dimension_numbers = #tpu.dot_dimension_numbers<[1], [0], [0], [1], [0, 0, 1, 1], [], []>} : vector<40x128xf32>, vector<128x128xf32>, vector<40x128xf32> -> vector<40x128xf32>
    %c0_163 = arith.constant 0 : index
    %c15_164 = arith.constant 15 : index
    %342 = vector.load %arg3[%c0_163, %c15_164] : memref<40x16xf32, #tpu.memory_space<vmem>>, vector<40x1xf32>
    %343 = vector.broadcast %342 : vector<40x1xf32> to vector<40x128xf32>
    %344 = arith.addf %341, %343 : vector<40x128xf32>
    %c6_i32 = arith.constant 6 : i32
    %345 = vector.broadcast %c6_i32 : i32 to vector<1x128xi32>
    %346 = arith.cmpi slt, %1, %345 : vector<1x128xi32>
    %cst_165 = arith.constant 0.000000e+00 : f32
    %347 = vector.broadcast %cst_165 : f32 to vector<40x128xf32>
    %348 = arith.maximumf %344, %347 : vector<40x128xf32>
    %cst_166 = arith.constant 0.000000e+00 : f32
    %349 = vector.shape_cast %346 : vector<1x128xi1> to vector<1x128xi1>
    %350 = vector.broadcast %349 : vector<1x128xi1> to vector<40x128xi1>
    %351 = vector.broadcast %cst_166 : f32 to vector<40x128xf32>
    %352 = arith.select %350, %348, %351 : vector<40x128xi1>, vector<40x128xf32>
    %c0_167 = arith.constant 0 : index
    %c0_168 = arith.constant 0 : index
    %353 = vector.load %arg6[%c0_167, %c0_168] : memref<40x128xf32, #tpu.memory_space<vmem>>, vector<40x128xf32>
    %354 = arith.mulf %352, %353 : vector<40x128xf32>
    %cst_169 = arith.constant dense<0.000000e+00> : vector<40xf32>
    %355 = vector.multi_reduction <add>, %354, %cst_169 [1] : vector<40x128xf32> to vector<40xf32>
    %356 = vector.shape_cast %355 : vector<40xf32> to vector<40x1xf32>
    %cst_170 = arith.constant dense<0.000000e+00> : vector<1xf32>
    %357 = vector.multi_reduction <add>, %356, %cst_170 [0] : vector<40x1xf32> to vector<1xf32>
    %358 = vector.shape_cast %357 : vector<1xf32> to vector<1x1xf32>
    %c0_171 = arith.constant 0 : index
    %c0_172 = arith.constant 0 : index
    %359 = vector.load %arg7[%c0_171, %c0_172] : memref<1x1xf32, #tpu.memory_space<vmem>>, vector<1x1xf32>
    %360 = arith.addf %358, %359 : vector<1x1xf32>
    %cst_173 = arith.constant 0.000000e+00 : f32
    %361 = vector.broadcast %cst_173 : f32 to vector<1x1xf32>
    %362 = arith.subf %361, %360 : vector<1x1xf32>
    %363 = math.exp %362 : vector<1x1xf32>
    %cst_174 = arith.constant 1.000000e+00 : f32
    %364 = vector.broadcast %cst_174 : f32 to vector<1x1xf32>
    %365 = arith.addf %364, %363 : vector<1x1xf32>
    %cst_175 = arith.constant 1.000000e+00 : f32
    %366 = vector.broadcast %cst_175 : f32 to vector<1x1xf32>
    %367 = arith.divf %366, %365 : vector<1x1xf32>
    %c0_176 = arith.constant 0 : index
    %c0_177 = arith.constant 0 : index
    %c0_178 = arith.constant 0 : index
    %368 = vector.load %arg8[%c0_176, %c0_177, %c0_178] : memref<1x1x1xf32, #tpu.memory_space<vmem>>, vector<1x1x1xf32>
    %369 = vector.shape_cast %368 : vector<1x1x1xf32> to vector<1x1xf32>
    %370 = vector.shape_cast %367 : vector<1x1xf32> to vector<1x1x1xf32>
    tpu.vector_store %arg8[%c0_176, %c0_177, %c0_178], %370 {strides = array<i32>} : memref<1x1x1xf32, #tpu.memory_space<vmem>>, vector<1x1x1xf32>,
    return
  }
  func.func @transform_0(%arg0: i32) -> (i32, i32, i32) {
    %c0_i32 = arith.constant 0 : i32
    %c0_i32_0 = arith.constant 0 : i32
    %c0_i32_1 = arith.constant 0 : i32
    return %arg0, %c0_i32, %c0_i32_0 : i32, i32, i32
  }
  func.func @transform_1(%arg0: i32) -> (i32, i32, i32) {
    %c0_i32 = arith.constant 0 : i32
    %c0_i32_0 = arith.constant 0 : i32
    %c0_i32_1 = arith.constant 0 : i32
    %c0_i32_2 = arith.constant 0 : i32
    return %c0_i32, %c0_i32_0, %c0_i32_1 : i32, i32, i32
  }
  func.func @transform_2(%arg0: i32) -> (i32, i32) {
    %c0_i32 = arith.constant 0 : i32
    %c0_i32_0 = arith.constant 0 : i32
    %c0_i32_1 = arith.constant 0 : i32
    return %c0_i32, %c0_i32_0 : i32, i32
  }
  func.func @transform_3(%arg0: i32) -> (i32, i32) {
    %c0_i32 = arith.constant 0 : i32
    %c0_i32_0 = arith.constant 0 : i32
    %c0_i32_1 = arith.constant 0 : i32
    return %c0_i32, %c0_i32_0 : i32, i32
  }
  func.func @transform_4(%arg0: i32) -> (i32, i32) {
    %c0_i32 = arith.constant 0 : i32
    %c0_i32_0 = arith.constant 0 : i32
    %c0_i32_1 = arith.constant 0 : i32
    return %c0_i32, %c0_i32_0 : i32, i32
  }
  func.func @transform_5(%arg0: i32) -> (i32, i32) {
    %c0_i32 = arith.constant 0 : i32
    %c0_i32_0 = arith.constant 0 : i32
    %c0_i32_1 = arith.constant 0 : i32
    return %c0_i32, %c0_i32_0 : i32, i32
  }
  func.func @transform_6(%arg0: i32) -> (i32, i32) {
    %c0_i32 = arith.constant 0 : i32
    %c0_i32_0 = arith.constant 0 : i32
    %c0_i32_1 = arith.constant 0 : i32
    return %c0_i32, %c0_i32_0 : i32, i32
  }
  func.func @transform_7(%arg0: i32) -> (i32, i32, i32) {
    %c0_i32 = arith.constant 0 : i32
    %c0_i32_0 = arith.constant 0 : i32
    %c0_i32_1 = arith.constant 0 : i32
    return %arg0, %c0_i32, %c0_i32_0 : i32, i32, i32
  }
}

</mosaic_0001>

<llo_original>
// kernel: cnnd_forward.1
$region0: #{cnnd_forward.1}
  #allocation0 [shape = 'u32[]', space=smem, size = 0x4, offset = 0x4, fixed_abs, tag = 'smem constant byte address 0x4 - core index']
  #allocation1 [shape = 'u32[144,128]{1,0:T(1,128)}', space=vmem, size = 0x12000, scoped, tag = 'internal scratch']
  #allocation2 [shape = 'f32[1,1]{1,0:T(1,128)S(1)}', space=vmem, size = 0x200, scoped, tag = 'scoped memory for cnnd_forward.1']
  %s0 = inlined_call_operand.vmem [shape: f32[2,1,256], index: 0, kind: input, shape index: {}]
  %s1 = inlined_call_operand.vmem [shape: f32[16,120,40], index: 1, kind: input, shape index: {}]
  %s2 = inlined_call_operand.vmem [shape: f32[40,16], index: 2, kind: input, shape index: {}]
  %s3 = inlined_call_operand.vmem [shape: f32[256,128], index: 3, kind: input, shape index: {}]
  %s4 = inlined_call_operand.vmem [shape: f32[128,128], index: 4, kind: input, shape index: {}]
  %s5 = inlined_call_operand.vmem [shape: f32[40,128], index: 5, kind: input, shape index: {}]
  %s6 = inlined_call_operand.<no memory space> [shape: f32[1,1], index: 6, kind: input, shape index: {}]
  %s7 = inlined_call_operand.vmem [shape: f32[2,1,1], index: 7, kind: output, shape index: {}]
  %s8 = sld [smem:[#allocation0]]
  $region61: #{cnnd_forward.1} parent=0
    _
  %s10 = ssub.s32 1, %s8
  %s11 = scalar_select 0, %s10, %s8
  %v12 = vstv %s6
  %13 = vst [vmem:[#allocation2] sm:$0x1] %v12
  loop: start=0, step=1, limit=4
  $region2: #{cnnd_forward.1} parent=0 // loop_pre_header
    _
  $region3: #{cnnd_forward.1} parent=0 // loop_header
    %s15 = sphi 0, %s19
    %p16 = scmp.ge.s32.totalorder %s15, 4
    %s25 = sphi 0, %s27
    %s28 = sphi 0, %s25
    %s29 = sphi 0, %s28
    %s45 = sphi 0, %s29
    %s49 = sphi 0, %s49
    %s51 = sphi 0, %s49
    %s52 = sphi 0, %s51
    %s66 = sphi 0, %s52
    %s70 = sphi 0, %s70
    %s72 = sphi 0, %s70
    %s73 = sphi 0, %s72
    %s87 = sphi 0, %s73
    %s91 = sphi 0, %s91
    %s93 = sphi 0, %s91
    %s94 = sphi 0, %s93
    %s108 = sphi 0, %s94
    %s112 = sphi 0, %s112
    %s114 = sphi 0, %s112
    %s115 = sphi 0, %s114
    %s129 = sphi 0, %s115
    %s133 = sphi 0, %s133
    %s135 = sphi 0, %s133
    %s136 = sphi 0, %s135
    %s150 = sphi 0, %s136
    %s154 = sphi 0, %s154
    %s156 = sphi 0, %s154
    %s157 = sphi 0, %s156
    %s171 = sphi 0, %s157
    %s177 = sphi 0, %s179
    %s180 = sphi 0, %s177
    %s181 = sphi 0, %s180
    %s197 = sphi 0, %s181
  $region4: #{cnnd_forward.1} parent=0 // loop_header_branch
    %18 = sbr.rel (%p16) target = $region8
  $region5: #{cnnd_forward.1} parent=0 // loop_body
    %s20 = ssub.s32 %s15, 1
    %s21 = ssub.s32 %s15, 2
    %s22 = sadd.s32 %s15, 1
    %s23 = ssub.s32 %s15, %s22
    %p24 = scmp.eq.s32.totalorder %s23, 0
    %s26 = sadd.s32 %s25, 1
    %s27 = scalar_select %p24, %s25, %s26
    %p30 = pneg %p24
    %p31 = scmp.eq.s32.totalorder %s15, 1
    %p32 = por %p30, %p31
    %p33 = scmp.ne.s32.totalorder %s25, %s28
    %p34 = scmp.eq.s32.totalorder %s15, 0
    %p35 = por %p33, %p34
    %p36 = scmp.ne.s32.totalorder %s25, %s28
    %p37 = scmp.eq.s32.totalorder %s20, 1
    %p38 = por %p36, %p37
    %p39 = scmp.ne.s32.totalorder %s28, %s29
    %p40 = scmp.eq.s32.totalorder %s20, 0
    %p41 = por %p39, %p40
    %p42 = scmp.ne.s32.totalorder %s28, %s29
    %p43 = scmp.eq.s32.totalorder %s21, 1
    %p44 = por %p42, %p43
    %p46 = scmp.ne.s32.totalorder %s29, %s45
    %p47 = scmp.eq.s32.totalorder %s21, 0
    %p48 = por %p46, %p47
    %s50 = sadd.s32 %s49, 1
    %p53 = scmp.eq.s32.totalorder %s15, 1
    %p54 = scmp.ne.s32.totalorder %s49, %s51
    %p55 = scmp.eq.s32.totalorder %s15, 0
    %p56 = por %p54, %p55
    %p57 = scmp.ne.s32.totalorder %s49, %s51
    %p58 = scmp.eq.s32.totalorder %s20, 1
    %p59 = por %p57, %p58
    %p60 = scmp.ne.s32.totalorder %s51, %s52
    %p61 = scmp.eq.s32.totalorder %s20, 0
    %p62 = por %p60, %p61
    %p63 = scmp.ne.s32.totalorder %s51, %s52
    %p64 = scmp.eq.s32.totalorder %s21, 1
    %p65 = por %p63, %p64
    %p67 = scmp.ne.s32.totalorder %s52, %s66
    %p68 = scmp.eq.s32.totalorder %s21, 0
    %p69 = por %p67, %p68
    %s71 = sadd.s32 %s70, 1
    %p74 = scmp.eq.s32.totalorder %s15, 1
    %p75 = scmp.ne.s32.totalorder %s70, %s72
    %p76 = scmp.eq.s32.totalorder %s15, 0
    %p77 = por %p75, %p76
    %p78 = scmp.ne.s32.totalorder %s70, %s72
    %p79 = scmp.eq.s32.totalorder %s20, 1
    %p80 = por %p78, %p79
    %p81 = scmp.ne.s32.totalorder %s72, %s73
    %p82 = scmp.eq.s32.totalorder %s20, 0
    %p83 = por %p81, %p82
    %p84 = scmp.ne.s32.totalorder %s72, %s73
    %p85 = scmp.eq.s32.totalorder %s21, 1
    %p86 = por %p84, %p85
    %p88 = scmp.ne.s32.totalorder %s73, %s87
    %p89 = scmp.eq.s32.totalorder %s21, 0
    %p90 = por %p88, %p89
    %s92 = sadd.s32 %s91, 1
    %p95 = scmp.eq.s32.totalorder %s15, 1
    %p96 = scmp.ne.s32.totalorder %s91, %s93
    %p97 = scmp.eq.s32.totalorder %s15, 0
    %p98 = por %p96, %p97
    %p99 = scmp.ne.s32.totalorder %s91, %s93
    %p100 = scmp.eq.s32.totalorder %s20, 1
    %p101 = por %p99, %p100
    %p102 = scmp.ne.s32.totalorder %s93, %s94
    %p103 = scmp.eq.s32.totalorder %s20, 0
    %p104 = por %p102, %p103
    %p105 = scmp.ne.s32.totalorder %s93, %s94
    %p106 = scmp.eq.s32.totalorder %s21, 1
    %p107 = por %p105, %p106
    %p109 = scmp.ne.s32.totalorder %s94, %s108
    %p110 = scmp.eq.s32.totalorder %s21, 0
    %p111 = por %p109, %p110
    %s113 = sadd.s32 %s112, 1
    %p116 = scmp.eq.s32.totalorder %s15, 1
    %p117 = scmp.ne.s32.totalorder %s112, %s114
    %p118 = scmp.eq.s32.totalorder %s15, 0
    %p119 = por %p117, %p118
    %p120 = scmp.ne.s32.totalorder %s112, %s114
    %p121 = scmp.eq.s32.totalorder %s20, 1
    %p122 = por %p120, %p121
    %p123 = scmp.ne.s32.totalorder %s114, %s115
    %p124 = scmp.eq.s32.totalorder %s20, 0
    %p125 = por %p123, %p124
    %p126 = scmp.ne.s32.totalorder %s114, %s115
    %p127 = scmp.eq.s32.totalorder %s21, 1
    %p128 = por %p126, %p127
    %p130 = scmp.ne.s32.totalorder %s115, %s129
    %p131 = scmp.eq.s32.totalorder %s21, 0
    %p132 = por %p130, %p131
    %s134 = sadd.s32 %s133, 1
    %p137 = scmp.eq.s32.totalorder %s15, 1
    %p138 = scmp.ne.s32.totalorder %s133, %s135
    %p139 = scmp.eq.s32.totalorder %s15, 0
    %p140 = por %p138, %p139
    %p141 = scmp.ne.s32.totalorder %s133, %s135
    %p142 = scmp.eq.s32.totalorder %s20, 1
    %p143 = por %p141, %p142
    %p144 = scmp.ne.s32.totalorder %s135, %s136
    %p145 = scmp.eq.s32.totalorder %s20, 0
    %p146 = por %p144, %p145
    %p147 = scmp.ne.s32.totalorder %s135, %s136
    %p148 = scmp.eq.s32.totalorder %s21, 1
    %p149 = por %p147, %p148
    %p151 = scmp.ne.s32.totalorder %s136, %s150
    %p152 = scmp.eq.s32.totalorder %s21, 0
    %p153 = por %p151, %p152
    %s155 = sadd.s32 %s154, 1
    %p158 = scmp.eq.s32.totalorder %s15, 1
    %p159 = scmp.ne.s32.totalorder %s154, %s156
    %p160 = scmp.eq.s32.totalorder %s15, 0
    %p161 = por %p159, %p160
    %p162 = scmp.ne.s32.totalorder %s154, %s156
    %p163 = scmp.eq.s32.totalorder %s20, 1
    %p164 = por %p162, %p163
    %p165 = scmp.ne.s32.totalorder %s156, %s157
    %p166 = scmp.eq.s32.totalorder %s20, 0
    %p167 = por %p165, %p166
    %p168 = scmp.ne.s32.totalorder %s156, %s157
    %p169 = scmp.eq.s32.totalorder %s21, 1
    %p170 = por %p168, %p169
    %p172 = scmp.ne.s32.totalorder %s157, %s171
    %p173 = scmp.eq.s32.totalorder %s21, 0
    %p174 = por %p172, %p173
    %s175 = ssub.s32 %s15, %s22
    %p176 = scmp.eq.s32.totalorder %s175, 0
    %s178 = sadd.s32 %s177, 1
    %s179 = scalar_select %p176, %s177, %s178
    %p182 = pneg %p176
    %p183 = scmp.eq.s32.totalorder %s15, 1
    %p184 = por %p182, %p183
    %p185 = scmp.ne.s32.totalorder %s177, %s180
    %p186 = scmp.eq.s32.totalorder %s15, 0
    %p187 = por %p185, %p186
    %p188 = scmp.ne.s32.totalorder %s177, %s180
    %p189 = scmp.eq.s32.totalorder %s20, 1
    %p190 = por %p188, %p189
    %p191 = scmp.ne.s32.totalorder %s180, %s181
    %p192 = scmp.eq.s32.totalorder %s20, 0
    %p193 = por %p191, %p192
    %p194 = scmp.ne.s32.totalorder %s180, %s181
    %p195 = scmp.eq.s32.totalorder %s21, 1
    %p196 = por %p194, %p195
    %p198 = scmp.ne.s32.totalorder %s181, %s197
    %p199 = scmp.eq.s32.totalorder %s21, 0
    %p200 = por %p198, %p199
    %p201 = scmp.le.s32.totalorder 1, %s15
    %p202 = scmp.lt.s32.totalorder %s15, 3
    %p203 = pnand %p201, %p202
    %p204 = pneg %p203
    // Predicated region
    $region9: #{cnnd_forward.1} parent=5 // pred_check
      _
    $region10: #{cnnd_forward.1} parent=5 // pred_check_branch
      %206 = sbr.rel (%p203) target = $region12
    $region11: #{cnnd_forward.1} parent=5 // pred_region
      %s207 = ssub.s32 %s15, 1
      // Predicated region
      $region13: #{cnnd_forward.1} parent=11 // pred_check
        %p208 = pneg %p62
      $region14: #{cnnd_forward.1} parent=11 // pred_check_branch
        %210 = sbr.rel (%p208) target = $region16
      $region15: #{cnnd_forward.1} parent=11 // pred_region
        _
      $region16: #{cnnd_forward.1} parent=11 // pred_fallthru
        _
      // Predicated region
      $region17: #{cnnd_forward.1} parent=11 // pred_check
        %p211 = pneg %p83
      $region18: #{cnnd_forward.1} parent=11 // pred_check_branch
        %213 = sbr.rel (%p211) target = $region20
      $region19: #{cnnd_forward.1} parent=11 // pred_region
        _
      $region20: #{cnnd_forward.1} parent=11 // pred_fallthru
        _
      // Predicated region
      $region21: #{cnnd_forward.1} parent=11 // pred_check
        %p214 = pneg %p104
      $region22: #{cnnd_forward.1} parent=11 // pred_check_branch
        %216 = sbr.rel (%p214) target = $region24
      $region23: #{cnnd_forward.1} parent=11 // pred_region
        _
      $region24: #{cnnd_forward.1} parent=11 // pred_fallthru
        _
      // Predicated region
      $region25: #{cnnd_forward.1} parent=11 // pred_check
        %p217 = pneg %p125
      $region26: #{cnnd_forward.1} parent=11 // pred_check_branch
        %219 = sbr.rel (%p217) target = $region28
      $region27: #{cnnd_forward.1} parent=11 // pred_region
        _
      $region28: #{cnnd_forward.1} parent=11 // pred_fallthru
        _
      // Predicated region
      $region29: #{cnnd_forward.1} parent=11 // pred_check
        %p220 = pneg %p146
      $region30: #{cnnd_forward.1} parent=11 // pred_check_branch
        %222 = sbr.rel (%p220) target = $region32
      $region31: #{cnnd_forward.1} parent=11 // pred_region
        _
      $region32: #{cnnd_forward.1} parent=11 // pred_fallthru
        _
      // Predicated region
      $region33: #{cnnd_forward.1} parent=11 // pred_check
        %p223 = pneg %p167
      $region34: #{cnnd_forward.1} parent=11 // pred_check_branch
        %225 = sbr.rel (%p223) target = $region36
      $region35: #{cnnd_forward.1} parent=11 // pred_region
        _
      $region36: #{cnnd_forward.1} parent=11 // pred_fallthru
        _
    $region12: #{cnnd_forward.1} parent=5 // pred_fallthru
      _
    %p226 = scmp.lt.s32.totalorder %s15, 2
    // Predicated region
    $region37: #{cnnd_forward.1} parent=5 // pred_check
      %p227 = pneg %p226
    $region38: #{cnnd_forward.1} parent=5 // pred_check_branch
      %229 = sbr.rel (%p227) target = $region40
    $region39: #{cnnd_forward.1} parent=5 // pred_region
      // Predicated region
      $region41: #{cnnd_forward.1} parent=39 // pred_check
        %p230 = pneg %p35
      $region42: #{cnnd_forward.1} parent=39 // pred_check_branch
        %232 = sbr.rel (%p230) target = $region44
      $region43: #{cnnd_forward.1} parent=39 // pred_region
        %p233 = scmp.lt.s32.totalorder %s15, 1
        %s234 = scalar_select %p233, %s15, 1
        %s235 = smul.addr %s234, 2
        %s236 = scalar_lea.vmem %s0, %s235
      $region44: #{cnnd_forward.1} parent=39 // pred_fallthru
        _
    $region40: #{cnnd_forward.1} parent=5 // pred_fallthru
      _
    %p237 = scmp.le.s32.totalorder 1, %s15
    %p238 = scmp.lt.s32.totalorder %s15, 3
    %p239 = pnand %p237, %p238
    %p240 = pneg %p239
    // Predicated region
    $region45: #{cnnd_forward.1} parent=5 // pred_check
      _
    $region46: #{cnnd_forward.1} parent=5 // pred_check_branch
      %242 = sbr.rel (%p239) target = $region48
    $region47: #{cnnd_forward.1} parent=5 // pred_region
      %s243 = ssub.s32 %s15, 1
      %p244 = scmp.lt.s32.totalorder %s20, 1
      %s245 = scalar_select %p244, %s20, 1
      %s246 = smul.addr %s245, 2
      %s247 = scalar_lea.vmem %s0, %s246
      %p248 = pneg %p41
      %p249 = pneg %p38
      %p250 = pneg %p62
      %p251 = pneg %p59
      %p252 = pneg %p83
      %p253 = pneg %p80
      %p254 = pneg %p104
      %p255 = pneg %p101
      %p256 = pneg %p125
      %p257 = pneg %p122
      %p258 = pneg %p146
      %p259 = pneg %p143
      %p260 = pneg %p167
      %p261 = pneg %p164
      %p262 = pneg %p193
      %p263 = pneg %p190
      %p264 = scmp.lt.s32.totalorder %s20, 1
      %s265 = scalar_select %p264, %s20, 1
      %s266 = scalar_lea.vmem %s7, %s265
      %p267 = scmp.lt.s32.totalorder %s20, 1
      %s268 = scalar_select %p267, %s20, 1
      %s269 = smul.addr %s268, 2
      %s270 = scalar_lea.vmem %s0, %s269
      %p271 = scmp.lt.s32.totalorder %s20, 1
      %s272 = scalar_select %p271, %s20, 1
      %s273 = scalar_lea.vmem %s7, %s272
      %v274 = vlaneseq
      %v275 = vand.u32 %v274, 127
      %v276 = vadd.s32 %v275, 128
      %v277 = vld [vmem:[%s270] sm:$0x3]
      %v278 = vld [vmem:[%s1] sm:$0xff]
      %v279 = vld [vmem:[%s1 + $0x8] sm:$0xff]
      %v280 = vld [vmem:[%s1 + $0x10] sm:$0xff]
      %v281 = vld [vmem:[%s1 + $0x18] sm:$0xff]
      %v282 = vld [vmem:[%s1 + $0x20] sm:$0xff]
      %v283 = vld [vmem:[%s1 + $0x28] sm:$0xff]
      %v284 = vld [vmem:[%s1 + $0x30] sm:$0xff]
      %v285 = vld [vmem:[%s1 + $0x38] sm:$0xff]
      %v286 = vld [vmem:[%s1 + $0x40] sm:$0xff]
      %v287 = vld [vmem:[%s1 + $0x48] sm:$0xff]
      %v288 = vld [vmem:[%s1 + $0x50] sm:$0xff]
      %v289 = vld [vmem:[%s1 + $0x58] sm:$0xff]
      %v290 = vld [vmem:[%s1 + $0x60] sm:$0xff]
      %v291 = vld [vmem:[%s1 + $0x68] sm:$0xff]
      %v292 = vld [vmem:[%s1 + $0x70] sm:$0xff]
      %294 = vset.pattern.permute.xlu0 0
      %295 = vperm.xlu0 %294, %v278
      %v296 = vpop.permute.xlu0 %295
      %299 = vset.pattern.permute.xlu0 0
      %300 = vperm.xlu0 %299, %v279
      %v301 = vpop.permute.xlu0 %300
      %304 = vset.pattern.permute.xlu0 0
      %305 = vperm.xlu0 %304, %v280
      %v306 = vpop.permute.xlu0 %305
      %309 = vset.pattern.permute.xlu0 0
      %310 = vperm.xlu0 %309, %v281
      %v311 = vpop.permute.xlu0 %310
      %314 = vset.pattern.permute.xlu0 0
      %315 = vperm.xlu0 %314, %v282
      %v316 = vpop.permute.xlu0 %315
      %319 = vset.pattern.permute.xlu0 0
      %320 = vperm.xlu0 %319, %v283
      %v321 = vpop.permute.xlu0 %320
      %324 = vset.pattern.permute.xlu0 0
      %325 = vperm.xlu0 %324, %v284
      %v326 = vpop.permute.xlu0 %325
      %329 = vset.pattern.permute.xlu0 0
      %330 = vperm.xlu0 %329, %v285
      %v331 = vpop.permute.xlu0 %330
      %334 = vset.pattern.permute.xlu0 0
      %335 = vperm.xlu0 %334, %v286
      %v336 = vpop.permute.xlu0 %335
      %339 = vset.pattern.permute.xlu0 0
      %340 = vperm.xlu0 %339, %v287
      %v341 = vpop.permute.xlu0 %340
      %344 = vset.pattern.permute.xlu0 0
      %345 = vperm.xlu0 %344, %v288
      %v346 = vpop.permute.xlu0 %345
      %349 = vset.pattern.permute.xlu0 0
      %350 = vperm.xlu0 %349, %v289
      %v351 = vpop.permute.xlu0 %350
      %354 = vset.pattern.permute.xlu0 0
      %355 = vperm.xlu0 %354, %v290
      %v356 = vpop.permute.xlu0 %355
      %359 = vset.pattern.permute.xlu0 0
      %360 = vperm.xlu0 %359, %v291
      %v361 = vpop.permute.xlu0 %360
      %364 = vset.pattern.permute.xlu0 0
      %365 = vperm.xlu0 %364, %v292
      %v366 = vpop.permute.xlu0 %365
      %v369 = vlaneseq
      %v370 = vshrl.u32 %v369, 7
      %v371 = vsub.s32 0, %v370
      %v372 = vrot.slane %v277, %v371
      %v373 = vlaneseq
      %v374 = vshrl.u32 %v373, 7
      %v375 = vsub.s32 1, %v374
      %v376 = vrot.slane %v277, %v375
      %v379 = vmul.f32 %v296, %v372
      %v380 = vmul.f32 %v296, %v376
      %v381 = vmul.f32 %v301, %v372
      %v382 = vmul.f32 %v301, %v376
      %v383 = vmul.f32 %v306, %v372
      %v384 = vmul.f32 %v306, %v376
      %v385 = vmul.f32 %v311, %v372
      %v386 = vmul.f32 %v311, %v376
      %v387 = vmul.f32 %v316, %v372
      %v388 = vmul.f32 %v316, %v376
      %v389 = vmul.f32 %v321, %v372
      %v390 = vmul.f32 %v321, %v376
      %v391 = vmul.f32 %v326, %v372
      %v392 = vmul.f32 %v326, %v376
      %v393 = vmul.f32 %v331, %v372
      %v394 = vmul.f32 %v331, %v376
      %v395 = vmul.f32 %v336, %v372
      %v396 = vmul.f32 %v336, %v376
      %v397 = vmul.f32 %v341, %v372
      %v398 = vmul.f32 %v341, %v376
      %v399 = vmul.f32 %v346, %v372
      %v400 = vmul.f32 %v346, %v376
      %v401 = vmul.f32 %v351, %v372
      %v402 = vmul.f32 %v351, %v376
      %v403 = vmul.f32 %v356, %v372
      %v404 = vmul.f32 %v356, %v376
      %v405 = vmul.f32 %v361, %v372
      %v406 = vmul.f32 %v361, %v376
      %v407 = vmul.f32 %v366, %v372
      %v408 = vmul.f32 %v366, %v376
      %409 = vrot.lane.b32.xlu0 %v379, 1
      %v410 = vpop.permute.xlu0 %409
      %411 = vrot.lane.b32.xlu0 %v381, 1
      %v412 = vpop.permute.xlu0 %411
      %413 = vrot.lane.b32.xlu0 %v383, 1
      %v414 = vpop.permute.xlu0 %413
      %415 = vrot.lane.b32.xlu0 %v385, 1
      %v416 = vpop.permute.xlu0 %415
      %417 = vrot.lane.b32.xlu0 %v387, 1
      %v418 = vpop.permute.xlu0 %417
      %419 = vrot.lane.b32.xlu0 %v380, 1
      %v420 = vpop.permute.xlu0 %419
      %421 = vrot.lane.b32.xlu0 %v382, 1
      %v422 = vpop.permute.xlu0 %421
      %423 = vrot.lane.b32.xlu0 %v384, 1
      %v424 = vpop.permute.xlu0 %423
      %425 = vrot.lane.b32.xlu0 %v386, 1
      %v426 = vpop.permute.xlu0 %425
      %427 = vrot.lane.b32.xlu0 %v388, 1
      %v428 = vpop.permute.xlu0 %427
      %vm429 = vcmp.lt.s32.totalorder %v275, 1
      %v430 = vsel %vm429, %v410, %v420
      %v431 = vsel %vm429, %v412, %v422
      %v432 = vsel %vm429, %v414, %v424
      %v433 = vsel %vm429, %v416, %v426
      %v434 = vsel %vm429, %v418, %v428
      %v435 = vsel %vm429, %v420, %v410
      %v436 = vsel %vm429, %v422, %v412
      %v437 = vsel %vm429, %v424, %v414
      %v438 = vsel %vm429, %v426, %v416
      %v439 = vsel %vm429, %v428, %v418
      %v440 = vadd.f32 %v435, %v389
      %v441 = vadd.f32 %v430, %v390
      %v442 = vadd.f32 %v436, %v391
      %v443 = vadd.f32 %v431, %v392
      %v444 = vadd.f32 %v437, %v393
      %v445 = vadd.f32 %v432, %v394
      %v446 = vadd.f32 %v438, %v395
      %v447 = vadd.f32 %v433, %v396
      %v448 = vadd.f32 %v439, %v397
      %v449 = vadd.f32 %v434, %v398
      %450 = vrot.lane.b32.xlu0 %v399, 127
      %v451 = vpop.permute.xlu0 %450
      %452 = vrot.lane.b32.xlu0 %v401, 127
      %v453 = vpop.permute.xlu0 %452
      %454 = vrot.lane.b32.xlu0 %v403, 127
      %v455 = vpop.permute.xlu0 %454
      %456 = vrot.lane.b32.xlu0 %v405, 127
      %v457 = vpop.permute.xlu0 %456
      %458 = vrot.lane.b32.xlu0 %v407, 127
      %v459 = vpop.permute.xlu0 %458
      %460 = vrot.lane.b32.xlu0 %v400, 127
      %v461 = vpop.permute.xlu0 %460
      %462 = vrot.lane.b32.xlu0 %v402, 127
      %v463 = vpop.permute.xlu0 %462
      %464 = vrot.lane.b32.xlu0 %v404, 127
      %v465 = vpop.permute.xlu0 %464
      %466 = vrot.lane.b32.xlu0 %v406, 127
      %v467 = vpop.permute.xlu0 %466
      %468 = vrot.lane.b32.xlu0 %v408, 127
      %v469 = vpop.permute.xlu0 %468
      %vm470 = vcmp.lt.s32.totalorder %v275, 127
      %v471 = vsel %vm470, %v451, %v461
      %v472 = vsel %vm470, %v453, %v463
      %v473 = vsel %vm470, %v455, %v465
      %v474 = vsel %vm470, %v457, %v467
      %v475 = vsel %vm470, %v459, %v469
      %v476 = vsel %vm470, %v461, %v451
      %v477 = vsel %vm470, %v463, %v453
      %v478 = vsel %vm470, %v465, %v455
      %v479 = vsel %vm470, %v467, %v457
      %v480 = vsel %vm470, %v469, %v459
      %v481 = vadd.f32 %v440, %v471
      %v482 = vadd.f32 %v441, %v476
      %v483 = vadd.f32 %v442, %v472
      %v484 = vadd.f32 %v443, %v477
      %v485 = vadd.f32 %v444, %v473
      %v486 = vadd.f32 %v445, %v478
      %v487 = vadd.f32 %v446, %v474
      %v488 = vadd.f32 %v447, %v479
      %v489 = vadd.f32 %v448, %v475
      %v490 = vadd.f32 %v449, %v480
      %v491 = vld [vmem:[%s2] sm:$0xff]
      %v492 = vld [vmem:[%s2 + $0x8] sm:$0xff]
      %v493 = vld [vmem:[%s2 + $0x10] sm:$0xff]
      %v494 = vld [vmem:[%s2 + $0x18] sm:$0xff]
      %v495 = vld [vmem:[%s2 + $0x20] sm:$0xff]
      %497 = vset.pattern.permute.xlu0 0
      %498 = vperm.xlu0 %497, %v491
      %v499 = vpop.permute.xlu0 %498
      %502 = vset.pattern.permute.xlu0 0
      %503 = vperm.xlu0 %502, %v492
      %v504 = vpop.permute.xlu0 %503
      %507 = vset.pattern.permute.xlu0 0
      %508 = vperm.xlu0 %507, %v493
      %v509 = vpop.permute.xlu0 %508
      %512 = vset.pattern.permute.xlu0 0
      %513 = vperm.xlu0 %512, %v494
      %v514 = vpop.permute.xlu0 %513
      %517 = vset.pattern.permute.xlu0 0
      %518 = vperm.xlu0 %517, %v495
      %v519 = vpop.permute.xlu0 %518
      %v521 = vadd.f32 %v481, %v499
      %v522 = vadd.f32 %v482, %v499
      %v523 = vadd.f32 %v483, %v504
      %v524 = vadd.f32 %v484, %v504
      %v525 = vadd.f32 %v485, %v509
      %v526 = vadd.f32 %v486, %v509
      %v527 = vadd.f32 %v487, %v514
      %v528 = vadd.f32 %v488, %v514
      %v529 = vadd.f32 %v489, %v519
      %v530 = vadd.f32 %v490, %v519
      %vm531 = vcmp.lt.s32.totalorder %v275, 192
      %vm532 = vcmp.lt.s32.totalorder %v276, 192
      %v533 = vmax.f32 %v521, 0.0
      %v534 = vmax.f32 %v522, 0.0
      %v535 = vmax.f32 %v523, 0.0
      %v536 = vmax.f32 %v524, 0.0
      %v537 = vmax.f32 %v525, 0.0
      %v538 = vmax.f32 %v526, 0.0
      %v539 = vmax.f32 %v527, 0.0
      %v540 = vmax.f32 %v528, 0.0
      %v541 = vmax.f32 %v529, 0.0
      %v542 = vmax.f32 %v530, 0.0
      %v543 = vsel %vm531, 1, 0
      %v544 = vsel %vm532, 1, 0
      %vm545 = vcmp.eq.s32.totalorder %v543, 1
      %vm546 = vcmp.eq.s32.totalorder %v544, 1
      %v547 = vsel %vm545, %v533, 0.0
      %v548 = vsel %vm546, %v534, 0.0
      %v549 = vsel %vm545, %v535, 0.0
      %v550 = vsel %vm546, %v536, 0.0
      %v551 = vsel %vm545, %v537, 0.0
      %v552 = vsel %vm546, %v538, 0.0
      %v553 = vsel %vm545, %v539, 0.0
      %v554 = vsel %vm546, %v540, 0.0
      %v555 = vsel %vm545, %v541, 0.0
      %v556 = vsel %vm546, %v542, 0.0
      %s557 = scalar_lea.vmem %s1, 120
      %v558 = vld [vmem:[%s557] sm:$0xff]
      %v559 = vld [vmem:[%s557 + $0x8] sm:$0xff]
      %v560 = vld [vmem:[%s557 + $0x10] sm:$0xff]
      %v561 = vld [vmem:[%s557 + $0x18] sm:$0xff]
      %v562 = vld [vmem:[%s557 + $0x20] sm:$0xff]
      %v563 = vld [vmem:[%s557 + $0x28] sm:$0xff]
      %v564 = vld [vmem:[%s557 + $0x30] sm:$0xff]
      %v565 = vld [vmem:[%s557 + $0x38] sm:$0xff]
      %v566 = vld [vmem:[%s557 + $0x40] sm:$0xff]
      %v567 = vld [vmem:[%s557 + $0x48] sm:$0xff]
      %v568 = vld [vmem:[%s557 + $0x50] sm:$0xff]
      %v569 = vld [vmem:[%s557 + $0x58] sm:$0xff]
      %v570 = vld [vmem:[%s557 + $0x60] sm:$0xff]
      %v571 = vld [vmem:[%s557 + $0x68] sm:$0xff]
      %v572 = vld [vmem:[%s557 + $0x70] sm:$0xff]
      %vm573 = vcmask 326656
      %v575 = vsel %vm573, %v558, 0
      %v578 = vsel %vm573, %v559, 0
      %v581 = vsel %vm573, %v560, 0
      %v584 = vsel %vm573, %v561, 0
      %v587 = vsel %vm573, %v562, 0
      %v590 = vsel %vm573, %v563, 0
      %v593 = vsel %vm573, %v564, 0
      %v596 = vsel %vm573, %v565, 0
      %v599 = vsel %vm573, %v566, 0
      %v602 = vsel %vm573, %v567, 0
      %v605 = vsel %vm573, %v568, 0
      %v608 = vsel %vm573, %v569, 0
      %v611 = vsel %vm573, %v570, 0
      %v614 = vsel %vm573, %v571, 0
      %v617 = vsel %vm573, %v572, 0
      %619 = vmatprep.subr.mxu0 %v548
      %620 = vmatpush1.msra.mxu0 %v547
      %621 = vmatprep.subr.mxu0 %v550
      %622 = vmatpush1.msra.mxu0 %v549
      %623 = vmatprep.subr.mxu0 %v552
      %624 = vmatpush1.msra.mxu0 %v551
      %625 = vmatprep.subr.mxu0 %v554
      %626 = vmatpush1.msra.mxu0 %v553
      %627 = vmatprep.subr.mxu0 %v556
      %628 = vmatpush1.msra.mxu0 %v555
      %629 = vmatprep.subr.mxu0 0.0
      %630 = vmatpush1.msra.mxu0 0.0
      %631 = vmatprep.subr.mxu0 0.0
      %632 = vmatpush1.msra.mxu0 0.0
      %633 = vmatprep.subr.mxu0 0.0
      %634 = vmatpush1.msra.mxu0 0.0
      %635 = vmatprep.subr.mxu0 0.0
      %636 = vmatpush1.msra.mxu0 0.0
      %637 = vmatprep.subr.mxu0 0.0
      %638 = vmatpush1.msra.mxu0 0.0
      %639 = vmatprep.subr.mxu0 0.0
      %640 = vmatpush1.msra.mxu0 0.0
      %641 = vmatprep.subr.mxu0 0.0
      %642 = vmatpush1.msra.mxu0 0.0
      %643 = vmatprep.subr.mxu0 0.0
      %644 = vmatpush1.msra.mxu0 0.0
      %645 = vmatprep.subr.mxu0 0.0
      %646 = vmatpush1.msra.mxu0 0.0
      %647 = vmatprep.subr.mxu0 0.0
      %648 = vmatpush1.msra.mxu0 0.0
      %649 = vmatprep.subr.mxu0 0.0
      %650 = vmatpush1.msra.mxu0 0.0
      %651 = vmatprep.subr.mxu0 0.0
      %652 = vmatpush1.msra.mxu0 0.0
      %653 = vmatprep.subr.mxu0 0.0
      %654 = vmatpush1.msra.mxu0 0.0
      %655 = vmatprep.subr.mxu0 0.0
      %656 = vmatpush1.msra.mxu0 0.0
      %657 = vmatprep.subr.mxu0 0.0
      %658 = vmatpush1.msra.mxu0 0.0
      %659 = vmatprep.subr.mxu0 0.0
      %660 = vmatpush1.msra.mxu0 0.0
      %661 = vmatprep.subr.mxu0 0.0
      %662 = vmatpush1.msra.mxu0 0.0
      %663 = vmatprep.subr.mxu0 0.0
      %664 = vmatpush1.msra.mxu0 0.0
      %665 = vmatprep.subr.mxu0 0.0
      %666 = vmatpush1.msra.mxu0 0.0
      %667 = vmatprep.subr.mxu0 0.0
      %668 = vmatpush1.msra.mxu0 0.0
      %669 = vmatprep.subr.mxu0 0.0
      %670 = vmatpush1.msra.mxu0 0.0
      %671 = vmatprep.subr.mxu0 0.0
      %672 = vmatpush1.msra.mxu0 0.0
      %673 = vmatprep.subr.mxu0 0.0
      %674 = vmatpush1.msra.mxu0 0.0
      %675 = vmatprep.subr.mxu0 0.0
      %676 = vmatpush1.msra.mxu0 0.0
      %677 = vmatprep.subr.mxu0 0.0
      %678 = vmatpush1.msra.mxu0 0.0
      %679 = vmatprep.subr.mxu0 0.0
      %680 = vmatpush1.msra.mxu0 0.0
      %681 = vmatprep.subr.mxu0 0.0
      %682 = vmatpush1.msra.mxu0 0.0
      %683 = vmatprep.mubr.f32.mxu0 0.0
      %684 = vmatmul.mubr.f32.gmra.mrb[0].mxu0 %v575
      %v685 = vpop.f32.mrb[0].mxu0
      %v686 = vadd.f32 0.0, %v685
      %v687 = vpop.f32.mrb[0].mxu0
      %v688 = vadd.f32 0.0, %v687
      %689 = vmatprep.mubr.f32.mxu0 0.0
      %690 = vmatmul.mubr.f32.gmra.mrb[0].mxu0 %v578
      %v691 = vpop.f32.mrb[0].mxu0
      %v692 = vadd.f32 0.0, %v691
      %v693 = vpop.f32.mrb[0].mxu0
      %v694 = vadd.f32 0.0, %v693
      %695 = vmatprep.mubr.f32.mxu0 0.0
      %696 = vmatmul.mubr.f32.gmra.mrb[0].mxu0 %v581
      %v697 = vpop.f32.mrb[0].mxu0
      %v698 = vadd.f32 0.0, %v697
      %v699 = vpop.f32.mrb[0].mxu0
      %v700 = vadd.f32 0.0, %v699
      %701 = vmatprep.mubr.f32.mxu0 0.0
      %702 = vmatmul.mubr.f32.gmra.mrb[0].mxu0 %v584
      %v703 = vpop.f32.mrb[0].mxu0
      %v704 = vadd.f32 0.0, %v703
      %v705 = vpop.f32.mrb[0].mxu0
      %v706 = vadd.f32 0.0, %v705
      %707 = vmatprep.mubr.f32.mxu0 0.0
      %708 = vmatmul.mubr.f32.gmra.mrb[0].mxu0 %v587
      %v709 = vpop.f32.mrb[0].mxu0
      %v710 = vadd.f32 0.0, %v709
      %v711 = vpop.f32.mrb[0].mxu0
      %v712 = vadd.f32 0.0, %v711
      %713 = vmatprep.mubr.f32.mxu0 0.0
      %714 = vmatmul.mubr.f32.gmra.mrb[0].mxu0 %v590
      %v715 = vpop.f32.mrb[0].mxu0
      %v716 = vadd.f32 0.0, %v715
      %v717 = vpop.f32.mrb[0].mxu0
      %v718 = vadd.f32 0.0, %v717
      %719 = vmatprep.mubr.f32.mxu0 0.0
      %720 = vmatmul.mubr.f32.gmra.mrb[0].mxu0 %v593
      %v721 = vpop.f32.mrb[0].mxu0
      %v722 = vadd.f32 0.0, %v721
      %v723 = vpop.f32.mrb[0].mxu0
      %v724 = vadd.f32 0.0, %v723
      %725 = vmatprep.mubr.f32.mxu0 0.0
      %726 = vmatmul.mubr.f32.gmra.mrb[0].mxu0 %v596
      %v727 = vpop.f32.mrb[0].mxu0
      %v728 = vadd.f32 0.0, %v727
      %v729 = vpop.f32.mrb[0].mxu0
      %v730 = vadd.f32 0.0, %v729
      %731 = vmatprep.mubr.f32.mxu0 0.0
      %732 = vmatmul.mubr.f32.gmra.mrb[0].mxu0 %v599
      %v733 = vpop.f32.mrb[0].mxu0
      %v734 = vadd.f32 0.0, %v733
      %v735 = vpop.f32.mrb[0].mxu0
      %v736 = vadd.f32 0.0, %v735
      %737 = vmatprep.mubr.f32.mxu0 0.0
      %738 = vmatmul.mubr.f32.gmra.mrb[0].mxu0 %v602
      %v739 = vpop.f32.mrb[0].mxu0
      %v740 = vadd.f32 0.0, %v739
      %v741 = vpop.f32.mrb[0].mxu0
      %v742 = vadd.f32 0.0, %v741
      %743 = vmatprep.mubr.f32.mxu0 0.0
      %744 = vmatmul.mubr.f32.gmra.mrb[0].mxu0 %v605
      %v745 = vpop.f32.mrb[0].mxu0
      %v746 = vadd.f32 0.0, %v745
      %v747 = vpop.f32.mrb[0].mxu0
      %v748 = vadd.f32 0.0, %v747
      %749 = vmatprep.mubr.f32.mxu0 0.0
      %750 = vmatmul.mubr.f32.gmra.mrb[0].mxu0 %v608
      %v751 = vpop.f32.mrb[0].mxu0
      %v752 = vadd.f32 0.0, %v751
      %v753 = vpop.f32.mrb[0].mxu0
      %v754 = vadd.f32 0.0, %v753
      %755 = vmatprep.mubr.f32.mxu0 0.0
      %756 = vmatmul.mubr.f32.gmra.mrb[0].mxu0 %v611
      %v757 = vpop.f32.mrb[0].mxu0
      %v758 = vadd.f32 0.0, %v757
      %v759 = vpop.f32.mrb[0].mxu0
      %v760 = vadd.f32 0.0, %v759
      %761 = vmatprep.mubr.f32.mxu0 0.0
      %762 = vmatmul.mubr.f32.gmra.mrb[0].mxu0 %v614
      %v763 = vpop.f32.mrb[0].mxu0
      %v764 = vadd.f32 0.0, %v763
      %v765 = vpop.f32.mrb[0].mxu0
      %v766 = vadd.f32 0.0, %v765
      %767 = vmatprep.mubr.f32.mxu0 0.0
      %768 = vmatmul.mubr.f32.gmra.mrb[0].mxu0 %v617
      %v769 = vpop.f32.mrb[0].mxu0
      %v770 = vadd.f32 0.0, %v769
      %v771 = vpop.f32.mrb[0].mxu0
      %v772 = vadd.f32 0.0, %v771
      %773 = vdwg.mxu0
      %774 = vrot.lane.b32.xlu0 %v686, 1
      %v775 = vpop.permute.xlu0 %774
      %776 = vrot.lane.b32.xlu0 %v692, 1
      %v777 = vpop.permute.xlu0 %776
      %778 = vrot.lane.b32.xlu0 %v698, 1
      %v779 = vpop.permute.xlu0 %778
      %780 = vrot.lane.b32.xlu0 %v704, 1
      %v781 = vpop.permute.xlu0 %780
      %782 = vrot.lane.b32.xlu0 %v710, 1
      %v783 = vpop.permute.xlu0 %782
      %784 = vrot.lane.b32.xlu0 %v688, 1
      %v785 = vpop.permute.xlu0 %784
      %786 = vrot.lane.b32.xlu0 %v694, 1
      %v787 = vpop.permute.xlu0 %786
      %788 = vrot.lane.b32.xlu0 %v700, 1
      %v789 = vpop.permute.xlu0 %788
      %790 = vrot.lane.b32.xlu0 %v706, 1
      %v791 = vpop.permute.xlu0 %790
      %792 = vrot.lane.b32.xlu0 %v712, 1
      %v793 = vpop.permute.xlu0 %792
      %v794 = vsel %vm429, %v775, %v785
      %v795 = vsel %vm429, %v777, %v787
      %v796 = vsel %vm429, %v779, %v789
      %v797 = vsel %vm429, %v781, %v791
      %v798 = vsel %vm429, %v783, %v793
      %v799 = vsel %vm429, %v785, %v775
      %v800 = vsel %vm429, %v787, %v777
      %v801 = vsel %vm429, %v789, %v779
      %v802 = vsel %vm429, %v791, %v781
      %v803 = vsel %vm429, %v793, %v783
      %v804 = vadd.f32 %v799, %v716
      %v805 = vadd.f32 %v794, %v718
      %v806 = vadd.f32 %v800, %v722
      %v807 = vadd.f32 %v795, %v724
      %v808 = vadd.f32 %v801, %v728
      %v809 = vadd.f32 %v796, %v730
      %v810 = vadd.f32 %v802, %v734
      %v811 = vadd.f32 %v797, %v736
      %v812 = vadd.f32 %v803, %v740
      %v813 = vadd.f32 %v798, %v742
      %814 = vrot.lane.b32.xlu0 %v746, 127
      %v815 = vpop.permute.xlu0 %814
      %816 = vrot.lane.b32.xlu0 %v752, 127
      %v817 = vpop.permute.xlu0 %816
      %818 = vrot.lane.b32.xlu0 %v758, 127
      %v819 = vpop.permute.xlu0 %818
      %820 = vrot.lane.b32.xlu0 %v764, 127
      %v821 = vpop.permute.xlu0 %820
      %822 = vrot.lane.b32.xlu0 %v770, 127
      %v823 = vpop.permute.xlu0 %822
      %824 = vrot.lane.b32.xlu0 %v748, 127
      %v825 = vpop.permute.xlu0 %824
      %826 = vrot.lane.b32.xlu0 %v754, 127
      %v827 = vpop.permute.xlu0 %826
      %828 = vrot.lane.b32.xlu0 %v760, 127
      %v829 = vpop.permute.xlu0 %828
      %830 = vrot.lane.b32.xlu0 %v766, 127
      %v831 = vpop.permute.xlu0 %830
      %832 = vrot.lane.b32.xlu0 %v772, 127
      %v833 = vpop.permute.xlu0 %832
      %v834 = vsel %vm470, %v815, %v825
      %v835 = vsel %vm470, %v817, %v827
      %v836 = vsel %vm470, %v819, %v829
      %v837 = vsel %vm470, %v821, %v831
      %v838 = vsel %vm470, %v823, %v833
      %v839 = vsel %vm470, %v825, %v815
      %v840 = vsel %vm470, %v827, %v817
      %v841 = vsel %vm470, %v829, %v819
      %v842 = vsel %vm470, %v831, %v821
      %v843 = vsel %vm470, %v833, %v823
      %v844 = vadd.f32 %v804, %v834
      %v845 = vadd.f32 %v805, %v839
      %v846 = vadd.f32 %v806, %v835
      %v847 = vadd.f32 %v807, %v840
      %v848 = vadd.f32 %v808, %v836
      %v849 = vadd.f32 %v809, %v841
      %v850 = vadd.f32 %v810, %v837
      %v851 = vadd.f32 %v811, %v842
      %v852 = vadd.f32 %v812, %v838
      %v853 = vadd.f32 %v813, %v843
      %854 = vset.pattern.permute.xlu0 1
      %855 = vperm.xlu0 %854, %v491
      %v856 = vpop.permute.xlu0 %855
      %858 = vset.pattern.permute.xlu0 1
      %859 = vperm.xlu0 %858, %v492
      %v860 = vpop.permute.xlu0 %859
      %862 = vset.pattern.permute.xlu0 1
      %863 = vperm.xlu0 %862, %v493
      %v864 = vpop.permute.xlu0 %863
      %866 = vset.pattern.permute.xlu0 1
      %867 = vperm.xlu0 %866, %v494
      %v868 = vpop.permute.xlu0 %867
      %870 = vset.pattern.permute.xlu0 1
      %871 = vperm.xlu0 %870, %v495
      %v872 = vpop.permute.xlu0 %871
      %v874 = vadd.f32 %v844, %v856
      %v875 = vadd.f32 %v845, %v856
      %v876 = vadd.f32 %v846, %v860
      %v877 = vadd.f32 %v847, %v860
      %v878 = vadd.f32 %v848, %v864
      %v879 = vadd.f32 %v849, %v864
      %v880 = vadd.f32 %v850, %v868
      %v881 = vadd.f32 %v851, %v868
      %v882 = vadd.f32 %v852, %v872
      %v883 = vadd.f32 %v853, %v872
      %v884 = vmax.f32 %v874, 0.0
      %v885 = vmax.f32 %v875, 0.0
      %v886 = vmax.f32 %v876, 0.0
      %v887 = vmax.f32 %v877, 0.0
      %v888 = vmax.f32 %v878, 0.0
      %v889 = vmax.f32 %v879, 0.0
      %v890 = vmax.f32 %v880, 0.0
      %v891 = vmax.f32 %v881, 0.0
      %v892 = vmax.f32 %v882, 0.0
      %v893 = vmax.f32 %v883, 0.0
      %v894 = vsel %vm545, %v884, 0.0
      %v895 = vsel %vm546, %v885, 0.0
      %v896 = vsel %vm545, %v886, 0.0
      %v897 = vsel %vm546, %v887, 0.0
      %v898 = vsel %vm545, %v888, 0.0
      %v899 = vsel %vm546, %v889, 0.0
      %v900 = vsel %vm545, %v890, 0.0
      %v901 = vsel %vm546, %v891, 0.0
      %v902 = vsel %vm545, %v892, 0.0
      %v903 = vsel %vm546, %v893, 0.0
      %s904 = scalar_lea.vmem %s1, 240
      %v905 = vld [vmem:[%s904] sm:$0xff]
      %v906 = vld [vmem:[%s904 + $0x8] sm:$0xff]
      %v907 = vld [vmem:[%s904 + $0x10] sm:$0xff]
      %v908 = vld [vmem:[%s904 + $0x18] sm:$0xff]
      %v909 = vld [vmem:[%s904 + $0x20] sm:$0xff]
      %v910 = vld [vmem:[%s904 + $0x28] sm:$0xff]
      %v911 = vld [vmem:[%s904 + $0x30] sm:$0xff]
      %v912 = vld [vmem:[%s904 + $0x38] sm:$0xff]
      %v913 = vld [vmem:[%s904 + $0x40] sm:$0xff]
      %v914 = vld [vmem:[%s904 + $0x48] sm:$0xff]
      %v915 = vld [vmem:[%s904 + $0x50] sm:$0xff]
      %v916 = vld [vmem:[%s904 + $0x58] sm:$0xff]
      %v917 = vld [vmem:[%s904 + $0x60] sm:$0xff]
      %v918 = vld [vmem:[%s904 + $0x68] sm:$0xff]
      %v919 = vld [vmem:[%s904 + $0x70] sm:$0xff]
      %v921 = vsel %vm573, %v905, 0
      %v924 = vsel %vm573, %v906, 0
      %v927 = vsel %vm573, %v907, 0
      %v930 = vsel %vm573, %v908, 0
      %v933 = vsel %vm573, %v909, 0
      %v936 = vsel %vm573, %v910, 0
      %v939 = vsel %vm573, %v911, 0
      %v942 = vsel %vm573, %v912, 0
      %v945 = vsel %vm573, %v913, 0
      %v948 = vsel %vm573, %v914, 0
      %v951 = vsel %vm573, %v915, 0
      %v954 = vsel %vm573, %v916, 0
      %v957 = vsel %vm573, %v917, 0
      %v960 = vsel %vm573, %v918, 0
      %v963 = vsel %vm573, %v919, 0
      %965 = vmatprep.subr.mxu0 %v895
      %966 = vmatpush1.msra.mxu0 %v894
      %967 = vmatprep.subr.mxu0 %v897
      %968 = vmatpush1.msra.mxu0 %v896
      %969 = vmatprep.subr.mxu0 %v899
      %970 = vmatpush1.msra.mxu0 %v898
      %971 = vmatprep.subr.mxu0 %v901
      %972 = vmatpush1.msra.mxu0 %v900
      %973 = vmatprep.subr.mxu0 %v903
      %974 = vmatpush1.msra.mxu0 %v902
      %975 = vmatprep.subr.mxu0 0.0
      %976 = vmatpush1.msra.mxu0 0.0
      %977 = vmatprep.subr.mxu0 0.0
      %978 = vmatpush1.msra.mxu0 0.0
      %979 = vmatprep.subr.mxu0 0.0
      %980 = vmatpush1.msra.mxu0 0.0
      %981 = vmatprep.subr.mxu0 0.0
      %982 = vmatpush1.msra.mxu0 0.0
      %983 = vmatprep.subr.mxu0 0.0
      %984 = vmatpush1.msra.mxu0 0.0
      %985 = vmatprep.subr.mxu0 0.0
      %986 = vmatpush1.msra.mxu0 0.0
      %987 = vmatprep.subr.mxu0 0.0
      %988 = vmatpush1.msra.mxu0 0.0
      %989 = vmatprep.subr.mxu0 0.0
      %990 = vmatpush1.msra.mxu0 0.0
      %991 = vmatprep.subr.mxu0 0.0
      %992 = vmatpush1.msra.mxu0 0.0
      %993 = vmatprep.subr.mxu0 0.0
      %994 = vmatpush1.msra.mxu0 0.0
      %995 = vmatprep.subr.mxu0 0.0
      %996 = vmatpush1.msra.mxu0 0.0
      %997 = vmatprep.subr.mxu0 0.0
      %998 = vmatpush1.msra.mxu0 0.0
      %999 = vmatprep.subr.mxu0 0.0
      %1000 = vmatpush1.msra.mxu0 0.0
      %1001 = vmatprep.subr.mxu0 0.0
      %1002 = vmatpush1.msra.mxu0 0.0
      %1003 = vmatprep.subr.mxu0 0.0
      %1004 = vmatpush1.msra.mxu0 0.0
      %1005 = vmatprep.subr.mxu0 0.0
      %1006 = vmatpush1.msra.mxu0 0.0
      %1007 = vmatprep.subr.mxu0 0.0
      %1008 = vmatpush1.msra.mxu0 0.0
      %1009 = vmatprep.subr.mxu0 0.0
      %1010 = vmatpush1.msra.mxu0 0.0
      %1011 = vmatprep.subr.mxu0 0.0
      %1012 = vmatpush1.msra.mxu0 0.0
      %1013 = vmatprep.subr.mxu0 0.0
      %1014 = vmatpush1.msra.mxu0 0.0
      %1015 = vmatprep.subr.mxu0 0.0
      %1016 = vmatpush1.msra.mxu0 0.0
      %1017 = vmatprep.subr.mxu0 0.0
      %1018 = vmatpush1.msra.mxu0 0.0
      %1019 = vmatprep.subr.mxu0 0.0
      %1020 = vmatpush1.msra.mxu0 0.0
      %1021 = vmatprep.subr.mxu0 0.0
      %1022 = vmatpush1.msra.mxu0 0.0
      %1023 = vmatprep.subr.mxu0 0.0
      %1024 = vmatpush1.msra.mxu0 0.0
      %1025 = vmatprep.subr.mxu0 0.0
      %1026 = vmatpush1.msra.mxu0 0.0
      %1027 = vmatprep.subr.mxu0 0.0
      %1028 = vmatpush1.msra.mxu0 0.0
      %1029 = vmatprep.mubr.f32.mxu0 0.0
      %1030 = vmatmul.mubr.f32.gmra.mrb[0].mxu0 %v921
      %v1031 = vpop.f32.mrb[0].mxu0
      %v1032 = vadd.f32 0.0, %v1031
      %v1033 = vpop.f32.mrb[0].mxu0
      %v1034 = vadd.f32 0.0, %v1033
      %1035 = vmatprep.mubr.f32.mxu0 0.0
      %1036 = vmatmul.mubr.f32.gmra.mrb[0].mxu0 %v924
      %v1037 = vpop.f32.mrb[0].mxu0
      %v1038 = vadd.f32 0.0, %v1037
      %v1039 = vpop.f32.mrb[0].mxu0
      %v1040 = vadd.f32 0.0, %v1039
      %1041 = vmatprep.mubr.f32.mxu0 0.0
      %1042 = vmatmul.mubr.f32.gmra.mrb[0].mxu0 %v927
      %v1043 = vpop.f32.mrb[0].mxu0
      %v1044 = vadd.f32 0.0, %v1043
      %v1045 = vpop.f32.mrb[0].mxu0
      %v1046 = vadd.f32 0.0, %v1045
      %1047 = vmatprep.mubr.f32.mxu0 0.0
      %1048 = vmatmul.mubr.f32.gmra.mrb[0].mxu0 %v930
      %v1049 = vpop.f32.mrb[0].mxu0
      %v1050 = vadd.f32 0.0, %v1049
      %v1051 = vpop.f32.mrb[0].mxu0
      %v1052 = vadd.f32 0.0, %v1051
      %1053 = vmatprep.mubr.f32.mxu0 0.0
      %1054 = vmatmul.mubr.f32.gmra.mrb[0].mxu0 %v933
      %v1055 = vpop.f32.mrb[0].mxu0
      %v1056 = vadd.f32 0.0, %v1055
      %v1057 = vpop.f32.mrb[0].mxu0
      %v1058 = vadd.f32 0.0, %v1057
      %1059 = vmatprep.mubr.f32.mxu0 0.0
      %1060 = vmatmul.mubr.f32.gmra.mrb[0].mxu0 %v936
      %v1061 = vpop.f32.mrb[0].mxu0
      %v1062 = vadd.f32 0.0, %v1061
      %v1063 = vpop.f32.mrb[0].mxu0
      %v1064 = vadd.f32 0.0, %v1063
      %1065 = vmatprep.mubr.f32.mxu0 0.0
      %1066 = vmatmul.mubr.f32.gmra.mrb[0].mxu0 %v939
      %v1067 = vpop.f32.mrb[0].mxu0
      %v1068 = vadd.f32 0.0, %v1067
      %v1069 = vpop.f32.mrb[0].mxu0
      %v1070 = vadd.f32 0.0, %v1069
      %1071 = vmatprep.mubr.f32.mxu0 0.0
      %1072 = vmatmul.mubr.f32.gmra.mrb[0].mxu0 %v942
      %v1073 = vpop.f32.mrb[0].mxu0
      %v1074 = vadd.f32 0.0, %v1073
      %v1075 = vpop.f32.mrb[0].mxu0
      %v1076 = vadd.f32 0.0, %v1075
      %1077 = vmatprep.mubr.f32.mxu0 0.0
      %1078 = vmatmul.mubr.f32.gmra.mrb[0].mxu0 %v945
      %v1079 = vpop.f32.mrb[0].mxu0
      %v1080 = vadd.f32 0.0, %v1079
      %v1081 = vpop.f32.mrb[0].mxu0
      %v1082 = vadd.f32 0.0, %v1081
      %1083 = vmatprep.mubr.f32.mxu0 0.0
      %1084 = vmatmul.mubr.f32.gmra.mrb[0].mxu0 %v948
      %v1085 = vpop.f32.mrb[0].mxu0
      %v1086 = vadd.f32 0.0, %v1085
      %v1087 = vpop.f32.mrb[0].mxu0
      %v1088 = vadd.f32 0.0, %v1087
      %1089 = vmatprep.mubr.f32.mxu0 0.0
      %1090 = vmatmul.mubr.f32.gmra.mrb[0].mxu0 %v951
      %v1091 = vpop.f32.mrb[0].mxu0
      %v1092 = vadd.f32 0.0, %v1091
      %v1093 = vpop.f32.mrb[0].mxu0
      %v1094 = vadd.f32 0.0, %v1093
      %1095 = vmatprep.mubr.f32.mxu0 0.0
      %1096 = vmatmul.mubr.f32.gmra.mrb[0].mxu0 %v954
      %v1097 = vpop.f32.mrb[0].mxu0
      %v1098 = vadd.f32 0.0, %v1097
      %v1099 = vpop.f32.mrb[0].mxu0
      %v1100 = vadd.f32 0.0, %v1099
      %1101 = vmatprep.mubr.f32.mxu0 0.0
      %1102 = vmatmul.mubr.f32.gmra.mrb[0].mxu0 %v957
      %v1103 = vpop.f32.mrb[0].mxu0
      %v1104 = vadd.f32 0.0, %v1103
      %v1105 = vpop.f32.mrb[0].mxu0
      %v1106 = vadd.f32 0.0, %v1105
      %1107 = vmatprep.mubr.f32.mxu0 0.0
      %1108 = vmatmul.mubr.f32.gmra.mrb[0].mxu0 %v960
      %v1109 = vpop.f32.mrb[0].mxu0
      %v1110 = vadd.f32 0.0, %v1109
      %v1111 = vpop.f32.mrb[0].mxu0
      %v1112 = vadd.f32 0.0, %v1111
      %1113 = vmatprep.mubr.f32.mxu0 0.0
      %1114 = vmatmul.mubr.f32.gmra.mrb[0].mxu0 %v963
      %v1115 = vpop.f32.mrb[0].mxu0
      %v1116 = vadd.f32 0.0, %v1115
      %v1117 = vpop.f32.mrb[0].mxu0
      %v1118 = vadd.f32 0.0, %v1117
      %1119 = vdwg.mxu0
      %1120 = vrot.lane.b32.xlu0 %v1032, 1
      %v1121 = vpop.permute.xlu0 %1120
      %1122 = vrot.lane.b32.xlu0 %v1038, 1
      %v1123 = vpop.permute.xlu0 %1122
      %1124 = vrot.lane.b32.xlu0 %v1044, 1
      %v1125 = vpop.permute.xlu0 %1124
      %1126 = vrot.lane.b32.xlu0 %v1050, 1
      %v1127 = vpop.permute.xlu0 %1126
      %1128 = vrot.lane.b32.xlu0 %v1056, 1
      %v1129 = vpop.permute.xlu0 %1128
      %1130 = vrot.lane.b32.xlu0 %v1034, 1
      %v1131 = vpop.permute.xlu0 %1130
      %1132 = vrot.lane.b32.xlu0 %v1040, 1
      %v1133 = vpop.permute.xlu0 %1132
      %1134 = vrot.lane.b32.xlu0 %v1046, 1
      %v1135 = vpop.permute.xlu0 %1134
      %1136 = vrot.lane.b32.xlu0 %v1052, 1
      %v1137 = vpop.permute.xlu0 %1136
      %1138 = vrot.lane.b32.xlu0 %v1058, 1
      %v1139 = vpop.permute.xlu0 %1138
      %v1140 = vsel %vm429, %v1121, %v1131
      %v1141 = vsel %vm429, %v1123, %v1133
      %v1142 = vsel %vm429, %v1125, %v1135
      %v1143 = vsel %vm429, %v1127, %v1137
      %v1144 = vsel %vm429, %v1129, %v1139
      %v1145 = vsel %vm429, %v1131, %v1121
      %v1146 = vsel %vm429, %v1133, %v1123
      %v1147 = vsel %vm429, %v1135, %v1125
      %v1148 = vsel %vm429, %v1137, %v1127
      %v1149 = vsel %vm429, %v1139, %v1129
      %v1150 = vadd.f32 %v1145, %v1062
      %v1151 = vadd.f32 %v1140, %v1064
      %v1152 = vadd.f32 %v1146, %v1068
      %v1153 = vadd.f32 %v1141, %v1070
      %v1154 = vadd.f32 %v1147, %v1074
      %v1155 = vadd.f32 %v1142, %v1076
      %v1156 = vadd.f32 %v1148, %v1080
      %v1157 = vadd.f32 %v1143, %v1082
      %v1158 = vadd.f32 %v1149, %v1086
      %v1159 = vadd.f32 %v1144, %v1088
      %1160 = vrot.lane.b32.xlu0 %v1092, 127
      %v1161 = vpop.permute.xlu0 %1160
      %1162 = vrot.lane.b32.xlu0 %v1098, 127
      %v1163 = vpop.permute.xlu0 %1162
      %1164 = vrot.lane.b32.xlu0 %v1104, 127
      %v1165 = vpop.permute.xlu0 %1164
      %1166 = vrot.lane.b32.xlu0 %v1110, 127
      %v1167 = vpop.permute.xlu0 %1166
      %1168 = vrot.lane.b32.xlu0 %v1116, 127
      %v1169 = vpop.permute.xlu0 %1168
      %1170 = vrot.lane.b32.xlu0 %v1094, 127
      %v1171 = vpop.permute.xlu0 %1170
      %1172 = vrot.lane.b32.xlu0 %v1100, 127
      %v1173 = vpop.permute.xlu0 %1172
      %1174 = vrot.lane.b32.xlu0 %v1106, 127
      %v1175 = vpop.permute.xlu0 %1174
      %1176 = vrot.lane.b32.xlu0 %v1112, 127
      %v1177 = vpop.permute.xlu0 %1176
      %1178 = vrot.lane.b32.xlu0 %v1118, 127
      %v1179 = vpop.permute.xlu0 %1178
      %v1180 = vsel %vm470, %v1161, %v1171
      %v1181 = vsel %vm470, %v1163, %v1173
      %v1182 = vsel %vm470, %v1165, %v1175
      %v1183 = vsel %vm470, %v1167, %v1177
      %v1184 = vsel %vm470, %v1169, %v1179
      %v1185 = vsel %vm470, %v1171, %v1161
      %v1186 = vsel %vm470, %v1173, %v1163
      %v1187 = vsel %vm470, %v1175, %v1165
      %v1188 = vsel %vm470, %v1177, %v1167
      %v1189 = vsel %vm470, %v1179, %v1169
      %v1190 = vadd.f32 %v1150, %v1180
      %v1191 = vadd.f32 %v1151, %v1185
      %v1192 = vadd.f32 %v1152, %v1181
      %v1193 = vadd.f32 %v1153, %v1186
      %v1194 = vadd.f32 %v1154, %v1182
      %v1195 = vadd.f32 %v1155, %v1187
      %v1196 = vadd.f32 %v1156, %v1183
      %v1197 = vadd.f32 %v1157, %v1188
      %v1198 = vadd.f32 %v1158, %v1184
      %v1199 = vadd.f32 %v1159, %v1189
      %1200 = vset.pattern.permute.xlu0 2
      %1201 = vperm.xlu0 %1200, %v491
      %v1202 = vpop.permute.xlu0 %1201
      %1204 = vset.pattern.permute.xlu0 2
      %1205 = vperm.xlu0 %1204, %v492
      %v1206 = vpop.permute.xlu0 %1205
      %1208 = vset.pattern.permute.xlu0 2
      %1209 = vperm.xlu0 %1208, %v493
      %v1210 = vpop.permute.xlu0 %1209
      %1212 = vset.pattern.permute.xlu0 2
      %1213 = vperm.xlu0 %1212, %v494
      %v1214 = vpop.permute.xlu0 %1213
      %1216 = vset.pattern.permute.xlu0 2
      %1217 = vperm.xlu0 %1216, %v495
      %v1218 = vpop.permute.xlu0 %1217
      %v1220 = vadd.f32 %v1190, %v1202
      %v1221 = vadd.f32 %v1191, %v1202
      %v1222 = vadd.f32 %v1192, %v1206
      %v1223 = vadd.f32 %v1193, %v1206
      %v1224 = vadd.f32 %v1194, %v1210
      %v1225 = vadd.f32 %v1195, %v1210
      %v1226 = vadd.f32 %v1196, %v1214
      %v1227 = vadd.f32 %v1197, %v1214
      %v1228 = vadd.f32 %v1198, %v1218
      %v1229 = vadd.f32 %v1199, %v1218
      %v1230 = vmax.f32 %v1220, 0.0
      %v1231 = vmax.f32 %v1221, 0.0
      %v1232 = vmax.f32 %v1222, 0.0
      %v1233 = vmax.f32 %v1223, 0.0
      %v1234 = vmax.f32 %v1224, 0.0
      %v1235 = vmax.f32 %v1225, 0.0
      %v1236 = vmax.f32 %v1226, 0.0
      %v1237 = vmax.f32 %v1227, 0.0
      %v1238 = vmax.f32 %v1228, 0.0
      %v1239 = vmax.f32 %v1229, 0.0
      %v1240 = vsel %vm545, %v1230, 0.0
      %v1241 = vsel %vm546, %v1231, 0.0
      %v1242 = vsel %vm545, %v1232, 0.0
      %v1243 = vsel %vm546, %v1233, 0.0
      %v1244 = vsel %vm545, %v1234, 0.0
      %v1245 = vsel %vm546, %v1235, 0.0
      %v1246 = vsel %vm545, %v1236, 0.0
      %v1247 = vsel %vm546, %v1237, 0.0
      %v1248 = vsel %vm545, %v1238, 0.0
      %v1249 = vsel %vm546, %v1239, 0.0
      %s1250 = scalar_lea.vmem %s1, 360
      %v1251 = vld [vmem:[%s1250] sm:$0xff]
      %v1252 = vld [vmem:[%s1250 + $0x8] sm:$0xff]
      %v1253 = vld [vmem:[%s1250 + $0x10] sm:$0xff]
      %v1254 = vld [vmem:[%s1250 + $0x18] sm:$0xff]
      %v1255 = vld [vmem:[%s1250 + $0x20] sm:$0xff]
      %v1256 = vld [vmem:[%s1250 + $0x28] sm:$0xff]
      %v1257 = vld [vmem:[%s1250 + $0x30] sm:$0xff]
      %v1258 = vld [vmem:[%s1250 + $0x38] sm:$0xff]
      %v1259 = vld [vmem:[%s1250 + $0x40] sm:$0xff]
      %v1260 = vld [vmem:[%s1250 + $0x48] sm:$0xff]
      %v1261 = vld [vmem:[%s1250 + $0x50] sm:$0xff]
      %v1262 = vld [vmem:[%s1250 + $0x58] sm:$0xff]
      %v1263 = vld [vmem:[%s1250 + $0x60] sm:$0xff]
      %v1264 = vld [vmem:[%s1250 + $0x68] sm:$0xff]
      %v1265 = vld [vmem:[%s1250 + $0x70] sm:$0xff]
      %v1267 = vsel %vm573, %v1251, 0
      %v1270 = vsel %vm573, %v1252, 0
      %v1273 = vsel %vm573, %v1253, 0
      %v1276 = vsel %vm573, %v1254, 0
      %v1279 = vsel %vm573, %v1255, 0
      %v1282 = vsel %vm573, %v1256, 0
      %v1285 = vsel %vm573, %v1257, 0
      %v1288 = vsel %vm573, %v1258, 0
      %v1291 = vsel %vm573, %v1259, 0
      %v1294 = vsel %vm573, %v1260, 0
      %v1297 = vsel %vm573, %v1261, 0
      %v1300 = vsel %vm573, %v1262, 0
      %v1303 = vsel %vm573, %v1263, 0
      %v1306 = vsel %vm573, %v1264, 0
      %v1309 = vsel %vm573, %v1265, 0
      %1311 = vmatprep.subr.mxu0 %v1241
      %1312 = vmatpush1.msra.mxu0 %v1240
      %1313 = vmatprep.subr.mxu0 %v1243
      %1314 = vmatpush1.msra.mxu0 %v1242
      %1315 = vmatprep.subr.mxu0 %v1245
      %1316 = vmatpush1.msra.mxu0 %v1244
      %1317 = vmatprep.subr.mxu0 %v1247
      %1318 = vmatpush1.msra.mxu0 %v1246
      %1319 = vmatprep.subr.mxu0 %v1249
      %1320 = vmatpush1.msra.mxu0 %v1248
      %1321 = vmatprep.subr.mxu0 0.0
      %1322 = vmatpush1.msra.mxu0 0.0
      %1323 = vmatprep.subr.mxu0 0.0
      %1324 = vmatpush1.msra.mxu0 0.0
      %1325 = vmatprep.subr.mxu0 0.0
      %1326 = vmatpush1.msra.mxu0 0.0
      %1327 = vmatprep.subr.mxu0 0.0
      %1328 = vmatpush1.msra.mxu0 0.0
      %1329 = vmatprep.subr.mxu0 0.0
      %1330 = vmatpush1.msra.mxu0 0.0
      %1331 = vmatprep.subr.mxu0 0.0
      %1332 = vmatpush1.msra.mxu0 0.0
      %1333 = vmatprep.subr.mxu0 0.0
      %1334 = vmatpush1.msra.mxu0 0.0
      %1335 = vmatprep.subr.mxu0 0.0
      %1336 = vmatpush1.msra.mxu0 0.0
      %1337 = vmatprep.subr.mxu0 0.0
      %1338 = vmatpush1.msra.mxu0 0.0
      %1339 = vmatprep.subr.mxu0 0.0
      %1340 = vmatpush1.msra.mxu0 0.0
      %1341 = vmatprep.subr.mxu0 0.0
      %1342 = vmatpush1.msra.mxu0 0.0
      %1343 = vmatprep.subr.mxu0 0.0
      %1344 = vmatpush1.msra.mxu0 0.0
      %1345 = vmatprep.subr.mxu0 0.0
      %1346 = vmatpush1.msra.mxu0 0.0
      %1347 = vmatprep.subr.mxu0 0.0
      %1348 = vmatpush1.msra.mxu0 0.0
      %1349 = vmatprep.subr.mxu0 0.0
      %1350 = vmatpush1.msra.mxu0 0.0
      %1351 = vmatprep.subr.mxu0 0.0
      %1352 = vmatpush1.msra.mxu0 0.0
      %1353 = vmatprep.subr.mxu0 0.0
      %1354 = vmatpush1.msra.mxu0 0.0
      %1355 = vmatprep.subr.mxu0 0.0
      %1356 = vmatpush1.msra.mxu0 0.0
      %1357 = vmatprep.subr.mxu0 0.0
      %1358 = vmatpush1.msra.mxu0 0.0
      %1359 = vmatprep.subr.mxu0 0.0
      %1360 = vmatpush1.msra.mxu0 0.0
      %1361 = vmatprep.subr.mxu0 0.0
      %1362 = vmatpush1.msra.mxu0 0.0
      %1363 = vmatprep.subr.mxu0 0.0
      %1364 = vmatpush1.msra.mxu0 0.0
      %1365 = vmatprep.subr.mxu0 0.0
      %1366 = vmatpush1.msra.mxu0 0.0
      %1367 = vmatprep.subr.mxu0 0.0
      %1368 = vmatpush1.msra.mxu0 0.0
      %1369 = vmatprep.subr.mxu0 0.0
      %1370 = vmatpush1.msra.mxu0 0.0
      %1371 = vmatprep.subr.mxu0 0.0
      %1372 = vmatpush1.msra.mxu0 0.0
      %1373 = vmatprep.subr.mxu0 0.0
      %1374 = vmatpush1.msra.mxu0 0.0
      %1375 = vmatprep.mubr.f32.mxu0 0.0
      %1376 = vmatmul.mubr.f32.gmra.mrb[0].mxu0 %v1267
      %v1377 = vpop.f32.mrb[0].mxu0
      %v1378 = vadd.f32 0.0, %v1377
      %v1379 = vpop.f32.mrb[0].mxu0
      %v1380 = vadd.f32 0.0, %v1379
      %1381 = vmatprep.mubr.f32.mxu0 0.0
      %1382 = vmatmul.mubr.f32.gmra.mrb[0].mxu0 %v1270
      %v1383 = vpop.f32.mrb[0].mxu0
      %v1384 = vadd.f32 0.0, %v1383
      %v1385 = vpop.f32.mrb[0].mxu0
      %v1386 = vadd.f32 0.0, %v1385
      %1387 = vmatprep.mubr.f32.mxu0 0.0
      %1388 = vmatmul.mubr.f32.gmra.mrb[0].mxu0 %v1273
      %v1389 = vpop.f32.mrb[0].mxu0
      %v1390 = vadd.f32 0.0, %v1389
      %v1391 = vpop.f32.mrb[0].mxu0
      %v1392 = vadd.f32 0.0, %v1391
      %1393 = vmatprep.mubr.f32.mxu0 0.0
      %1394 = vmatmul.mubr.f32.gmra.mrb[0].mxu0 %v1276
      %v1395 = vpop.f32.mrb[0].mxu0
      %v1396 = vadd.f32 0.0, %v1395
      %v1397 = vpop.f32.mrb[0].mxu0
      %v1398 = vadd.f32 0.0, %v1397
      %1399 = vmatprep.mubr.f32.mxu0 0.0
      %1400 = vmatmul.mubr.f32.gmra.mrb[0].mxu0 %v1279
      %v1401 = vpop.f32.mrb[0].mxu0
      %v1402 = vadd.f32 0.0, %v1401
      %v1403 = vpop.f32.mrb[0].mxu0
      %v1404 = vadd.f32 0.0, %v1403
      %1405 = vmatprep.mubr.f32.mxu0 0.0
      %1406 = vmatmul.mubr.f32.gmra.mrb[0].mxu0 %v1282
      %v1407 = vpop.f32.mrb[0].mxu0
      %v1408 = vadd.f32 0.0, %v1407
      %v1409 = vpop.f32.mrb[0].mxu0
      %v1410 = vadd.f32 0.0, %v1409
      %1411 = vmatprep.mubr.f32.mxu0 0.0
      %1412 = vmatmul.mubr.f32.gmra.mrb[0].mxu0 %v1285
      %v1413 = vpop.f32.mrb[0].mxu0
      %v1414 = vadd.f32 0.0, %v1413
      %v1415 = vpop.f32.mrb[0].mxu0
      %v1416 = vadd.f32 0.0, %v1415
      %1417 = vmatprep.mubr.f32.mxu0 0.0
      %1418 = vmatmul.mubr.f32.gmra.mrb[0].mxu0 %v1288
      %v1419 = vpop.f32.mrb[0].mxu0
      %v1420 = vadd.f32 0.0, %v1419
      %v1421 = vpop.f32.mrb[0].mxu0
      %v1422 = vadd.f32 0.0, %v1421
      %1423 = vmatprep.mubr.f32.mxu0 0.0
      %1424 = vmatmul.mubr.f32.gmra.mrb[0].mxu0 %v1291
      %v1425 = vpop.f32.mrb[0].mxu0
      %v1426 = vadd.f32 0.0, %v1425
      %v1427 = vpop.f32.mrb[0].mxu0
      %v1428 = vadd.f32 0.0, %v1427
      %1429 = vmatprep.mubr.f32.mxu0 0.0
      %1430 = vmatmul.mubr.f32.gmra.mrb[0].mxu0 %v1294
      %v1431 = vpop.f32.mrb[0].mxu0
      %v1432 = vadd.f32 0.0, %v1431
      %v1433 = vpop.f32.mrb[0].mxu0
      %v1434 = vadd.f32 0.0, %v1433
      %1435 = vmatprep.mubr.f32.mxu0 0.0
      %1436 = vmatmul.mubr.f32.gmra.mrb[0].mxu0 %v1297
      %v1437 = vpop.f32.mrb[0].mxu0
      %v1438 = vadd.f32 0.0, %v1437
      %v1439 = vpop.f32.mrb[0].mxu0
      %v1440 = vadd.f32 0.0, %v1439
      %1441 = vmatprep.mubr.f32.mxu0 0.0
      %1442 = vmatmul.mubr.f32.gmra.mrb[0].mxu0 %v1300
      %v1443 = vpop.f32.mrb[0].mxu0
      %v1444 = vadd.f32 0.0, %v1443
      %v1445 = vpop.f32.mrb[0].mxu0
      %v1446 = vadd.f32 0.0, %v1445
      %1447 = vmatprep.mubr.f32.mxu0 0.0
      %1448 = vmatmul.mubr.f32.gmra.mrb[0].mxu0 %v1303
      %v1449 = vpop.f32.mrb[0].mxu0
      %v1450 = vadd.f32 0.0, %v1449
      %v1451 = vpop.f32.mrb[0].mxu0
      %v1452 = vadd.f32 0.0, %v1451
      %1453 = vmatprep.mubr.f32.mxu0 0.0
      %1454 = vmatmul.mubr.f32.gmra.mrb[0].mxu0 %v1306
      %v1455 = vpop.f32.mrb[0].mxu0
      %v1456 = vadd.f32 0.0, %v1455
      %v1457 = vpop.f32.mrb[0].mxu0
      %v1458 = vadd.f32 0.0, %v1457
      %1459 = vmatprep.mubr.f32.mxu0 0.0
      %1460 = vmatmul.mubr.f32.gmra.mrb[0].mxu0 %v1309
      %v1461 = vpop.f32.mrb[0].mxu0
      %v1462 = vadd.f32 0.0, %v1461
      %v1463 = vpop.f32.mrb[0].mxu0
      %v1464 = vadd.f32 0.0, %v1463
      %1465 = vdwg.mxu0
      %1466 = vrot.lane.b32.xlu0 %v1378, 1
      %v1467 = vpop.permute.xlu0 %1466
      %1468 = vrot.lane.b32.xlu0 %v1384, 1
      %v1469 = vpop.permute.xlu0 %1468
      %1470 = vrot.lane.b32.xlu0 %v1390, 1
      %v1471 = vpop.permute.xlu0 %1470
      %1472 = vrot.lane.b32.xlu0 %v1396, 1
      %v1473 = vpop.permute.xlu0 %1472
      %1474 = vrot.lane.b32.xlu0 %v1402, 1
      %v1475 = vpop.permute.xlu0 %1474
      %1476 = vrot.lane.b32.xlu0 %v1380, 1
      %v1477 = vpop.permute.xlu0 %1476
      %1478 = vrot.lane.b32.xlu0 %v1386, 1
      %v1479 = vpop.permute.xlu0 %1478
      %1480 = vrot.lane.b32.xlu0 %v1392, 1
      %v1481 = vpop.permute.xlu0 %1480
      %1482 = vrot.lane.b32.xlu0 %v1398, 1
      %v1483 = vpop.permute.xlu0 %1482
      %1484 = vrot.lane.b32.xlu0 %v1404, 1
      %v1485 = vpop.permute.xlu0 %1484
      %v1486 = vsel %vm429, %v1467, %v1477
      %v1487 = vsel %vm429, %v1469, %v1479
      %v1488 = vsel %vm429, %v1471, %v1481
      %v1489 = vsel %vm429, %v1473, %v1483
      %v1490 = vsel %vm429, %v1475, %v1485
      %v1491 = vsel %vm429, %v1477, %v1467
      %v1492 = vsel %vm429, %v1479, %v1469
      %v1493 = vsel %vm429, %v1481, %v1471
      %v1494 = vsel %vm429, %v1483, %v1473
      %v1495 = vsel %vm429, %v1485, %v1475
      %v1496 = vadd.f32 %v1491, %v1408
      %v1497 = vadd.f32 %v1486, %v1410
      %v1498 = vadd.f32 %v1492, %v1414
      %v1499 = vadd.f32 %v1487, %v1416
      %v1500 = vadd.f32 %v1493, %v1420
      %v1501 = vadd.f32 %v1488, %v1422
      %v1502 = vadd.f32 %v1494, %v1426
      %v1503 = vadd.f32 %v1489, %v1428
      %v1504 = vadd.f32 %v1495, %v1432
      %v1505 = vadd.f32 %v1490, %v1434
      %1506 = vrot.lane.b32.xlu0 %v1438, 127
      %v1507 = vpop.permute.xlu0 %1506
      %1508 = vrot.lane.b32.xlu0 %v1444, 127
      %v1509 = vpop.permute.xlu0 %1508
      %1510 = vrot.lane.b32.xlu0 %v1450, 127
      %v1511 = vpop.permute.xlu0 %1510
      %1512 = vrot.lane.b32.xlu0 %v1456, 127
      %v1513 = vpop.permute.xlu0 %1512
      %1514 = vrot.lane.b32.xlu0 %v1462, 127
      %v1515 = vpop.permute.xlu0 %1514
      %1516 = vrot.lane.b32.xlu0 %v1440, 127
      %v1517 = vpop.permute.xlu0 %1516
      %1518 = vrot.lane.b32.xlu0 %v1446, 127
      %v1519 = vpop.permute.xlu0 %1518
      %1520 = vrot.lane.b32.xlu0 %v1452, 127
      %v1521 = vpop.permute.xlu0 %1520
      %1522 = vrot.lane.b32.xlu0 %v1458, 127
      %v1523 = vpop.permute.xlu0 %1522
      %1524 = vrot.lane.b32.xlu0 %v1464, 127
      %v1525 = vpop.permute.xlu0 %1524
      %v1526 = vsel %vm470, %v1507, %v1517
      %v1527 = vsel %vm470, %v1509, %v1519
      %v1528 = vsel %vm470, %v1511, %v1521
      %v1529 = vsel %vm470, %v1513, %v1523
      %v1530 = vsel %vm470, %v1515, %v1525
      %v1531 = vsel %vm470, %v1517, %v1507
      %v1532 = vsel %vm470, %v1519, %v1509
      %v1533 = vsel %vm470, %v1521, %v1511
      %v1534 = vsel %vm470, %v1523, %v1513
      %v1535 = vsel %vm470, %v1525, %v1515
      %v1536 = vadd.f32 %v1496, %v1526
      %v1537 = vadd.f32 %v1497, %v1531
      %v1538 = vadd.f32 %v1498, %v1527
      %v1539 = vadd.f32 %v1499, %v1532
      %v1540 = vadd.f32 %v1500, %v1528
      %v1541 = vadd.f32 %v1501, %v1533
      %v1542 = vadd.f32 %v1502, %v1529
      %v1543 = vadd.f32 %v1503, %v1534
      %v1544 = vadd.f32 %v1504, %v1530
      %v1545 = vadd.f32 %v1505, %v1535
      %v1546 = vld [vmem:[%s3] sm:$0xff]
      %v1547 = vld [vmem:[%s3 + $0x8] sm:$0xff]
      %v1548 = vld [vmem:[%s3 + $0x10] sm:$0xff]
      %v1549 = vld [vmem:[%s3 + $0x18] sm:$0xff]
      %v1550 = vld [vmem:[%s3 + $0x20] sm:$0xff]
      %v1551 = vld [vmem:[%s3 + $0x28] sm:$0xff]
      %v1552 = vld [vmem:[%s3 + $0x30] sm:$0xff]
      %v1553 = vld [vmem:[%s3 + $0x38] sm:$0xff]
      %v1554 = vld [vmem:[%s3 + $0x40] sm:$0xff]
      %v1555 = vld [vmem:[%s3 + $0x48] sm:$0xff]
      %v1556 = vld [vmem:[%s3 + $0x50] sm:$0xff]
      %v1557 = vld [vmem:[%s3 + $0x58] sm:$0xff]
      %v1558 = vld [vmem:[%s3 + $0x60] sm:$0xff]
      %v1559 = vld [vmem:[%s3 + $0x68] sm:$0xff]
      %v1560 = vld [vmem:[%s3 + $0x70] sm:$0xff]
      %v1561 = vld [vmem:[%s3 + $0x78] sm:$0xff]
      %v1562 = vld [vmem:[%s3 + $0x80] sm:$0xff]
      %v1563 = vld [vmem:[%s3 + $0x88] sm:$0xff]
      %v1564 = vld [vmem:[%s3 + $0x90] sm:$0xff]
      %v1565 = vld [vmem:[%s3 + $0x98] sm:$0xff]
      %v1566 = vld [vmem:[%s3 + $0xa0] sm:$0xff]
      %v1567 = vld [vmem:[%s3 + $0xa8] sm:$0xff]
      %v1568 = vld [vmem:[%s3 + $0xb0] sm:$0xff]
      %v1569 = vld [vmem:[%s3 + $0xb8] sm:$0xff]
      %v1570 = vld [vmem:[%s3 + $0xc0] sm:$0xff]
      %v1571 = vld [vmem:[%s3 + $0xc8] sm:$0xff]
      %v1572 = vld [vmem:[%s3 + $0xd0] sm:$0xff]
      %v1573 = vld [vmem:[%s3 + $0xd8] sm:$0xff]
      %v1574 = vld [vmem:[%s3 + $0xe0] sm:$0xff]
      %v1575 = vld [vmem:[%s3 + $0xe8] sm:$0xff]
      %v1576 = vld [vmem:[%s3 + $0xf0] sm:$0xff]
      %v1577 = vld [vmem:[%s3 + $0xf8] sm:$0xff]
      %1578 = vset.pattern.permute.xlu0 3
      %1579 = vperm.xlu0 %1578, %v491
      %v1580 = vpop.permute.xlu0 %1579
      %1582 = vset.pattern.permute.xlu0 3
      %1583 = vperm.xlu0 %1582, %v492
      %v1584 = vpop.permute.xlu0 %1583
      %1586 = vset.pattern.permute.xlu0 3
      %1587 = vperm.xlu0 %1586, %v493
      %v1588 = vpop.permute.xlu0 %1587
      %1590 = vset.pattern.permute.xlu0 3
      %1591 = vperm.xlu0 %1590, %v494
      %v1592 = vpop.permute.xlu0 %1591
      %1594 = vset.pattern.permute.xlu0 3
      %1595 = vperm.xlu0 %1594, %v495
      %v1596 = vpop.permute.xlu0 %1595
      %1598 = vmatprep.subr.mxu0 0.0
      %1599 = vmatpush1.msra.mxu0 %v1546
      %1600 = vmatprep.subr.mxu0 0.0
      %1601 = vmatpush1.msra.mxu0 %v1547
      %1602 = vmatprep.subr.mxu0 0.0
      %1603 = vmatpush1.msra.mxu0 %v1548
      %1604 = vmatprep.subr.mxu0 0.0
      %1605 = vmatpush1.msra.mxu0 %v1549
      %1606 = vmatprep.subr.mxu0 0.0
      %1607 = vmatpush1.msra.mxu0 %v1550
      %1608 = vmatprep.subr.mxu0 0.0
      %1609 = vmatpush1.msra.mxu0 %v1551
      %1610 = vmatprep.subr.mxu0 0.0
      %1611 = vmatpush1.msra.mxu0 %v1552
      %1612 = vmatprep.subr.mxu0 0.0
      %1613 = vmatpush1.msra.mxu0 %v1553
      %1614 = vmatprep.subr.mxu0 0.0
      %1615 = vmatpush1.msra.mxu0 %v1554
      %1616 = vmatprep.subr.mxu0 0.0
      %1617 = vmatpush1.msra.mxu0 %v1555
      %1618 = vmatprep.subr.mxu0 0.0
      %1619 = vmatpush1.msra.mxu0 %v1556
      %1620 = vmatprep.subr.mxu0 0.0
      %1621 = vmatpush1.msra.mxu0 %v1557
      %1622 = vmatprep.subr.mxu0 0.0
      %1623 = vmatpush1.msra.mxu0 %v1558
      %1624 = vmatprep.subr.mxu0 0.0
      %1625 = vmatpush1.msra.mxu0 %v1559
      %1626 = vmatprep.subr.mxu0 0.0
      %1627 = vmatpush1.msra.mxu0 %v1560
      %1628 = vmatprep.subr.mxu0 0.0
      %1629 = vmatpush1.msra.mxu0 %v1561
      %1630 = vmatprep.subr.mxu0 0.0
      %1631 = vmatpush1.msra.mxu0 %v1562
      %1632 = vmatprep.subr.mxu0 0.0
      %1633 = vmatpush1.msra.mxu0 %v1563
      %1634 = vmatprep.subr.mxu0 0.0
      %1635 = vmatpush1.msra.mxu0 %v1564
      %1636 = vmatprep.subr.mxu0 0.0
      %1637 = vmatpush1.msra.mxu0 %v1565
      %1638 = vmatprep.subr.mxu0 0.0
      %1639 = vmatpush1.msra.mxu0 %v1566
      %1640 = vmatprep.subr.mxu0 0.0
      %1641 = vmatpush1.msra.mxu0 %v1567
      %1642 = vmatprep.subr.mxu0 0.0
      %1643 = vmatpush1.msra.mxu0 %v1568
      %1644 = vmatprep.subr.mxu0 0.0
      %1645 = vmatpush1.msra.mxu0 %v1569
      %1646 = vmatprep.subr.mxu0 0.0
      %1647 = vmatpush1.msra.mxu0 %v1570
      %1648 = vmatprep.subr.mxu0 0.0
      %1649 = vmatpush1.msra.mxu0 %v1571
      %1650 = vmatprep.subr.mxu0 0.0
      %1651 = vmatpush1.msra.mxu0 %v1572
      %1652 = vmatprep.subr.mxu0 0.0
      %1653 = vmatpush1.msra.mxu0 %v1573
      %1654 = vmatprep.subr.mxu0 0.0
      %1655 = vmatpush1.msra.mxu0 %v1574
      %1656 = vmatprep.subr.mxu0 0.0
      %1657 = vmatpush1.msra.mxu0 %v1575
      %1658 = vmatprep.subr.mxu0 0.0
      %1659 = vmatpush1.msra.mxu0 %v1576
      %1660 = vmatprep.subr.mxu0 0.0
      %1661 = vmatpush1.msra.mxu0 %v1577
      %1662 = vmatprep.mubr.f32.mxu0 %v1537
      %1663 = vmatmul.mubr.f32.gmra.mrb[0].mxu0 %v1536
      %v1664 = vpop.f32.mrb[0].mxu0
      %v1665 = vadd.f32 %v1580, %v1664
      %v1666 = vpop.f32.mrb[0].mxu0
      %1667 = vmatprep.mubr.f32.mxu0 %v1539
      %1668 = vmatmul.mubr.f32.gmra.mrb[0].mxu0 %v1538
      %v1669 = vpop.f32.mrb[0].mxu0
      %v1670 = vadd.f32 %v1584, %v1669
      %v1671 = vpop.f32.mrb[0].mxu0
      %1672 = vmatprep.mubr.f32.mxu0 %v1541
      %1673 = vmatmul.mubr.f32.gmra.mrb[0].mxu0 %v1540
      %v1674 = vpop.f32.mrb[0].mxu0
      %v1675 = vadd.f32 %v1588, %v1674
      %v1676 = vpop.f32.mrb[0].mxu0
      %1677 = vmatprep.mubr.f32.mxu0 %v1543
      %1678 = vmatmul.mubr.f32.gmra.mrb[0].mxu0 %v1542
      %v1679 = vpop.f32.mrb[0].mxu0
      %v1680 = vadd.f32 %v1592, %v1679
      %v1681 = vpop.f32.mrb[0].mxu0
      %1682 = vmatprep.mubr.f32.mxu0 %v1545
      %1683 = vmatmul.mubr.f32.gmra.mrb[0].mxu0 %v1544
      %v1684 = vpop.f32.mrb[0].mxu0
      %v1685 = vadd.f32 %v1596, %v1684
      %v1686 = vpop.f32.mrb[0].mxu0
      %1687 = vdwg.mxu0
      %vm1688 = vcmp.lt.s32.totalorder %v275, 96
      %v1689 = vmax.f32 %v1665, 0.0
      %v1690 = vmax.f32 %v1670, 0.0
      %v1691 = vmax.f32 %v1675, 0.0
      %v1692 = vmax.f32 %v1680, 0.0
      %v1693 = vmax.f32 %v1685, 0.0
      %v1694 = vsel %vm1688, 1, 0
      %vm1695 = vcmp.eq.s32.totalorder %v1694, 1
      %v1696 = vsel %vm1695, %v1689, 0.0
      %v1697 = vsel %vm1695, %v1690, 0.0
      %v1698 = vsel %vm1695, %v1691, 0.0
      %v1699 = vsel %vm1695, %v1692, 0.0
      %v1700 = vsel %vm1695, %v1693, 0.0
      %s1701 = scalar_lea.vmem %s1, 480
      %v1702 = vld [vmem:[%s1701] sm:$0xff]
      %v1703 = vld [vmem:[%s1701 + $0x8] sm:$0xff]
      %v1704 = vld [vmem:[%s1701 + $0x10] sm:$0xff]
      %v1705 = vld [vmem:[%s1701 + $0x18] sm:$0xff]
      %v1706 = vld [vmem:[%s1701 + $0x20] sm:$0xff]
      %v1707 = vld [vmem:[%s1701 + $0x28] sm:$0xff]
      %v1708 = vld [vmem:[%s1701 + $0x30] sm:$0xff]
      %v1709 = vld [vmem:[%s1701 + $0x38] sm:$0xff]
      %v1710 = vld [vmem:[%s1701 + $0x40] sm:$0xff]
      %v1711 = vld [vmem:[%s1701 + $0x48] sm:$0xff]
      %v1712 = vld [vmem:[%s1701 + $0x50] sm:$0xff]
      %v1713 = vld [vmem:[%s1701 + $0x58] sm:$0xff]
      %v1714 = vld [vmem:[%s1701 + $0x60] sm:$0xff]
      %v1715 = vld [vmem:[%s1701 + $0x68] sm:$0xff]
      %v1716 = vld [vmem:[%s1701 + $0x70] sm:$0xff]
      %v1718 = vsel %vm573, %v1702, 0
      %v1721 = vsel %vm573, %v1703, 0
      %v1724 = vsel %vm573, %v1704, 0
      %v1727 = vsel %vm573, %v1705, 0
      %v1730 = vsel %vm573, %v1706, 0
      %v1733 = vsel %vm573, %v1707, 0
      %v1736 = vsel %vm573, %v1708, 0
      %v1739 = vsel %vm573, %v1709, 0
      %v1742 = vsel %vm573, %v1710, 0
      %v1745 = vsel %vm573, %v1711, 0
      %v1748 = vsel %vm573, %v1712, 0
      %v1751 = vsel %vm573, %v1713, 0
      %v1754 = vsel %vm573, %v1714, 0
      %v1757 = vsel %vm573, %v1715, 0
      %v1760 = vsel %vm573, %v1716, 0
      %1762 = vmatprep.subr.mxu0 0.0
      %1763 = vmatpush1.msra.mxu0 %v1696
      %1764 = vmatprep.subr.mxu0 0.0
      %1765 = vmatpush1.msra.mxu0 %v1697
      %1766 = vmatprep.subr.mxu0 0.0
      %1767 = vmatpush1.msra.mxu0 %v1698
      %1768 = vmatprep.subr.mxu0 0.0
      %1769 = vmatpush1.msra.mxu0 %v1699
      %1770 = vmatprep.subr.mxu0 0.0
      %1771 = vmatpush1.msra.mxu0 %v1700
      %1772 = vmatprep.subr.mxu0 0.0
      %1773 = vmatpush1.msra.mxu0 0.0
      %1774 = vmatprep.subr.mxu0 0.0
      %1775 = vmatpush1.msra.mxu0 0.0
      %1776 = vmatprep.subr.mxu0 0.0
      %1777 = vmatpush1.msra.mxu0 0.0
      %1778 = vmatprep.subr.mxu0 0.0
      %1779 = vmatpush1.msra.mxu0 0.0
      %1780 = vmatprep.subr.mxu0 0.0
      %1781 = vmatpush1.msra.mxu0 0.0
      %1782 = vmatprep.subr.mxu0 0.0
      %1783 = vmatpush1.msra.mxu0 0.0
      %1784 = vmatprep.subr.mxu0 0.0
      %1785 = vmatpush1.msra.mxu0 0.0
      %1786 = vmatprep.subr.mxu0 0.0
      %1787 = vmatpush1.msra.mxu0 0.0
      %1788 = vmatprep.subr.mxu0 0.0
      %1789 = vmatpush1.msra.mxu0 0.0
      %1790 = vmatprep.subr.mxu0 0.0
      %1791 = vmatpush1.msra.mxu0 0.0
      %1792 = vmatprep.subr.mxu0 0.0
      %1793 = vmatpush1.msra.mxu0 0.0
      %1794 = vmatprep.subr.mxu0 0.0
      %1795 = vmatpush1.msra.mxu0 0.0
      %1796 = vmatprep.subr.mxu0 0.0
      %1797 = vmatpush1.msra.mxu0 0.0
      %1798 = vmatprep.subr.mxu0 0.0
      %1799 = vmatpush1.msra.mxu0 0.0
      %1800 = vmatprep.subr.mxu0 0.0
      %1801 = vmatpush1.msra.mxu0 0.0
      %1802 = vmatprep.subr.mxu0 0.0
      %1803 = vmatpush1.msra.mxu0 0.0
      %1804 = vmatprep.subr.mxu0 0.0
      %1805 = vmatpush1.msra.mxu0 0.0
      %1806 = vmatprep.subr.mxu0 0.0
      %1807 = vmatpush1.msra.mxu0 0.0
      %1808 = vmatprep.subr.mxu0 0.0
      %1809 = vmatpush1.msra.mxu0 0.0
      %1810 = vmatprep.subr.mxu0 0.0
      %1811 = vmatpush1.msra.mxu0 0.0
      %1812 = vmatprep.subr.mxu0 0.0
      %1813 = vmatpush1.msra.mxu0 0.0
      %1814 = vmatprep.subr.mxu0 0.0
      %1815 = vmatpush1.msra.mxu0 0.0
      %1816 = vmatprep.subr.mxu0 0.0
      %1817 = vmatpush1.msra.mxu0 0.0
      %1818 = vmatprep.subr.mxu0 0.0
      %1819 = vmatpush1.msra.mxu0 0.0
      %1820 = vmatprep.subr.mxu0 0.0
      %1821 = vmatpush1.msra.mxu0 0.0
      %1822 = vmatprep.subr.mxu0 0.0
      %1823 = vmatpush1.msra.mxu0 0.0
      %1824 = vmatprep.subr.mxu0 0.0
      %1825 = vmatpush1.msra.mxu0 0.0
      %1826 = vmatprep.mubr.f32.mxu0 0.0
      %1827 = vmatmul.mubr.f32.gmra.mrb[0].mxu0 %v1718
      %v1828 = vpop.f32.mrb[0].mxu0
      %v1829 = vadd.f32 0.0, %v1828
      %v1830 = vpop.f32.mrb[0].mxu0
      %1831 = vmatprep.mubr.f32.mxu0 0.0
      %1832 = vmatmul.mubr.f32.gmra.mrb[0].mxu0 %v1721
      %v1833 = vpop.f32.mrb[0].mxu0
      %v1834 = vadd.f32 0.0, %v1833
      %v1835 = vpop.f32.mrb[0].mxu0
      %1836 = vmatprep.mubr.f32.mxu0 0.0
      %1837 = vmatmul.mubr.f32.gmra.mrb[0].mxu0 %v1724
      %v1838 = vpop.f32.mrb[0].mxu0
      %v1839 = vadd.f32 0.0, %v1838
      %v1840 = vpop.f32.mrb[0].mxu0
      %1841 = vmatprep.mubr.f32.mxu0 0.0
      %1842 = vmatmul.mubr.f32.gmra.mrb[0].mxu0 %v1727
      %v1843 = vpop.f32.mrb[0].mxu0
      %v1844 = vadd.f32 0.0, %v1843
      %v1845 = vpop.f32.mrb[0].mxu0
      %1846 = vmatprep.mubr.f32.mxu0 0.0
      %1847 = vmatmul.mubr.f32.gmra.mrb[0].mxu0 %v1730
      %v1848 = vpop.f32.mrb[0].mxu0
      %v1849 = vadd.f32 0.0, %v1848
      %v1850 = vpop.f32.mrb[0].mxu0
      %1851 = vmatprep.mubr.f32.mxu0 0.0
      %1852 = vmatmul.mubr.f32.gmra.mrb[0].mxu0 %v1733
      %v1853 = vpop.f32.mrb[0].mxu0
      %v1854 = vadd.f32 0.0, %v1853
      %v1855 = vpop.f32.mrb[0].mxu0
      %1856 = vmatprep.mubr.f32.mxu0 0.0
      %1857 = vmatmul.mubr.f32.gmra.mrb[0].mxu0 %v1736
      %v1858 = vpop.f32.mrb[0].mxu0
      %v1859 = vadd.f32 0.0, %v1858
      %v1860 = vpop.f32.mrb[0].mxu0
      %1861 = vmatprep.mubr.f32.mxu0 0.0
      %1862 = vmatmul.mubr.f32.gmra.mrb[0].mxu0 %v1739
      %v1863 = vpop.f32.mrb[0].mxu0
      %v1864 = vadd.f32 0.0, %v1863
      %v1865 = vpop.f32.mrb[0].mxu0
      %1866 = vmatprep.mubr.f32.mxu0 0.0
      %1867 = vmatmul.mubr.f32.gmra.mrb[0].mxu0 %v1742
      %v1868 = vpop.f32.mrb[0].mxu0
      %v1869 = vadd.f32 0.0, %v1868
      %v1870 = vpop.f32.mrb[0].mxu0
      %1871 = vmatprep.mubr.f32.mxu0 0.0
      %1872 = vmatmul.mubr.f32.gmra.mrb[0].mxu0 %v1745
      %v1873 = vpop.f32.mrb[0].mxu0
      %v1874 = vadd.f32 0.0, %v1873
      %v1875 = vpop.f32.mrb[0].mxu0
      %1876 = vmatprep.mubr.f32.mxu0 0.0
      %1877 = vmatmul.mubr.f32.gmra.mrb[0].mxu0 %v1748
      %v1878 = vpop.f32.mrb[0].mxu0
      %v1879 = vadd.f32 0.0, %v1878
      %v1880 = vpop.f32.mrb[0].mxu0
      %1881 = vmatprep.mubr.f32.mxu0 0.0
      %1882 = vmatmul.mubr.f32.gmra.mrb[0].mxu0 %v1751
      %v1883 = vpop.f32.mrb[0].mxu0
      %v1884 = vadd.f32 0.0, %v1883
      %v1885 = vpop.f32.mrb[0].mxu0
      %1886 = vmatprep.mubr.f32.mxu0 0.0
      %1887 = vmatmul.mubr.f32.gmra.mrb[0].mxu0 %v1754
      %v1888 = vpop.f32.mrb[0].mxu0
      %v1889 = vadd.f32 0.0, %v1888
      %v1890 = vpop.f32.mrb[0].mxu0
      %1891 = vmatprep.mubr.f32.mxu0 0.0
      %1892 = vmatmul.mubr.f32.gmra.mrb[0].mxu0 %v1757
      %v1893 = vpop.f32.mrb[0].mxu0
      %v1894 = vadd.f32 0.0, %v1893
      %v1895 = vpop.f32.mrb[0].mxu0
      %1896 = vmatprep.mubr.f32.mxu0 0.0
      %1897 = vmatmul.mubr.f32.gmra.mrb[0].mxu0 %v1760
      %v1898 = vpop.f32.mrb[0].mxu0
      %v1899 = vadd.f32 0.0, %v1898
      %v1900 = vpop.f32.mrb[0].mxu0
      %1901 = vdwg.mxu0
      %1902 = vrot.lane.b32.xlu0 %v1829, 1
      %v1903 = vpop.permute.xlu0 %1902
      %1904 = vrot.lane.b32.xlu0 %v1834, 1
      %v1905 = vpop.permute.xlu0 %1904
      %1906 = vrot.lane.b32.xlu0 %v1839, 1
      %v1907 = vpop.permute.xlu0 %1906
      %1908 = vrot.lane.b32.xlu0 %v1844, 1
      %v1909 = vpop.permute.xlu0 %1908
      %1910 = vrot.lane.b32.xlu0 %v1849, 1
      %v1911 = vpop.permute.xlu0 %1910
      %v1912 = vadd.f32 %v1903, %v1854
      %v1913 = vadd.f32 %v1905, %v1859
      %v1914 = vadd.f32 %v1907, %v1864
      %v1915 = vadd.f32 %v1909, %v1869
      %v1916 = vadd.f32 %v1911, %v1874
      %1917 = vrot.lane.b32.xlu0 %v1879, 127
      %v1918 = vpop.permute.xlu0 %1917
      %1919 = vrot.lane.b32.xlu0 %v1884, 127
      %v1920 = vpop.permute.xlu0 %1919
      %1921 = vrot.lane.b32.xlu0 %v1889, 127
      %v1922 = vpop.permute.xlu0 %1921
      %1923 = vrot.lane.b32.xlu0 %v1894, 127
      %v1924 = vpop.permute.xlu0 %1923
      %1925 = vrot.lane.b32.xlu0 %v1899, 127
      %v1926 = vpop.permute.xlu0 %1925
      %v1927 = vadd.f32 %v1912, %v1918
      %v1928 = vadd.f32 %v1913, %v1920
      %v1929 = vadd.f32 %v1914, %v1922
      %v1930 = vadd.f32 %v1915, %v1924
      %v1931 = vadd.f32 %v1916, %v1926
      %1932 = vset.pattern.permute.xlu0 4
      %1933 = vperm.xlu0 %1932, %v491
      %v1934 = vpop.permute.xlu0 %1933
      %1936 = vset.pattern.permute.xlu0 4
      %1937 = vperm.xlu0 %1936, %v492
      %v1938 = vpop.permute.xlu0 %1937
      %1940 = vset.pattern.permute.xlu0 4
      %1941 = vperm.xlu0 %1940, %v493
      %v1942 = vpop.permute.xlu0 %1941
      %1944 = vset.pattern.permute.xlu0 4
      %1945 = vperm.xlu0 %1944, %v494
      %v1946 = vpop.permute.xlu0 %1945
      %1948 = vset.pattern.permute.xlu0 4
      %1949 = vperm.xlu0 %1948, %v495
      %v1950 = vpop.permute.xlu0 %1949
      %v1952 = vadd.f32 %v1927, %v1934
      %v1953 = vadd.f32 %v1928, %v1938
      %v1954 = vadd.f32 %v1929, %v1942
      %v1955 = vadd.f32 %v1930, %v1946
      %v1956 = vadd.f32 %v1931, %v1950
      %v1957 = vmax.f32 %v1952, 0.0
      %v1958 = vmax.f32 %v1953, 0.0
      %v1959 = vmax.f32 %v1954, 0.0
      %v1960 = vmax.f32 %v1955, 0.0
      %v1961 = vmax.f32 %v1956, 0.0
      %v1962 = vsel %vm1695, %v1957, 0.0
      %v1963 = vsel %vm1695, %v1958, 0.0
      %v1964 = vsel %vm1695, %v1959, 0.0
      %v1965 = vsel %vm1695, %v1960, 0.0
      %v1966 = vsel %vm1695, %v1961, 0.0
      %s1967 = scalar_lea.vmem %s1, 600
      %v1968 = vld [vmem:[%s1967] sm:$0xff]
      %v1969 = vld [vmem:[%s1967 + $0x8] sm:$0xff]
      %v1970 = vld [vmem:[%s1967 + $0x10] sm:$0xff]
      %v1971 = vld [vmem:[%s1967 + $0x18] sm:$0xff]
      %v1972 = vld [vmem:[%s1967 + $0x20] sm:$0xff]
      %v1973 = vld [vmem:[%s1967 + $0x28] sm:$0xff]
      %v1974 = vld [vmem:[%s1967 + $0x30] sm:$0xff]
      %v1975 = vld [vmem:[%s1967 + $0x38] sm:$0xff]
      %v1976 = vld [vmem:[%s1967 + $0x40] sm:$0xff]
      %v1977 = vld [vmem:[%s1967 + $0x48] sm:$0xff]
      %v1978 = vld [vmem:[%s1967 + $0x50] sm:$0xff]
      %v1979 = vld [vmem:[%s1967 + $0x58] sm:$0xff]
      %v1980 = vld [vmem:[%s1967 + $0x60] sm:$0xff]
      %v1981 = vld [vmem:[%s1967 + $0x68] sm:$0xff]
      %v1982 = vld [vmem:[%s1967 + $0x70] sm:$0xff]
      %v1984 = vsel %vm573, %v1968, 0
      %v1987 = vsel %vm573, %v1969, 0
      %v1990 = vsel %vm573, %v1970, 0
      %v1993 = vsel %vm573, %v1971, 0
      %v1996 = vsel %vm573, %v1972, 0
      %v1999 = vsel %vm573, %v1973, 0
      %v2002 = vsel %vm573, %v1974, 0
      %v2005 = vsel %vm573, %v1975, 0
      %v2008 = vsel %vm573, %v1976, 0
      %v2011 = vsel %vm573, %v1977, 0
      %v2014 = vsel %vm573, %v1978, 0
      %v2017 = vsel %vm573, %v1979, 0
      %v2020 = vsel %vm573, %v1980, 0
      %v2023 = vsel %vm573, %v1981, 0
      %v2026 = vsel %vm573, %v1982, 0
      %2028 = vmatprep.subr.mxu0 0.0
      %2029 = vmatpush1.msra.mxu0 %v1962
      %2030 = vmatprep.subr.mxu0 0.0
      %2031 = vmatpush1.msra.mxu0 %v1963
      %2032 = vmatprep.subr.mxu0 0.0
      %2033 = vmatpush1.msra.mxu0 %v1964
      %2034 = vmatprep.subr.mxu0 0.0
      %2035 = vmatpush1.msra.mxu0 %v1965
      %2036 = vmatprep.subr.mxu0 0.0
      %2037 = vmatpush1.msra.mxu0 %v1966
      %2038 = vmatprep.subr.mxu0 0.0
      %2039 = vmatpush1.msra.mxu0 0.0
      %2040 = vmatprep.subr.mxu0 0.0
      %2041 = vmatpush1.msra.mxu0 0.0
      %2042 = vmatprep.subr.mxu0 0.0
      %2043 = vmatpush1.msra.mxu0 0.0
      %2044 = vmatprep.subr.mxu0 0.0
      %2045 = vmatpush1.msra.mxu0 0.0
      %2046 = vmatprep.subr.mxu0 0.0
      %2047 = vmatpush1.msra.mxu0 0.0
      %2048 = vmatprep.subr.mxu0 0.0
      %2049 = vmatpush1.msra.mxu0 0.0
      %2050 = vmatprep.subr.mxu0 0.0
      %2051 = vmatpush1.msra.mxu0 0.0
      %2052 = vmatprep.subr.mxu0 0.0
      %2053 = vmatpush1.msra.mxu0 0.0
      %2054 = vmatprep.subr.mxu0 0.0
      %2055 = vmatpush1.msra.mxu0 0.0
      %2056 = vmatprep.subr.mxu0 0.0
      %2057 = vmatpush1.msra.mxu0 0.0
      %2058 = vmatprep.subr.mxu0 0.0
      %2059 = vmatpush1.msra.mxu0 0.0
      %2060 = vmatprep.subr.mxu0 0.0
      %2061 = vmatpush1.msra.mxu0 0.0
      %2062 = vmatprep.subr.mxu0 0.0
      %2063 = vmatpush1.msra.mxu0 0.0
      %2064 = vmatprep.subr.mxu0 0.0
      %2065 = vmatpush1.msra.mxu0 0.0
      %2066 = vmatprep.subr.mxu0 0.0
      %2067 = vmatpush1.msra.mxu0 0.0
      %2068 = vmatprep.subr.mxu0 0.0
      %2069 = vmatpush1.msra.mxu0 0.0
      %2070 = vmatprep.subr.mxu0 0.0
      %2071 = vmatpush1.msra.mxu0 0.0
      %2072 = vmatprep.subr.mxu0 0.0
      %2073 = vmatpush1.msra.mxu0 0.0
      %2074 = vmatprep.subr.mxu0 0.0
      %2075 = vmatpush1.msra.mxu0 0.0
      %2076 = vmatprep.subr.mxu0 0.0
      %2077 = vmatpush1.msra.mxu0 0.0
      %2078 = vmatprep.subr.mxu0 0.0
      %2079 = vmatpush1.msra.mxu0 0.0
      %2080 = vmatprep.subr.mxu0 0.0
      %2081 = vmatpush1.msra.mxu0 0.0
      %2082 = vmatprep.subr.mxu0 0.0
      %2083 = vmatpush1.msra.mxu0 0.0
      %2084 = vmatprep.subr.mxu0 0.0
      %2085 = vmatpush1.msra.mxu0 0.0
      %2086 = vmatprep.subr.mxu0 0.0
      %2087 = vmatpush1.msra.mxu0 0.0
      %2088 = vmatprep.subr.mxu0 0.0
      %2089 = vmatpush1.msra.mxu0 0.0
      %2090 = vmatprep.subr.mxu0 0.0
      %2091 = vmatpush1.msra.mxu0 0.0
      %2092 = vmatprep.mubr.f32.mxu0 0.0
      %2093 = vmatmul.mubr.f32.gmra.mrb[0].mxu0 %v1984
      %v2094 = vpop.f32.mrb[0].mxu0
      %v2095 = vadd.f32 0.0, %v2094
      %v2096 = vpop.f32.mrb[0].mxu0
      %2097 = vmatprep.mubr.f32.mxu0 0.0
      %2098 = vmatmul.mubr.f32.gmra.mrb[0].mxu0 %v1987
      %v2099 = vpop.f32.mrb[0].mxu0
      %v2100 = vadd.f32 0.0, %v2099
      %v2101 = vpop.f32.mrb[0].mxu0
      %2102 = vmatprep.mubr.f32.mxu0 0.0
      %2103 = vmatmul.mubr.f32.gmra.mrb[0].mxu0 %v1990
      %v2104 = vpop.f32.mrb[0].mxu0
      %v2105 = vadd.f32 0.0, %v2104
      %v2106 = vpop.f32.mrb[0].mxu0
      %2107 = vmatprep.mubr.f32.mxu0 0.0
      %2108 = vmatmul.mubr.f32.gmra.mrb[0].mxu0 %v1993
      %v2109 = vpop.f32.mrb[0].mxu0
      %v2110 = vadd.f32 0.0, %v2109
      %v2111 = vpop.f32.mrb[0].mxu0
      %2112 = vmatprep.mubr.f32.mxu0 0.0
      %2113 = vmatmul.mubr.f32.gmra.mrb[0].mxu0 %v1996
      %v2114 = vpop.f32.mrb[0].mxu0
      %v2115 = vadd.f32 0.0, %v2114
      %v2116 = vpop.f32.mrb[0].mxu0
      %2117 = vmatprep.mubr.f32.mxu0 0.0
      %2118 = vmatmul.mubr.f32.gmra.mrb[0].mxu0 %v1999
      %v2119 = vpop.f32.mrb[0].mxu0
      %v2120 = vadd.f32 0.0, %v2119
      %v2121 = vpop.f32.mrb[0].mxu0
      %2122 = vmatprep.mubr.f32.mxu0 0.0
      %2123 = vmatmul.mubr.f32.gmra.mrb[0].mxu0 %v2002
      %v2124 = vpop.f32.mrb[0].mxu0
      %v2125 = vadd.f32 0.0, %v2124
      %v2126 = vpop.f32.mrb[0].mxu0
      %2127 = vmatprep.mubr.f32.mxu0 0.0
      %2128 = vmatmul.mubr.f32.gmra.mrb[0].mxu0 %v2005
      %v2129 = vpop.f32.mrb[0].mxu0
      %v2130 = vadd.f32 0.0, %v2129
      %v2131 = vpop.f32.mrb[0].mxu0
      %2132 = vmatprep.mubr.f32.mxu0 0.0
      %2133 = vmatmul.mubr.f32.gmra.mrb[0].mxu0 %v2008
      %v2134 = vpop.f32.mrb[0].mxu0
      %v2135 = vadd.f32 0.0, %v2134
      %v2136 = vpop.f32.mrb[0].mxu0
      %2137 = vmatprep.mubr.f32.mxu0 0.0
      %2138 = vmatmul.mubr.f32.gmra.mrb[0].mxu0 %v2011
      %v2139 = vpop.f32.mrb[0].mxu0
      %v2140 = vadd.f32 0.0, %v2139
      %v2141 = vpop.f32.mrb[0].mxu0
      %2142 = vmatprep.mubr.f32.mxu0 0.0
      %2143 = vmatmul.mubr.f32.gmra.mrb[0].mxu0 %v2014
      %v2144 = vpop.f32.mrb[0].mxu0
      %v2145 = vadd.f32 0.0, %v2144
      %v2146 = vpop.f32.mrb[0].mxu0
      %2147 = vmatprep.mubr.f32.mxu0 0.0
      %2148 = vmatmul.mubr.f32.gmra.mrb[0].mxu0 %v2017
      %v2149 = vpop.f32.mrb[0].mxu0
      %v2150 = vadd.f32 0.0, %v2149
      %v2151 = vpop.f32.mrb[0].mxu0
      %2152 = vmatprep.mubr.f32.mxu0 0.0
      %2153 = vmatmul.mubr.f32.gmra.mrb[0].mxu0 %v2020
      %v2154 = vpop.f32.mrb[0].mxu0
      %v2155 = vadd.f32 0.0, %v2154
      %v2156 = vpop.f32.mrb[0].mxu0
      %2157 = vmatprep.mubr.f32.mxu0 0.0
      %2158 = vmatmul.mubr.f32.gmra.mrb[0].mxu0 %v2023
      %v2159 = vpop.f32.mrb[0].mxu0
      %v2160 = vadd.f32 0.0, %v2159
      %v2161 = vpop.f32.mrb[0].mxu0
      %2162 = vmatprep.mubr.f32.mxu0 0.0
      %2163 = vmatmul.mubr.f32.gmra.mrb[0].mxu0 %v2026
      %v2164 = vpop.f32.mrb[0].mxu0
      %v2165 = vadd.f32 0.0, %v2164
      %v2166 = vpop.f32.mrb[0].mxu0
      %2167 = vdwg.mxu0
      %2168 = vrot.lane.b32.xlu0 %v2095, 1
      %v2169 = vpop.permute.xlu0 %2168
      %2170 = vrot.lane.b32.xlu0 %v2100, 1
      %v2171 = vpop.permute.xlu0 %2170
      %2172 = vrot.lane.b32.xlu0 %v2105, 1
      %v2173 = vpop.permute.xlu0 %2172
      %2174 = vrot.lane.b32.xlu0 %v2110, 1
      %v2175 = vpop.permute.xlu0 %2174
      %2176 = vrot.lane.b32.xlu0 %v2115, 1
      %v2177 = vpop.permute.xlu0 %2176
      %v2178 = vadd.f32 %v2169, %v2120
      %v2179 = vadd.f32 %v2171, %v2125
      %v2180 = vadd.f32 %v2173, %v2130
      %v2181 = vadd.f32 %v2175, %v2135
      %v2182 = vadd.f32 %v2177, %v2140
      %2183 = vrot.lane.b32.xlu0 %v2145, 127
      %v2184 = vpop.permute.xlu0 %2183
      %2185 = vrot.lane.b32.xlu0 %v2150, 127
      %v2186 = vpop.permute.xlu0 %2185
      %2187 = vrot.lane.b32.xlu0 %v2155, 127
      %v2188 = vpop.permute.xlu0 %2187
      %2189 = vrot.lane.b32.xlu0 %v2160, 127
      %v2190 = vpop.permute.xlu0 %2189
      %2191 = vrot.lane.b32.xlu0 %v2165, 127
      %v2192 = vpop.permute.xlu0 %2191
      %v2193 = vadd.f32 %v2178, %v2184
      %v2194 = vadd.f32 %v2179, %v2186
      %v2195 = vadd.f32 %v2180, %v2188
      %v2196 = vadd.f32 %v2181, %v2190
      %v2197 = vadd.f32 %v2182, %v2192
      %2198 = vset.pattern.permute.xlu0 5
      %2199 = vperm.xlu0 %2198, %v491
      %v2200 = vpop.permute.xlu0 %2199
      %2202 = vset.pattern.permute.xlu0 5
      %2203 = vperm.xlu0 %2202, %v492
      %v2204 = vpop.permute.xlu0 %2203
      %2206 = vset.pattern.permute.xlu0 5
      %2207 = vperm.xlu0 %2206, %v493
      %v2208 = vpop.permute.xlu0 %2207
      %2210 = vset.pattern.permute.xlu0 5
      %2211 = vperm.xlu0 %2210, %v494
      %v2212 = vpop.permute.xlu0 %2211
      %2214 = vset.pattern.permute.xlu0 5
      %2215 = vperm.xlu0 %2214, %v495
      %v2216 = vpop.permute.xlu0 %2215
      %v2218 = vadd.f32 %v2193, %v2200
      %v2219 = vadd.f32 %v2194, %v2204
      %v2220 = vadd.f32 %v2195, %v2208
      %v2221 = vadd.f32 %v2196, %v2212
      %v2222 = vadd.f32 %v2197, %v2216
      %v2223 = vmax.f32 %v2218, 0.0
      %v2224 = vmax.f32 %v2219, 0.0
      %v2225 = vmax.f32 %v2220, 0.0
      %v2226 = vmax.f32 %v2221, 0.0
      %v2227 = vmax.f32 %v2222, 0.0
      %v2228 = vsel %vm1695, %v2223, 0.0
      %v2229 = vsel %vm1695, %v2224, 0.0
      %v2230 = vsel %vm1695, %v2225, 0.0
      %v2231 = vsel %vm1695, %v2226, 0.0
      %v2232 = vsel %vm1695, %v2227, 0.0
      %s2233 = scalar_lea.vmem %s1, 720
      %v2234 = vld [vmem:[%s2233] sm:$0xff]
      %v2235 = vld [vmem:[%s2233 + $0x8] sm:$0xff]
      %v2236 = vld [vmem:[%s2233 + $0x10] sm:$0xff]
      %v2237 = vld [vmem:[%s2233 + $0x18] sm:$0xff]
      %v2238 = vld [vmem:[%s2233 + $0x20] sm:$0xff]
      %v2239 = vld [vmem:[%s2233 + $0x28] sm:$0xff]
      %v2240 = vld [vmem:[%s2233 + $0x30] sm:$0xff]
      %v2241 = vld [vmem:[%s2233 + $0x38] sm:$0xff]
      %v2242 = vld [vmem:[%s2233 + $0x40] sm:$0xff]
      %v2243 = vld [vmem:[%s2233 + $0x48] sm:$0xff]
      %v2244 = vld [vmem:[%s2233 + $0x50] sm:$0xff]
      %v2245 = vld [vmem:[%s2233 + $0x58] sm:$0xff]
      %v2246 = vld [vmem:[%s2233 + $0x60] sm:$0xff]
      %v2247 = vld [vmem:[%s2233 + $0x68] sm:$0xff]
      %v2248 = vld [vmem:[%s2233 + $0x70] sm:$0xff]
      %v2250 = vsel %vm573, %v2234, 0
      %v2253 = vsel %vm573, %v2235, 0
      %v2256 = vsel %vm573, %v2236, 0
      %v2259 = vsel %vm573, %v2237, 0
      %v2262 = vsel %vm573, %v2238, 0
      %v2265 = vsel %vm573, %v2239, 0
      %v2268 = vsel %vm573, %v2240, 0
      %v2271 = vsel %vm573, %v2241, 0
      %v2274 = vsel %vm573, %v2242, 0
      %v2277 = vsel %vm573, %v2243, 0
      %v2280 = vsel %vm573, %v2244, 0
      %v2283 = vsel %vm573, %v2245, 0
      %v2286 = vsel %vm573, %v2246, 0
      %v2289 = vsel %vm573, %v2247, 0
      %v2292 = vsel %vm573, %v2248, 0
      %2294 = vmatprep.subr.mxu0 0.0
      %2295 = vmatpush1.msra.mxu0 %v2228
      %2296 = vmatprep.subr.mxu0 0.0
      %2297 = vmatpush1.msra.mxu0 %v2229
      %2298 = vmatprep.subr.mxu0 0.0
      %2299 = vmatpush1.msra.mxu0 %v2230
      %2300 = vmatprep.subr.mxu0 0.0
      %2301 = vmatpush1.msra.mxu0 %v2231
      %2302 = vmatprep.subr.mxu0 0.0
      %2303 = vmatpush1.msra.mxu0 %v2232
      %2304 = vmatprep.subr.mxu0 0.0
      %2305 = vmatpush1.msra.mxu0 0.0
      %2306 = vmatprep.subr.mxu0 0.0
      %2307 = vmatpush1.msra.mxu0 0.0
      %2308 = vmatprep.subr.mxu0 0.0
      %2309 = vmatpush1.msra.mxu0 0.0
      %2310 = vmatprep.subr.mxu0 0.0
      %2311 = vmatpush1.msra.mxu0 0.0
      %2312 = vmatprep.subr.mxu0 0.0
      %2313 = vmatpush1.msra.mxu0 0.0
      %2314 = vmatprep.subr.mxu0 0.0
      %2315 = vmatpush1.msra.mxu0 0.0
      %2316 = vmatprep.subr.mxu0 0.0
      %2317 = vmatpush1.msra.mxu0 0.0
      %2318 = vmatprep.subr.mxu0 0.0
      %2319 = vmatpush1.msra.mxu0 0.0
      %2320 = vmatprep.subr.mxu0 0.0
      %2321 = vmatpush1.msra.mxu0 0.0
      %2322 = vmatprep.subr.mxu0 0.0
      %2323 = vmatpush1.msra.mxu0 0.0
      %2324 = vmatprep.subr.mxu0 0.0
      %2325 = vmatpush1.msra.mxu0 0.0
      %2326 = vmatprep.subr.mxu0 0.0
      %2327 = vmatpush1.msra.mxu0 0.0
      %2328 = vmatprep.subr.mxu0 0.0
      %2329 = vmatpush1.msra.mxu0 0.0
      %2330 = vmatprep.subr.mxu0 0.0
      %2331 = vmatpush1.msra.mxu0 0.0
      %2332 = vmatprep.subr.mxu0 0.0
      %2333 = vmatpush1.msra.mxu0 0.0
      %2334 = vmatprep.subr.mxu0 0.0
      %2335 = vmatpush1.msra.mxu0 0.0
      %2336 = vmatprep.subr.mxu0 0.0
      %2337 = vmatpush1.msra.mxu0 0.0
      %2338 = vmatprep.subr.mxu0 0.0
      %2339 = vmatpush1.msra.mxu0 0.0
      %2340 = vmatprep.subr.mxu0 0.0
      %2341 = vmatpush1.msra.mxu0 0.0
      %2342 = vmatprep.subr.mxu0 0.0
      %2343 = vmatpush1.msra.mxu0 0.0
      %2344 = vmatprep.subr.mxu0 0.0
      %2345 = vmatpush1.msra.mxu0 0.0
      %2346 = vmatprep.subr.mxu0 0.0
      %2347 = vmatpush1.msra.mxu0 0.0
      %2348 = vmatprep.subr.mxu0 0.0
      %2349 = vmatpush1.msra.mxu0 0.0
      %2350 = vmatprep.subr.mxu0 0.0
      %2351 = vmatpush1.msra.mxu0 0.0
      %2352 = vmatprep.subr.mxu0 0.0
      %2353 = vmatpush1.msra.mxu0 0.0
      %2354 = vmatprep.subr.mxu0 0.0
      %2355 = vmatpush1.msra.mxu0 0.0
      %2356 = vmatprep.subr.mxu0 0.0
      %2357 = vmatpush1.msra.mxu0 0.0
      %2358 = vmatprep.mubr.f32.mxu0 0.0
      %2359 = vmatmul.mubr.f32.gmra.mrb[0].mxu0 %v2250
      %v2360 = vpop.f32.mrb[0].mxu0
      %v2361 = vadd.f32 0.0, %v2360
      %v2362 = vpop.f32.mrb[0].mxu0
      %2363 = vmatprep.mubr.f32.mxu0 0.0
      %2364 = vmatmul.mubr.f32.gmra.mrb[0].mxu0 %v2253
      %v2365 = vpop.f32.mrb[0].mxu0
      %v2366 = vadd.f32 0.0, %v2365
      %v2367 = vpop.f32.mrb[0].mxu0
      %2368 = vmatprep.mubr.f32.mxu0 0.0
      %2369 = vmatmul.mubr.f32.gmra.mrb[0].mxu0 %v2256
      %v2370 = vpop.f32.mrb[0].mxu0
      %v2371 = vadd.f32 0.0, %v2370
      %v2372 = vpop.f32.mrb[0].mxu0
      %2373 = vmatprep.mubr.f32.mxu0 0.0
      %2374 = vmatmul.mubr.f32.gmra.mrb[0].mxu0 %v2259
      %v2375 = vpop.f32.mrb[0].mxu0
      %v2376 = vadd.f32 0.0, %v2375
      %v2377 = vpop.f32.mrb[0].mxu0
      %2378 = vmatprep.mubr.f32.mxu0 0.0
      %2379 = vmatmul.mubr.f32.gmra.mrb[0].mxu0 %v2262
      %v2380 = vpop.f32.mrb[0].mxu0
      %v2381 = vadd.f32 0.0, %v2380
      %v2382 = vpop.f32.mrb[0].mxu0
      %2383 = vmatprep.mubr.f32.mxu0 0.0
      %2384 = vmatmul.mubr.f32.gmra.mrb[0].mxu0 %v2265
      %v2385 = vpop.f32.mrb[0].mxu0
      %v2386 = vadd.f32 0.0, %v2385
      %v2387 = vpop.f32.mrb[0].mxu0
      %2388 = vmatprep.mubr.f32.mxu0 0.0
      %2389 = vmatmul.mubr.f32.gmra.mrb[0].mxu0 %v2268
      %v2390 = vpop.f32.mrb[0].mxu0
      %v2391 = vadd.f32 0.0, %v2390
      %v2392 = vpop.f32.mrb[0].mxu0
      %2393 = vmatprep.mubr.f32.mxu0 0.0
      %2394 = vmatmul.mubr.f32.gmra.mrb[0].mxu0 %v2271
      %v2395 = vpop.f32.mrb[0].mxu0
      %v2396 = vadd.f32 0.0, %v2395
      %v2397 = vpop.f32.mrb[0].mxu0
      %2398 = vmatprep.mubr.f32.mxu0 0.0
      %2399 = vmatmul.mubr.f32.gmra.mrb[0].mxu0 %v2274
      %v2400 = vpop.f32.mrb[0].mxu0
      %v2401 = vadd.f32 0.0, %v2400
      %v2402 = vpop.f32.mrb[0].mxu0
      %2403 = vmatprep.mubr.f32.mxu0 0.0
      %2404 = vmatmul.mubr.f32.gmra.mrb[0].mxu0 %v2277
      %v2405 = vpop.f32.mrb[0].mxu0
      %v2406 = vadd.f32 0.0, %v2405
      %v2407 = vpop.f32.mrb[0].mxu0
      %2408 = vmatprep.mubr.f32.mxu0 0.0
      %2409 = vmatmul.mubr.f32.gmra.mrb[0].mxu0 %v2280
      %v2410 = vpop.f32.mrb[0].mxu0
      %v2411 = vadd.f32 0.0, %v2410
      %v2412 = vpop.f32.mrb[0].mxu0
      %2413 = vmatprep.mubr.f32.mxu0 0.0
      %2414 = vmatmul.mubr.f32.gmra.mrb[0].mxu0 %v2283
      %v2415 = vpop.f32.mrb[0].mxu0
      %v2416 = vadd.f32 0.0, %v2415
      %v2417 = vpop.f32.mrb[0].mxu0
      %2418 = vmatprep.mubr.f32.mxu0 0.0
      %2419 = vmatmul.mubr.f32.gmra.mrb[0].mxu0 %v2286
      %v2420 = vpop.f32.mrb[0].mxu0
      %v2421 = vadd.f32 0.0, %v2420
      %v2422 = vpop.f32.mrb[0].mxu0
      %2423 = vmatprep.mubr.f32.mxu0 0.0
      %2424 = vmatmul.mubr.f32.gmra.mrb[0].mxu0 %v2289
      %v2425 = vpop.f32.mrb[0].mxu0
      %v2426 = vadd.f32 0.0, %v2425
      %v2427 = vpop.f32.mrb[0].mxu0
      %2428 = vmatprep.mubr.f32.mxu0 0.0
      %2429 = vmatmul.mubr.f32.gmra.mrb[0].mxu0 %v2292
      %v2430 = vpop.f32.mrb[0].mxu0
      %v2431 = vadd.f32 0.0, %v2430
      %v2432 = vpop.f32.mrb[0].mxu0
      %2433 = vdwg.mxu0
      %2434 = vrot.lane.b32.xlu0 %v2361, 1
      %v2435 = vpop.permute.xlu0 %2434
      %2436 = vrot.lane.b32.xlu0 %v2366, 1
      %v2437 = vpop.permute.xlu0 %2436
      %2438 = vrot.lane.b32.xlu0 %v2371, 1
      %v2439 = vpop.permute.xlu0 %2438
      %2440 = vrot.lane.b32.xlu0 %v2376, 1
      %v2441 = vpop.permute.xlu0 %2440
      %2442 = vrot.lane.b32.xlu0 %v2381, 1
      %v2443 = vpop.permute.xlu0 %2442
      %v2444 = vadd.f32 %v2435, %v2386
      %v2445 = vadd.f32 %v2437, %v2391
      %v2446 = vadd.f32 %v2439, %v2396
      %v2447 = vadd.f32 %v2441, %v2401
      %v2448 = vadd.f32 %v2443, %v2406
      %2449 = vrot.lane.b32.xlu0 %v2411, 127
      %v2450 = vpop.permute.xlu0 %2449
      %2451 = vrot.lane.b32.xlu0 %v2416, 127
      %v2452 = vpop.permute.xlu0 %2451
      %2453 = vrot.lane.b32.xlu0 %v2421, 127
      %v2454 = vpop.permute.xlu0 %2453
      %2455 = vrot.lane.b32.xlu0 %v2426, 127
      %v2456 = vpop.permute.xlu0 %2455
      %2457 = vrot.lane.b32.xlu0 %v2431, 127
      %v2458 = vpop.permute.xlu0 %2457
      %v2459 = vadd.f32 %v2444, %v2450
      %v2460 = vadd.f32 %v2445, %v2452
      %v2461 = vadd.f32 %v2446, %v2454
      %v2462 = vadd.f32 %v2447, %v2456
      %v2463 = vadd.f32 %v2448, %v2458
      %v2464 = vld [vmem:[%s4] sm:$0xff]
      %v2465 = vld [vmem:[%s4 + $0x8] sm:$0xff]
      %v2466 = vld [vmem:[%s4 + $0x10] sm:$0xff]
      %v2467 = vld [vmem:[%s4 + $0x18] sm:$0xff]
      %v2468 = vld [vmem:[%s4 + $0x20] sm:$0xff]
      %v2469 = vld [vmem:[%s4 + $0x28] sm:$0xff]
      %v2470 = vld [vmem:[%s4 + $0x30] sm:$0xff]
      %v2471 = vld [vmem:[%s4 + $0x38] sm:$0xff]
      %v2472 = vld [vmem:[%s4 + $0x40] sm:$0xff]
      %v2473 = vld [vmem:[%s4 + $0x48] sm:$0xff]
      %v2474 = vld [vmem:[%s4 + $0x50] sm:$0xff]
      %v2475 = vld [vmem:[%s4 + $0x58] sm:$0xff]
      %v2476 = vld [vmem:[%s4 + $0x60] sm:$0xff]
      %v2477 = vld [vmem:[%s4 + $0x68] sm:$0xff]
      %v2478 = vld [vmem:[%s4 + $0x70] sm:$0xff]
      %v2479 = vld [vmem:[%s4 + $0x78] sm:$0xff]
      %2480 = vset.pattern.permute.xlu0 6
      %2481 = vperm.xlu0 %2480, %v491
      %v2482 = vpop.permute.xlu0 %2481
      %2484 = vset.pattern.permute.xlu0 6
      %2485 = vperm.xlu0 %2484, %v492
      %v2486 = vpop.permute.xlu0 %2485
      %2488 = vset.pattern.permute.xlu0 6
      %2489 = vperm.xlu0 %2488, %v493
      %v2490 = vpop.permute.xlu0 %2489
      %2492 = vset.pattern.permute.xlu0 6
      %2493 = vperm.xlu0 %2492, %v494
      %v2494 = vpop.permute.xlu0 %2493
      %2496 = vset.pattern.permute.xlu0 6
      %2497 = vperm.xlu0 %2496, %v495
      %v2498 = vpop.permute.xlu0 %2497
      %2500 = vmatprep.subr.mxu0 0.0
      %2501 = vmatpush1.msra.mxu0 %v2464
      %2502 = vmatprep.subr.mxu0 0.0
      %2503 = vmatpush1.msra.mxu0 %v2465
      %2504 = vmatprep.subr.mxu0 0.0
      %2505 = vmatpush1.msra.mxu0 %v2466
      %2506 = vmatprep.subr.mxu0 0.0
      %2507 = vmatpush1.msra.mxu0 %v2467
      %2508 = vmatprep.subr.mxu0 0.0
      %2509 = vmatpush1.msra.mxu0 %v2468
      %2510 = vmatprep.subr.mxu0 0.0
      %2511 = vmatpush1.msra.mxu0 %v2469
      %2512 = vmatprep.subr.mxu0 0.0
      %2513 = vmatpush1.msra.mxu0 %v2470
      %2514 = vmatprep.subr.mxu0 0.0
      %2515 = vmatpush1.msra.mxu0 %v2471
      %2516 = vmatprep.subr.mxu0 0.0
      %2517 = vmatpush1.msra.mxu0 %v2472
      %2518 = vmatprep.subr.mxu0 0.0
      %2519 = vmatpush1.msra.mxu0 %v2473
      %2520 = vmatprep.subr.mxu0 0.0
      %2521 = vmatpush1.msra.mxu0 %v2474
      %2522 = vmatprep.subr.mxu0 0.0
      %2523 = vmatpush1.msra.mxu0 %v2475
      %2524 = vmatprep.subr.mxu0 0.0
      %2525 = vmatpush1.msra.mxu0 %v2476
      %2526 = vmatprep.subr.mxu0 0.0
      %2527 = vmatpush1.msra.mxu0 %v2477
      %2528 = vmatprep.subr.mxu0 0.0
      %2529 = vmatpush1.msra.mxu0 %v2478
      %2530 = vmatprep.subr.mxu0 0.0
      %2531 = vmatpush1.msra.mxu0 %v2479
      %2532 = vmatprep.subr.mxu0 0.0
      %2533 = vmatpush1.msra.mxu0 0.0
      %2534 = vmatprep.subr.mxu0 0.0
      %2535 = vmatpush1.msra.mxu0 0.0
      %2536 = vmatprep.subr.mxu0 0.0
      %2537 = vmatpush1.msra.mxu0 0.0
      %2538 = vmatprep.subr.mxu0 0.0
      %2539 = vmatpush1.msra.mxu0 0.0
      %2540 = vmatprep.subr.mxu0 0.0
      %2541 = vmatpush1.msra.mxu0 0.0
      %2542 = vmatprep.subr.mxu0 0.0
      %2543 = vmatpush1.msra.mxu0 0.0
      %2544 = vmatprep.subr.mxu0 0.0
      %2545 = vmatpush1.msra.mxu0 0.0
      %2546 = vmatprep.subr.mxu0 0.0
      %2547 = vmatpush1.msra.mxu0 0.0
      %2548 = vmatprep.subr.mxu0 0.0
      %2549 = vmatpush1.msra.mxu0 0.0
      %2550 = vmatprep.subr.mxu0 0.0
      %2551 = vmatpush1.msra.mxu0 0.0
      %2552 = vmatprep.subr.mxu0 0.0
      %2553 = vmatpush1.msra.mxu0 0.0
      %2554 = vmatprep.subr.mxu0 0.0
      %2555 = vmatpush1.msra.mxu0 0.0
      %2556 = vmatprep.subr.mxu0 0.0
      %2557 = vmatpush1.msra.mxu0 0.0
      %2558 = vmatprep.subr.mxu0 0.0
      %2559 = vmatpush1.msra.mxu0 0.0
      %2560 = vmatprep.subr.mxu0 0.0
      %2561 = vmatpush1.msra.mxu0 0.0
      %2562 = vmatprep.subr.mxu0 0.0
      %2563 = vmatpush1.msra.mxu0 0.0
      %2564 = vmatprep.mubr.f32.mxu0 0.0
      %2565 = vmatmul.mubr.f32.gmra.mrb[0].mxu0 %v2459
      %v2566 = vpop.f32.mrb[0].mxu0
      %v2567 = vadd.f32 %v2482, %v2566
      %v2568 = vpop.f32.mrb[0].mxu0
      %2569 = vmatprep.mubr.f32.mxu0 0.0
      %2570 = vmatmul.mubr.f32.gmra.mrb[0].mxu0 %v2460
      %v2571 = vpop.f32.mrb[0].mxu0
      %v2572 = vadd.f32 %v2486, %v2571
      %v2573 = vpop.f32.mrb[0].mxu0
      %2574 = vmatprep.mubr.f32.mxu0 0.0
      %2575 = vmatmul.mubr.f32.gmra.mrb[0].mxu0 %v2461
      %v2576 = vpop.f32.mrb[0].mxu0
      %v2577 = vadd.f32 %v2490, %v2576
      %v2578 = vpop.f32.mrb[0].mxu0
      %2579 = vmatprep.mubr.f32.mxu0 0.0
      %2580 = vmatmul.mubr.f32.gmra.mrb[0].mxu0 %v2462
      %v2581 = vpop.f32.mrb[0].mxu0
      %v2582 = vadd.f32 %v2494, %v2581
      %v2583 = vpop.f32.mrb[0].mxu0
      %2584 = vmatprep.mubr.f32.mxu0 0.0
      %2585 = vmatmul.mubr.f32.gmra.mrb[0].mxu0 %v2463
      %v2586 = vpop.f32.mrb[0].mxu0
      %v2587 = vadd.f32 %v2498, %v2586
      %v2588 = vpop.f32.mrb[0].mxu0
      %2589 = vdwg.mxu0
      %vm2590 = vcmp.lt.s32.totalorder %v275, 48
      %v2591 = vmax.f32 %v2567, 0.0
      %v2592 = vmax.f32 %v2572, 0.0
      %v2593 = vmax.f32 %v2577, 0.0
      %v2594 = vmax.f32 %v2582, 0.0
      %v2595 = vmax.f32 %v2587, 0.0
      %v2596 = vsel %vm2590, 1, 0
      %vm2597 = vcmp.eq.s32.totalorder %v2596, 1
      %v2598 = vsel %vm2597, %v2591, 0.0
      %v2599 = vsel %vm2597, %v2592, 0.0
      %v2600 = vsel %vm2597, %v2593, 0.0
      %v2601 = vsel %vm2597, %v2594, 0.0
      %v2602 = vsel %vm2597, %v2595, 0.0
      %s2603 = scalar_lea.vmem %s1, 840
      %v2604 = vld [vmem:[%s2603] sm:$0xff]
      %v2605 = vld [vmem:[%s2603 + $0x8] sm:$0xff]
      %v2606 = vld [vmem:[%s2603 + $0x10] sm:$0xff]
      %v2607 = vld [vmem:[%s2603 + $0x18] sm:$0xff]
      %v2608 = vld [vmem:[%s2603 + $0x20] sm:$0xff]
      %v2609 = vld [vmem:[%s2603 + $0x28] sm:$0xff]
      %v2610 = vld [vmem:[%s2603 + $0x30] sm:$0xff]
      %v2611 = vld [vmem:[%s2603 + $0x38] sm:$0xff]
      %v2612 = vld [vmem:[%s2603 + $0x40] sm:$0xff]
      %v2613 = vld [vmem:[%s2603 + $0x48] sm:$0xff]
      %v2614 = vld [vmem:[%s2603 + $0x50] sm:$0xff]
      %v2615 = vld [vmem:[%s2603 + $0x58] sm:$0xff]
      %v2616 = vld [vmem:[%s2603 + $0x60] sm:$0xff]
      %v2617 = vld [vmem:[%s2603 + $0x68] sm:$0xff]
      %v2618 = vld [vmem:[%s2603 + $0x70] sm:$0xff]
      %v2620 = vsel %vm573, %v2604, 0
      %v2623 = vsel %vm573, %v2605, 0
      %v2626 = vsel %vm573, %v2606, 0
      %v2629 = vsel %vm573, %v2607, 0
      %v2632 = vsel %vm573, %v2608, 0
      %v2635 = vsel %vm573, %v2609, 0
      %v2638 = vsel %vm573, %v2610, 0
      %v2641 = vsel %vm573, %v2611, 0
      %v2644 = vsel %vm573, %v2612, 0
      %v2647 = vsel %vm573, %v2613, 0
      %v2650 = vsel %vm573, %v2614, 0
      %v2653 = vsel %vm573, %v2615, 0
      %v2656 = vsel %vm573, %v2616, 0
      %v2659 = vsel %vm573, %v2617, 0
      %v2662 = vsel %vm573, %v2618, 0
      %2664 = vmatprep.subr.mxu0 0.0
      %2665 = vmatpush1.msra.mxu0 %v2598
      %2666 = vmatprep.subr.mxu0 0.0
      %2667 = vmatpush1.msra.mxu0 %v2599
      %2668 = vmatprep.subr.mxu0 0.0
      %2669 = vmatpush1.msra.mxu0 %v2600
      %2670 = vmatprep.subr.mxu0 0.0
      %2671 = vmatpush1.msra.mxu0 %v2601
      %2672 = vmatprep.subr.mxu0 0.0
      %2673 = vmatpush1.msra.mxu0 %v2602
      %2674 = vmatprep.subr.mxu0 0.0
      %2675 = vmatpush1.msra.mxu0 0.0
      %2676 = vmatprep.subr.mxu0 0.0
      %2677 = vmatpush1.msra.mxu0 0.0
      %2678 = vmatprep.subr.mxu0 0.0
      %2679 = vmatpush1.msra.mxu0 0.0
      %2680 = vmatprep.subr.mxu0 0.0
      %2681 = vmatpush1.msra.mxu0 0.0
      %2682 = vmatprep.subr.mxu0 0.0
      %2683 = vmatpush1.msra.mxu0 0.0
      %2684 = vmatprep.subr.mxu0 0.0
      %2685 = vmatpush1.msra.mxu0 0.0
      %2686 = vmatprep.subr.mxu0 0.0
      %2687 = vmatpush1.msra.mxu0 0.0
      %2688 = vmatprep.subr.mxu0 0.0
      %2689 = vmatpush1.msra.mxu0 0.0
      %2690 = vmatprep.subr.mxu0 0.0
      %2691 = vmatpush1.msra.mxu0 0.0
      %2692 = vmatprep.subr.mxu0 0.0
      %2693 = vmatpush1.msra.mxu0 0.0
      %2694 = vmatprep.subr.mxu0 0.0
      %2695 = vmatpush1.msra.mxu0 0.0
      %2696 = vmatprep.subr.mxu0 0.0
      %2697 = vmatpush1.msra.mxu0 0.0
      %2698 = vmatprep.subr.mxu0 0.0
      %2699 = vmatpush1.msra.mxu0 0.0
      %2700 = vmatprep.subr.mxu0 0.0
      %2701 = vmatpush1.msra.mxu0 0.0
      %2702 = vmatprep.subr.mxu0 0.0
      %2703 = vmatpush1.msra.mxu0 0.0
      %2704 = vmatprep.subr.mxu0 0.0
      %2705 = vmatpush1.msra.mxu0 0.0
      %2706 = vmatprep.subr.mxu0 0.0
      %2707 = vmatpush1.msra.mxu0 0.0
      %2708 = vmatprep.subr.mxu0 0.0
      %2709 = vmatpush1.msra.mxu0 0.0
      %2710 = vmatprep.subr.mxu0 0.0
      %2711 = vmatpush1.msra.mxu0 0.0
      %2712 = vmatprep.subr.mxu0 0.0
      %2713 = vmatpush1.msra.mxu0 0.0
      %2714 = vmatprep.subr.mxu0 0.0
      %2715 = vmatpush1.msra.mxu0 0.0
      %2716 = vmatprep.subr.mxu0 0.0
      %2717 = vmatpush1.msra.mxu0 0.0
      %2718 = vmatprep.subr.mxu0 0.0
      %2719 = vmatpush1.msra.mxu0 0.0
      %2720 = vmatprep.subr.mxu0 0.0
      %2721 = vmatpush1.msra.mxu0 0.0
      %2722 = vmatprep.subr.mxu0 0.0
      %2723 = vmatpush1.msra.mxu0 0.0
      %2724 = vmatprep.subr.mxu0 0.0
      %2725 = vmatpush1.msra.mxu0 0.0
      %2726 = vmatprep.subr.mxu0 0.0
      %2727 = vmatpush1.msra.mxu0 0.0
      %2728 = vmatprep.mubr.f32.mxu0 0.0
      %2729 = vmatmul.mubr.f32.gmra.mrb[0].mxu0 %v2620
      %v2730 = vpop.f32.mrb[0].mxu0
      %v2731 = vadd.f32 0.0, %v2730
      %v2732 = vpop.f32.mrb[0].mxu0
      %2733 = vmatprep.mubr.f32.mxu0 0.0
      %2734 = vmatmul.mubr.f32.gmra.mrb[0].mxu0 %v2623
      %v2735 = vpop.f32.mrb[0].mxu0
      %v2736 = vadd.f32 0.0, %v2735
      %v2737 = vpop.f32.mrb[0].mxu0
      %2738 = vmatprep.mubr.f32.mxu0 0.0
      %2739 = vmatmul.mubr.f32.gmra.mrb[0].mxu0 %v2626
      %v2740 = vpop.f32.mrb[0].mxu0
      %v2741 = vadd.f32 0.0, %v2740
      %v2742 = vpop.f32.mrb[0].mxu0
      %2743 = vmatprep.mubr.f32.mxu0 0.0
      %2744 = vmatmul.mubr.f32.gmra.mrb[0].mxu0 %v2629
      %v2745 = vpop.f32.mrb[0].mxu0
      %v2746 = vadd.f32 0.0, %v2745
      %v2747 = vpop.f32.mrb[0].mxu0
      %2748 = vmatprep.mubr.f32.mxu0 0.0
      %2749 = vmatmul.mubr.f32.gmra.mrb[0].mxu0 %v2632
      %v2750 = vpop.f32.mrb[0].mxu0
      %v2751 = vadd.f32 0.0, %v2750
      %v2752 = vpop.f32.mrb[0].mxu0
      %2753 = vmatprep.mubr.f32.mxu0 0.0
      %2754 = vmatmul.mubr.f32.gmra.mrb[0].mxu0 %v2635
      %v2755 = vpop.f32.mrb[0].mxu0
      %v2756 = vadd.f32 0.0, %v2755
      %v2757 = vpop.f32.mrb[0].mxu0
      %2758 = vmatprep.mubr.f32.mxu0 0.0
      %2759 = vmatmul.mubr.f32.gmra.mrb[0].mxu0 %v2638
      %v2760 = vpop.f32.mrb[0].mxu0
      %v2761 = vadd.f32 0.0, %v2760
      %v2762 = vpop.f32.mrb[0].mxu0
      %2763 = vmatprep.mubr.f32.mxu0 0.0
      %2764 = vmatmul.mubr.f32.gmra.mrb[0].mxu0 %v2641
      %v2765 = vpop.f32.mrb[0].mxu0
      %v2766 = vadd.f32 0.0, %v2765
      %v2767 = vpop.f32.mrb[0].mxu0
      %2768 = vmatprep.mubr.f32.mxu0 0.0
      %2769 = vmatmul.mubr.f32.gmra.mrb[0].mxu0 %v2644
      %v2770 = vpop.f32.mrb[0].mxu0
      %v2771 = vadd.f32 0.0, %v2770
      %v2772 = vpop.f32.mrb[0].mxu0
      %2773 = vmatprep.mubr.f32.mxu0 0.0
      %2774 = vmatmul.mubr.f32.gmra.mrb[0].mxu0 %v2647
      %v2775 = vpop.f32.mrb[0].mxu0
      %v2776 = vadd.f32 0.0, %v2775
      %v2777 = vpop.f32.mrb[0].mxu0
      %2778 = vmatprep.mubr.f32.mxu0 0.0
      %2779 = vmatmul.mubr.f32.gmra.mrb[0].mxu0 %v2650
      %v2780 = vpop.f32.mrb[0].mxu0
      %v2781 = vadd.f32 0.0, %v2780
      %v2782 = vpop.f32.mrb[0].mxu0
      %2783 = vmatprep.mubr.f32.mxu0 0.0
      %2784 = vmatmul.mubr.f32.gmra.mrb[0].mxu0 %v2653
      %v2785 = vpop.f32.mrb[0].mxu0
      %v2786 = vadd.f32 0.0, %v2785
      %v2787 = vpop.f32.mrb[0].mxu0
      %2788 = vmatprep.mubr.f32.mxu0 0.0
      %2789 = vmatmul.mubr.f32.gmra.mrb[0].mxu0 %v2656
      %v2790 = vpop.f32.mrb[0].mxu0
      %v2791 = vadd.f32 0.0, %v2790
      %v2792 = vpop.f32.mrb[0].mxu0
      %2793 = vmatprep.mubr.f32.mxu0 0.0
      %2794 = vmatmul.mubr.f32.gmra.mrb[0].mxu0 %v2659
      %v2795 = vpop.f32.mrb[0].mxu0
      %v2796 = vadd.f32 0.0, %v2795
      %v2797 = vpop.f32.mrb[0].mxu0
      %2798 = vmatprep.mubr.f32.mxu0 0.0
      %2799 = vmatmul.mubr.f32.gmra.mrb[0].mxu0 %v2662
      %v2800 = vpop.f32.mrb[0].mxu0
      %v2801 = vadd.f32 0.0, %v2800
      %v2802 = vpop.f32.mrb[0].mxu0
      %2803 = vdwg.mxu0
      %2804 = vrot.lane.b32.xlu0 %v2731, 1
      %v2805 = vpop.permute.xlu0 %2804
      %2806 = vrot.lane.b32.xlu0 %v2736, 1
      %v2807 = vpop.permute.xlu0 %2806
      %2808 = vrot.lane.b32.xlu0 %v2741, 1
      %v2809 = vpop.permute.xlu0 %2808
      %2810 = vrot.lane.b32.xlu0 %v2746, 1
      %v2811 = vpop.permute.xlu0 %2810
      %2812 = vrot.lane.b32.xlu0 %v2751, 1
      %v2813 = vpop.permute.xlu0 %2812
      %v2814 = vadd.f32 %v2805, %v2756
      %v2815 = vadd.f32 %v2807, %v2761
      %v2816 = vadd.f32 %v2809, %v2766
      %v2817 = vadd.f32 %v2811, %v2771
      %v2818 = vadd.f32 %v2813, %v2776
      %2819 = vrot.lane.b32.xlu0 %v2781, 127
      %v2820 = vpop.permute.xlu0 %2819
      %2821 = vrot.lane.b32.xlu0 %v2786, 127
      %v2822 = vpop.permute.xlu0 %2821
      %2823 = vrot.lane.b32.xlu0 %v2791, 127
      %v2824 = vpop.permute.xlu0 %2823
      %2825 = vrot.lane.b32.xlu0 %v2796, 127
      %v2826 = vpop.permute.xlu0 %2825
      %2827 = vrot.lane.b32.xlu0 %v2801, 127
      %v2828 = vpop.permute.xlu0 %2827
      %v2829 = vadd.f32 %v2814, %v2820
      %v2830 = vadd.f32 %v2815, %v2822
      %v2831 = vadd.f32 %v2816, %v2824
      %v2832 = vadd.f32 %v2817, %v2826
      %v2833 = vadd.f32 %v2818, %v2828
      %2834 = vset.pattern.permute.xlu0 7
      %2835 = vperm.xlu0 %2834, %v491
      %v2836 = vpop.permute.xlu0 %2835
      %2838 = vset.pattern.permute.xlu0 7
      %2839 = vperm.xlu0 %2838, %v492
      %v2840 = vpop.permute.xlu0 %2839
      %2842 = vset.pattern.permute.xlu0 7
      %2843 = vperm.xlu0 %2842, %v493
      %v2844 = vpop.permute.xlu0 %2843
      %2846 = vset.pattern.permute.xlu0 7
      %2847 = vperm.xlu0 %2846, %v494
      %v2848 = vpop.permute.xlu0 %2847
      %2850 = vset.pattern.permute.xlu0 7
      %2851 = vperm.xlu0 %2850, %v495
      %v2852 = vpop.permute.xlu0 %2851
      %v2854 = vadd.f32 %v2829, %v2836
      %v2855 = vadd.f32 %v2830, %v2840
      %v2856 = vadd.f32 %v2831, %v2844
      %v2857 = vadd.f32 %v2832, %v2848
      %v2858 = vadd.f32 %v2833, %v2852
      %v2859 = vmax.f32 %v2854, 0.0
      %v2860 = vmax.f32 %v2855, 0.0
      %v2861 = vmax.f32 %v2856, 0.0
      %v2862 = vmax.f32 %v2857, 0.0
      %v2863 = vmax.f32 %v2858, 0.0
      %v2864 = vsel %vm2597, %v2859, 0.0
      %v2865 = vsel %vm2597, %v2860, 0.0
      %v2866 = vsel %vm2597, %v2861, 0.0
      %v2867 = vsel %vm2597, %v2862, 0.0
      %v2868 = vsel %vm2597, %v2863, 0.0
      %s2869 = scalar_lea.vmem %s1, 960
      %v2870 = vld [vmem:[%s2869] sm:$0xff]
      %v2871 = vld [vmem:[%s2869 + $0x8] sm:$0xff]
      %v2872 = vld [vmem:[%s2869 + $0x10] sm:$0xff]
      %v2873 = vld [vmem:[%s2869 + $0x18] sm:$0xff]
      %v2874 = vld [vmem:[%s2869 + $0x20] sm:$0xff]
      %v2875 = vld [vmem:[%s2869 + $0x28] sm:$0xff]
      %v2876 = vld [vmem:[%s2869 + $0x30] sm:$0xff]
      %v2877 = vld [vmem:[%s2869 + $0x38] sm:$0xff]
      %v2878 = vld [vmem:[%s2869 + $0x40] sm:$0xff]
      %v2879 = vld [vmem:[%s2869 + $0x48] sm:$0xff]
      %v2880 = vld [vmem:[%s2869 + $0x50] sm:$0xff]
      %v2881 = vld [vmem:[%s2869 + $0x58] sm:$0xff]
      %v2882 = vld [vmem:[%s2869 + $0x60] sm:$0xff]
      %v2883 = vld [vmem:[%s2869 + $0x68] sm:$0xff]
      %v2884 = vld [vmem:[%s2869 + $0x70] sm:$0xff]
      %v2886 = vsel %vm573, %v2870, 0
      %v2889 = vsel %vm573, %v2871, 0
      %v2892 = vsel %vm573, %v2872, 0
      %v2895 = vsel %vm573, %v2873, 0
      %v2898 = vsel %vm573, %v2874, 0
      %v2901 = vsel %vm573, %v2875, 0
      %v2904 = vsel %vm573, %v2876, 0
      %v2907 = vsel %vm573, %v2877, 0
      %v2910 = vsel %vm573, %v2878, 0
      %v2913 = vsel %vm573, %v2879, 0
      %v2916 = vsel %vm573, %v2880, 0
      %v2919 = vsel %vm573, %v2881, 0
      %v2922 = vsel %vm573, %v2882, 0
      %v2925 = vsel %vm573, %v2883, 0
      %v2928 = vsel %vm573, %v2884, 0
      %2930 = vmatprep.subr.mxu0 0.0
      %2931 = vmatpush1.msra.mxu0 %v2864
      %2932 = vmatprep.subr.mxu0 0.0
      %2933 = vmatpush1.msra.mxu0 %v2865
      %2934 = vmatprep.subr.mxu0 0.0
      %2935 = vmatpush1.msra.mxu0 %v2866
      %2936 = vmatprep.subr.mxu0 0.0
      %2937 = vmatpush1.msra.mxu0 %v2867
      %2938 = vmatprep.subr.mxu0 0.0
      %2939 = vmatpush1.msra.mxu0 %v2868
      %2940 = vmatprep.subr.mxu0 0.0
      %2941 = vmatpush1.msra.mxu0 0.0
      %2942 = vmatprep.subr.mxu0 0.0
      %2943 = vmatpush1.msra.mxu0 0.0
      %2944 = vmatprep.subr.mxu0 0.0
      %2945 = vmatpush1.msra.mxu0 0.0
      %2946 = vmatprep.subr.mxu0 0.0
      %2947 = vmatpush1.msra.mxu0 0.0
      %2948 = vmatprep.subr.mxu0 0.0
      %2949 = vmatpush1.msra.mxu0 0.0
      %2950 = vmatprep.subr.mxu0 0.0
      %2951 = vmatpush1.msra.mxu0 0.0
      %2952 = vmatprep.subr.mxu0 0.0
      %2953 = vmatpush1.msra.mxu0 0.0
      %2954 = vmatprep.subr.mxu0 0.0
      %2955 = vmatpush1.msra.mxu0 0.0
      %2956 = vmatprep.subr.mxu0 0.0
      %2957 = vmatpush1.msra.mxu0 0.0
      %2958 = vmatprep.subr.mxu0 0.0
      %2959 = vmatpush1.msra.mxu0 0.0
      %2960 = vmatprep.subr.mxu0 0.0
      %2961 = vmatpush1.msra.mxu0 0.0
      %2962 = vmatprep.subr.mxu0 0.0
      %2963 = vmatpush1.msra.mxu0 0.0
      %2964 = vmatprep.subr.mxu0 0.0
      %2965 = vmatpush1.msra.mxu0 0.0
      %2966 = vmatprep.subr.mxu0 0.0
      %2967 = vmatpush1.msra.mxu0 0.0
      %2968 = vmatprep.subr.mxu0 0.0
      %2969 = vmatpush1.msra.mxu0 0.0
      %2970 = vmatprep.subr.mxu0 0.0
      %2971 = vmatpush1.msra.mxu0 0.0
      %2972 = vmatprep.subr.mxu0 0.0
      %2973 = vmatpush1.msra.mxu0 0.0
      %2974 = vmatprep.subr.mxu0 0.0
      %2975 = vmatpush1.msra.mxu0 0.0
      %2976 = vmatprep.subr.mxu0 0.0
      %2977 = vmatpush1.msra.mxu0 0.0
      %2978 = vmatprep.subr.mxu0 0.0
      %2979 = vmatpush1.msra.mxu0 0.0
      %2980 = vmatprep.subr.mxu0 0.0
      %2981 = vmatpush1.msra.mxu0 0.0
      %2982 = vmatprep.subr.mxu0 0.0
      %2983 = vmatpush1.msra.mxu0 0.0
      %2984 = vmatprep.subr.mxu0 0.0
      %2985 = vmatpush1.msra.mxu0 0.0
      %2986 = vmatprep.subr.mxu0 0.0
      %2987 = vmatpush1.msra.mxu0 0.0
      %2988 = vmatprep.subr.mxu0 0.0
      %2989 = vmatpush1.msra.mxu0 0.0
      %2990 = vmatprep.subr.mxu0 0.0
      %2991 = vmatpush1.msra.mxu0 0.0
      %2992 = vmatprep.subr.mxu0 0.0
      %2993 = vmatpush1.msra.mxu0 0.0
      %2994 = vmatprep.mubr.f32.mxu0 0.0
      %2995 = vmatmul.mubr.f32.gmra.mrb[0].mxu0 %v2886
      %v2996 = vpop.f32.mrb[0].mxu0
      %v2997 = vadd.f32 0.0, %v2996
      %v2998 = vpop.f32.mrb[0].mxu0
      %2999 = vmatprep.mubr.f32.mxu0 0.0
      %3000 = vmatmul.mubr.f32.gmra.mrb[0].mxu0 %v2889
      %v3001 = vpop.f32.mrb[0].mxu0
      %v3002 = vadd.f32 0.0, %v3001
      %v3003 = vpop.f32.mrb[0].mxu0
      %3004 = vmatprep.mubr.f32.mxu0 0.0
      %3005 = vmatmul.mubr.f32.gmra.mrb[0].mxu0 %v2892
      %v3006 = vpop.f32.mrb[0].mxu0
      %v3007 = vadd.f32 0.0, %v3006
      %v3008 = vpop.f32.mrb[0].mxu0
      %3009 = vmatprep.mubr.f32.mxu0 0.0
      %3010 = vmatmul.mubr.f32.gmra.mrb[0].mxu0 %v2895
      %v3011 = vpop.f32.mrb[0].mxu0
      %v3012 = vadd.f32 0.0, %v3011
      %v3013 = vpop.f32.mrb[0].mxu0
      %3014 = vmatprep.mubr.f32.mxu0 0.0
      %3015 = vmatmul.mubr.f32.gmra.mrb[0].mxu0 %v2898
      %v3016 = vpop.f32.mrb[0].mxu0
      %v3017 = vadd.f32 0.0, %v3016
      %v3018 = vpop.f32.mrb[0].mxu0
      %3019 = vmatprep.mubr.f32.mxu0 0.0
      %3020 = vmatmul.mubr.f32.gmra.mrb[0].mxu0 %v2901
      %v3021 = vpop.f32.mrb[0].mxu0
      %v3022 = vadd.f32 0.0, %v3021
      %v3023 = vpop.f32.mrb[0].mxu0
      %3024 = vmatprep.mubr.f32.mxu0 0.0
      %3025 = vmatmul.mubr.f32.gmra.mrb[0].mxu0 %v2904
      %v3026 = vpop.f32.mrb[0].mxu0
      %v3027 = vadd.f32 0.0, %v3026
      %v3028 = vpop.f32.mrb[0].mxu0
      %3029 = vmatprep.mubr.f32.mxu0 0.0
      %3030 = vmatmul.mubr.f32.gmra.mrb[0].mxu0 %v2907
      %v3031 = vpop.f32.mrb[0].mxu0
      %v3032 = vadd.f32 0.0, %v3031
      %v3033 = vpop.f32.mrb[0].mxu0
      %3034 = vmatprep.mubr.f32.mxu0 0.0
      %3035 = vmatmul.mubr.f32.gmra.mrb[0].mxu0 %v2910
      %v3036 = vpop.f32.mrb[0].mxu0
      %v3037 = vadd.f32 0.0, %v3036
      %v3038 = vpop.f32.mrb[0].mxu0
      %3039 = vmatprep.mubr.f32.mxu0 0.0
      %3040 = vmatmul.mubr.f32.gmra.mrb[0].mxu0 %v2913
      %v3041 = vpop.f32.mrb[0].mxu0
      %v3042 = vadd.f32 0.0, %v3041
      %v3043 = vpop.f32.mrb[0].mxu0
      %3044 = vmatprep.mubr.f32.mxu0 0.0
      %3045 = vmatmul.mubr.f32.gmra.mrb[0].mxu0 %v2916
      %v3046 = vpop.f32.mrb[0].mxu0
      %v3047 = vadd.f32 0.0, %v3046
      %v3048 = vpop.f32.mrb[0].mxu0
      %3049 = vmatprep.mubr.f32.mxu0 0.0
      %3050 = vmatmul.mubr.f32.gmra.mrb[0].mxu0 %v2919
      %v3051 = vpop.f32.mrb[0].mxu0
      %v3052 = vadd.f32 0.0, %v3051
      %v3053 = vpop.f32.mrb[0].mxu0
      %3054 = vmatprep.mubr.f32.mxu0 0.0
      %3055 = vmatmul.mubr.f32.gmra.mrb[0].mxu0 %v2922
      %v3056 = vpop.f32.mrb[0].mxu0
      %v3057 = vadd.f32 0.0, %v3056
      %v3058 = vpop.f32.mrb[0].mxu0
      %3059 = vmatprep.mubr.f32.mxu0 0.0
      %3060 = vmatmul.mubr.f32.gmra.mrb[0].mxu0 %v2925
      %v3061 = vpop.f32.mrb[0].mxu0
      %v3062 = vadd.f32 0.0, %v3061
      %v3063 = vpop.f32.mrb[0].mxu0
      %3064 = vmatprep.mubr.f32.mxu0 0.0
      %3065 = vmatmul.mubr.f32.gmra.mrb[0].mxu0 %v2928
      %v3066 = vpop.f32.mrb[0].mxu0
      %v3067 = vadd.f32 0.0, %v3066
      %v3068 = vpop.f32.mrb[0].mxu0
      %3069 = vdwg.mxu0
      %3070 = vrot.lane.b32.xlu0 %v2997, 1
      %v3071 = vpop.permute.xlu0 %3070
      %3072 = vrot.lane.b32.xlu0 %v3002, 1
      %v3073 = vpop.permute.xlu0 %3072
      %3074 = vrot.lane.b32.xlu0 %v3007, 1
      %v3075 = vpop.permute.xlu0 %3074
      %3076 = vrot.lane.b32.xlu0 %v3012, 1
      %v3077 = vpop.permute.xlu0 %3076
      %3078 = vrot.lane.b32.xlu0 %v3017, 1
      %v3079 = vpop.permute.xlu0 %3078
      %v3080 = vadd.f32 %v3071, %v3022
      %v3081 = vadd.f32 %v3073, %v3027
      %v3082 = vadd.f32 %v3075, %v3032
      %v3083 = vadd.f32 %v3077, %v3037
      %v3084 = vadd.f32 %v3079, %v3042
      %3085 = vrot.lane.b32.xlu0 %v3047, 127
      %v3086 = vpop.permute.xlu0 %3085
      %3087 = vrot.lane.b32.xlu0 %v3052, 127
      %v3088 = vpop.permute.xlu0 %3087
      %3089 = vrot.lane.b32.xlu0 %v3057, 127
      %v3090 = vpop.permute.xlu0 %3089
      %3091 = vrot.lane.b32.xlu0 %v3062, 127
      %v3092 = vpop.permute.xlu0 %3091
      %3093 = vrot.lane.b32.xlu0 %v3067, 127
      %v3094 = vpop.permute.xlu0 %3093
      %v3095 = vadd.f32 %v3080, %v3086
      %v3096 = vadd.f32 %v3081, %v3088
      %v3097 = vadd.f32 %v3082, %v3090
      %v3098 = vadd.f32 %v3083, %v3092
      %v3099 = vadd.f32 %v3084, %v3094
      %3100 = vset.pattern.permute.xlu0 8
      %3101 = vperm.xlu0 %3100, %v491
      %v3102 = vpop.permute.xlu0 %3101
      %3104 = vset.pattern.permute.xlu0 8
      %3105 = vperm.xlu0 %3104, %v492
      %v3106 = vpop.permute.xlu0 %3105
      %3108 = vset.pattern.permute.xlu0 8
      %3109 = vperm.xlu0 %3108, %v493
      %v3110 = vpop.permute.xlu0 %3109
      %3112 = vset.pattern.permute.xlu0 8
      %3113 = vperm.xlu0 %3112, %v494
      %v3114 = vpop.permute.xlu0 %3113
      %3116 = vset.pattern.permute.xlu0 8
      %3117 = vperm.xlu0 %3116, %v495
      %v3118 = vpop.permute.xlu0 %3117
      %v3120 = vadd.f32 %v3095, %v3102
      %v3121 = vadd.f32 %v3096, %v3106
      %v3122 = vadd.f32 %v3097, %v3110
      %v3123 = vadd.f32 %v3098, %v3114
      %v3124 = vadd.f32 %v3099, %v3118
      %v3125 = vmax.f32 %v3120, 0.0
      %v3126 = vmax.f32 %v3121, 0.0
      %v3127 = vmax.f32 %v3122, 0.0
      %v3128 = vmax.f32 %v3123, 0.0
      %v3129 = vmax.f32 %v3124, 0.0
      %v3130 = vsel %vm2597, %v3125, 0.0
      %v3131 = vsel %vm2597, %v3126, 0.0
      %v3132 = vsel %vm2597, %v3127, 0.0
      %v3133 = vsel %vm2597, %v3128, 0.0
      %v3134 = vsel %vm2597, %v3129, 0.0
      %s3135 = scalar_lea.vmem %s1, 1080
      %v3136 = vld [vmem:[%s3135] sm:$0xff]
      %v3137 = vld [vmem:[%s3135 + $0x8] sm:$0xff]
      %v3138 = vld [vmem:[%s3135 + $0x10] sm:$0xff]
      %v3139 = vld [vmem:[%s3135 + $0x18] sm:$0xff]
      %v3140 = vld [vmem:[%s3135 + $0x20] sm:$0xff]
      %v3141 = vld [vmem:[%s3135 + $0x28] sm:$0xff]
      %v3142 = vld [vmem:[%s3135 + $0x30] sm:$0xff]
      %v3143 = vld [vmem:[%s3135 + $0x38] sm:$0xff]
      %v3144 = vld [vmem:[%s3135 + $0x40] sm:$0xff]
      %v3145 = vld [vmem:[%s3135 + $0x48] sm:$0xff]
      %v3146 = vld [vmem:[%s3135 + $0x50] sm:$0xff]
      %v3147 = vld [vmem:[%s3135 + $0x58] sm:$0xff]
      %v3148 = vld [vmem:[%s3135 + $0x60] sm:$0xff]
      %v3149 = vld [vmem:[%s3135 + $0x68] sm:$0xff]
      %v3150 = vld [vmem:[%s3135 + $0x70] sm:$0xff]
      %v3152 = vsel %vm573, %v3136, 0
      %v3155 = vsel %vm573, %v3137, 0
      %v3158 = vsel %vm573, %v3138, 0
      %v3161 = vsel %vm573, %v3139, 0
      %v3164 = vsel %vm573, %v3140, 0
      %v3167 = vsel %vm573, %v3141, 0
      %v3170 = vsel %vm573, %v3142, 0
      %v3173 = vsel %vm573, %v3143, 0
      %v3176 = vsel %vm573, %v3144, 0
      %v3179 = vsel %vm573, %v3145, 0
      %v3182 = vsel %vm573, %v3146, 0
      %v3185 = vsel %vm573, %v3147, 0
      %v3188 = vsel %vm573, %v3148, 0
      %v3191 = vsel %vm573, %v3149, 0
      %v3194 = vsel %vm573, %v3150, 0
      %3196 = vmatprep.subr.mxu0 0.0
      %3197 = vmatpush1.msra.mxu0 %v3130
      %3198 = vmatprep.subr.mxu0 0.0
      %3199 = vmatpush1.msra.mxu0 %v3131
      %3200 = vmatprep.subr.mxu0 0.0
      %3201 = vmatpush1.msra.mxu0 %v3132
      %3202 = vmatprep.subr.mxu0 0.0
      %3203 = vmatpush1.msra.mxu0 %v3133
      %3204 = vmatprep.subr.mxu0 0.0
      %3205 = vmatpush1.msra.mxu0 %v3134
      %3206 = vmatprep.subr.mxu0 0.0
      %3207 = vmatpush1.msra.mxu0 0.0
      %3208 = vmatprep.subr.mxu0 0.0
      %3209 = vmatpush1.msra.mxu0 0.0
      %3210 = vmatprep.subr.mxu0 0.0
      %3211 = vmatpush1.msra.mxu0 0.0
      %3212 = vmatprep.subr.mxu0 0.0
      %3213 = vmatpush1.msra.mxu0 0.0
      %3214 = vmatprep.subr.mxu0 0.0
      %3215 = vmatpush1.msra.mxu0 0.0
      %3216 = vmatprep.subr.mxu0 0.0
      %3217 = vmatpush1.msra.mxu0 0.0
      %3218 = vmatprep.subr.mxu0 0.0
      %3219 = vmatpush1.msra.mxu0 0.0
      %3220 = vmatprep.subr.mxu0 0.0
      %3221 = vmatpush1.msra.mxu0 0.0
      %3222 = vmatprep.subr.mxu0 0.0
      %3223 = vmatpush1.msra.mxu0 0.0
      %3224 = vmatprep.subr.mxu0 0.0
      %3225 = vmatpush1.msra.mxu0 0.0
      %3226 = vmatprep.subr.mxu0 0.0
      %3227 = vmatpush1.msra.mxu0 0.0
      %3228 = vmatprep.subr.mxu0 0.0
      %3229 = vmatpush1.msra.mxu0 0.0
      %3230 = vmatprep.subr.mxu0 0.0
      %3231 = vmatpush1.msra.mxu0 0.0
      %3232 = vmatprep.subr.mxu0 0.0
      %3233 = vmatpush1.msra.mxu0 0.0
      %3234 = vmatprep.subr.mxu0 0.0
      %3235 = vmatpush1.msra.mxu0 0.0
      %3236 = vmatprep.subr.mxu0 0.0
      %3237 = vmatpush1.msra.mxu0 0.0
      %3238 = vmatprep.subr.mxu0 0.0
      %3239 = vmatpush1.msra.mxu0 0.0
      %3240 = vmatprep.subr.mxu0 0.0
      %3241 = vmatpush1.msra.mxu0 0.0
      %3242 = vmatprep.subr.mxu0 0.0
      %3243 = vmatpush1.msra.mxu0 0.0
      %3244 = vmatprep.subr.mxu0 0.0
      %3245 = vmatpush1.msra.mxu0 0.0
      %3246 = vmatprep.subr.mxu0 0.0
      %3247 = vmatpush1.msra.mxu0 0.0
      %3248 = vmatprep.subr.mxu0 0.0
      %3249 = vmatpush1.msra.mxu0 0.0
      %3250 = vmatprep.subr.mxu0 0.0
      %3251 = vmatpush1.msra.mxu0 0.0
      %3252 = vmatprep.subr.mxu0 0.0
      %3253 = vmatpush1.msra.mxu0 0.0
      %3254 = vmatprep.subr.mxu0 0.0
      %3255 = vmatpush1.msra.mxu0 0.0
      %3256 = vmatprep.subr.mxu0 0.0
      %3257 = vmatpush1.msra.mxu0 0.0
      %3258 = vmatprep.subr.mxu0 0.0
      %3259 = vmatpush1.msra.mxu0 0.0
      %3260 = vmatprep.mubr.f32.mxu0 0.0
      %3261 = vmatmul.mubr.f32.gmra.mrb[0].mxu0 %v3152
      %v3262 = vpop.f32.mrb[0].mxu0
      %v3263 = vadd.f32 0.0, %v3262
      %v3264 = vpop.f32.mrb[0].mxu0
      %3265 = vmatprep.mubr.f32.mxu0 0.0
      %3266 = vmatmul.mubr.f32.gmra.mrb[0].mxu0 %v3155
      %v3267 = vpop.f32.mrb[0].mxu0
      %v3268 = vadd.f32 0.0, %v3267
      %v3269 = vpop.f32.mrb[0].mxu0
      %3270 = vmatprep.mubr.f32.mxu0 0.0
      %3271 = vmatmul.mubr.f32.gmra.mrb[0].mxu0 %v3158
      %v3272 = vpop.f32.mrb[0].mxu0
      %v3273 = vadd.f32 0.0, %v3272
      %v3274 = vpop.f32.mrb[0].mxu0
      %3275 = vmatprep.mubr.f32.mxu0 0.0
      %3276 = vmatmul.mubr.f32.gmra.mrb[0].mxu0 %v3161
      %v3277 = vpop.f32.mrb[0].mxu0
      %v3278 = vadd.f32 0.0, %v3277
      %v3279 = vpop.f32.mrb[0].mxu0
      %3280 = vmatprep.mubr.f32.mxu0 0.0
      %3281 = vmatmul.mubr.f32.gmra.mrb[0].mxu0 %v3164
      %v3282 = vpop.f32.mrb[0].mxu0
      %v3283 = vadd.f32 0.0, %v3282
      %v3284 = vpop.f32.mrb[0].mxu0
      %3285 = vmatprep.mubr.f32.mxu0 0.0
      %3286 = vmatmul.mubr.f32.gmra.mrb[0].mxu0 %v3167
      %v3287 = vpop.f32.mrb[0].mxu0
      %v3288 = vadd.f32 0.0, %v3287
      %v3289 = vpop.f32.mrb[0].mxu0
      %3290 = vmatprep.mubr.f32.mxu0 0.0
      %3291 = vmatmul.mubr.f32.gmra.mrb[0].mxu0 %v3170
      %v3292 = vpop.f32.mrb[0].mxu0
      %v3293 = vadd.f32 0.0, %v3292
      %v3294 = vpop.f32.mrb[0].mxu0
      %3295 = vmatprep.mubr.f32.mxu0 0.0
      %3296 = vmatmul.mubr.f32.gmra.mrb[0].mxu0 %v3173
      %v3297 = vpop.f32.mrb[0].mxu0
      %v3298 = vadd.f32 0.0, %v3297
      %v3299 = vpop.f32.mrb[0].mxu0
      %3300 = vmatprep.mubr.f32.mxu0 0.0
      %3301 = vmatmul.mubr.f32.gmra.mrb[0].mxu0 %v3176
      %v3302 = vpop.f32.mrb[0].mxu0
      %v3303 = vadd.f32 0.0, %v3302
      %v3304 = vpop.f32.mrb[0].mxu0
      %3305 = vmatprep.mubr.f32.mxu0 0.0
      %3306 = vmatmul.mubr.f32.gmra.mrb[0].mxu0 %v3179
      %v3307 = vpop.f32.mrb[0].mxu0
      %v3308 = vadd.f32 0.0, %v3307
      %v3309 = vpop.f32.mrb[0].mxu0
      %3310 = vmatprep.mubr.f32.mxu0 0.0
      %3311 = vmatmul.mubr.f32.gmra.mrb[0].mxu0 %v3182
      %v3312 = vpop.f32.mrb[0].mxu0
      %v3313 = vadd.f32 0.0, %v3312
      %v3314 = vpop.f32.mrb[0].mxu0
      %3315 = vmatprep.mubr.f32.mxu0 0.0
      %3316 = vmatmul.mubr.f32.gmra.mrb[0].mxu0 %v3185
      %v3317 = vpop.f32.mrb[0].mxu0
      %v3318 = vadd.f32 0.0, %v3317
      %v3319 = vpop.f32.mrb[0].mxu0
      %3320 = vmatprep.mubr.f32.mxu0 0.0
      %3321 = vmatmul.mubr.f32.gmra.mrb[0].mxu0 %v3188
      %v3322 = vpop.f32.mrb[0].mxu0
      %v3323 = vadd.f32 0.0, %v3322
      %v3324 = vpop.f32.mrb[0].mxu0
      %3325 = vmatprep.mubr.f32.mxu0 0.0
      %3326 = vmatmul.mubr.f32.gmra.mrb[0].mxu0 %v3191
      %v3327 = vpop.f32.mrb[0].mxu0
      %v3328 = vadd.f32 0.0, %v3327
      %v3329 = vpop.f32.mrb[0].mxu0
      %3330 = vmatprep.mubr.f32.mxu0 0.0
      %3331 = vmatmul.mubr.f32.gmra.mrb[0].mxu0 %v3194
      %v3332 = vpop.f32.mrb[0].mxu0
      %v3333 = vadd.f32 0.0, %v3332
      %v3334 = vpop.f32.mrb[0].mxu0
      %3335 = vdwg.mxu0
      %3336 = vrot.lane.b32.xlu0 %v3263, 1
      %v3337 = vpop.permute.xlu0 %3336
      %3338 = vrot.lane.b32.xlu0 %v3268, 1
      %v3339 = vpop.permute.xlu0 %3338
      %3340 = vrot.lane.b32.xlu0 %v3273, 1
      %v3341 = vpop.permute.xlu0 %3340
      %3342 = vrot.lane.b32.xlu0 %v3278, 1
      %v3343 = vpop.permute.xlu0 %3342
      %3344 = vrot.lane.b32.xlu0 %v3283, 1
      %v3345 = vpop.permute.xlu0 %3344
      %v3346 = vadd.f32 %v3337, %v3288
      %v3347 = vadd.f32 %v3339, %v3293
      %v3348 = vadd.f32 %v3341, %v3298
      %v3349 = vadd.f32 %v3343, %v3303
      %v3350 = vadd.f32 %v3345, %v3308
      %3351 = vrot.lane.b32.xlu0 %v3313, 127
      %v3352 = vpop.permute.xlu0 %3351
      %3353 = vrot.lane.b32.xlu0 %v3318, 127
      %v3354 = vpop.permute.xlu0 %3353
      %3355 = vrot.lane.b32.xlu0 %v3323, 127
      %v3356 = vpop.permute.xlu0 %3355
      %3357 = vrot.lane.b32.xlu0 %v3328, 127
      %v3358 = vpop.permute.xlu0 %3357
      %3359 = vrot.lane.b32.xlu0 %v3333, 127
      %v3360 = vpop.permute.xlu0 %3359
      %v3361 = vadd.f32 %v3346, %v3352
      %v3362 = vadd.f32 %v3347, %v3354
      %v3363 = vadd.f32 %v3348, %v3356
      %v3364 = vadd.f32 %v3349, %v3358
      %v3365 = vadd.f32 %v3350, %v3360
      %3366 = vset.pattern.permute.xlu0 9
      %3367 = vperm.xlu0 %3366, %v491
      %v3368 = vpop.permute.xlu0 %3367
      %3370 = vset.pattern.permute.xlu0 9
      %3371 = vperm.xlu0 %3370, %v492
      %v3372 = vpop.permute.xlu0 %3371
      %3374 = vset.pattern.permute.xlu0 9
      %3375 = vperm.xlu0 %3374, %v493
      %v3376 = vpop.permute.xlu0 %3375
      %3378 = vset.pattern.permute.xlu0 9
      %3379 = vperm.xlu0 %3378, %v494
      %v3380 = vpop.permute.xlu0 %3379
      %3382 = vset.pattern.permute.xlu0 9
      %3383 = vperm.xlu0 %3382, %v495
      %v3384 = vpop.permute.xlu0 %3383
      %3386 = vmatprep.subr.mxu0 0.0
      %3387 = vmatpush1.msra.mxu0 %v2464
      %3388 = vmatprep.subr.mxu0 0.0
      %3389 = vmatpush1.msra.mxu0 %v2465
      %3390 = vmatprep.subr.mxu0 0.0
      %3391 = vmatpush1.msra.mxu0 %v2466
      %3392 = vmatprep.subr.mxu0 0.0
      %3393 = vmatpush1.msra.mxu0 %v2467
      %3394 = vmatprep.subr.mxu0 0.0
      %3395 = vmatpush1.msra.mxu0 %v2468
      %3396 = vmatprep.subr.mxu0 0.0
      %3397 = vmatpush1.msra.mxu0 %v2469
      %3398 = vmatprep.subr.mxu0 0.0
      %3399 = vmatpush1.msra.mxu0 %v2470
      %3400 = vmatprep.subr.mxu0 0.0
      %3401 = vmatpush1.msra.mxu0 %v2471
      %3402 = vmatprep.subr.mxu0 0.0
      %3403 = vmatpush1.msra.mxu0 %v2472
      %3404 = vmatprep.subr.mxu0 0.0
      %3405 = vmatpush1.msra.mxu0 %v2473
      %3406 = vmatprep.subr.mxu0 0.0
      %3407 = vmatpush1.msra.mxu0 %v2474
      %3408 = vmatprep.subr.mxu0 0.0
      %3409 = vmatpush1.msra.mxu0 %v2475
      %3410 = vmatprep.subr.mxu0 0.0
      %3411 = vmatpush1.msra.mxu0 %v2476
      %3412 = vmatprep.subr.mxu0 0.0
      %3413 = vmatpush1.msra.mxu0 %v2477
      %3414 = vmatprep.subr.mxu0 0.0
      %3415 = vmatpush1.msra.mxu0 %v2478
      %3416 = vmatprep.subr.mxu0 0.0
      %3417 = vmatpush1.msra.mxu0 %v2479
      %3418 = vmatprep.subr.mxu0 0.0
      %3419 = vmatpush1.msra.mxu0 0.0
      %3420 = vmatprep.subr.mxu0 0.0
      %3421 = vmatpush1.msra.mxu0 0.0
      %3422 = vmatprep.subr.mxu0 0.0
      %3423 = vmatpush1.msra.mxu0 0.0
      %3424 = vmatprep.subr.mxu0 0.0
      %3425 = vmatpush1.msra.mxu0 0.0
      %3426 = vmatprep.subr.mxu0 0.0
      %3427 = vmatpush1.msra.mxu0 0.0
      %3428 = vmatprep.subr.mxu0 0.0
      %3429 = vmatpush1.msra.mxu0 0.0
      %3430 = vmatprep.subr.mxu0 0.0
      %3431 = vmatpush1.msra.mxu0 0.0
      %3432 = vmatprep.subr.mxu0 0.0
      %3433 = vmatpush1.msra.mxu0 0.0
      %3434 = vmatprep.subr.mxu0 0.0
      %3435 = vmatpush1.msra.mxu0 0.0
      %3436 = vmatprep.subr.mxu0 0.0
      %3437 = vmatpush1.msra.mxu0 0.0
      %3438 = vmatprep.subr.mxu0 0.0
      %3439 = vmatpush1.msra.mxu0 0.0
      %3440 = vmatprep.subr.mxu0 0.0
      %3441 = vmatpush1.msra.mxu0 0.0
      %3442 = vmatprep.subr.mxu0 0.0
      %3443 = vmatpush1.msra.mxu0 0.0
      %3444 = vmatprep.subr.mxu0 0.0
      %3445 = vmatpush1.msra.mxu0 0.0
      %3446 = vmatprep.subr.mxu0 0.0
      %3447 = vmatpush1.msra.mxu0 0.0
      %3448 = vmatprep.subr.mxu0 0.0
      %3449 = vmatpush1.msra.mxu0 0.0
      %3450 = vmatprep.mubr.f32.mxu0 0.0
      %3451 = vmatmul.mubr.f32.gmra.mrb[0].mxu0 %v3361
      %v3452 = vpop.f32.mrb[0].mxu0
      %v3453 = vadd.f32 %v3368, %v3452
      %v3454 = vpop.f32.mrb[0].mxu0
      %3455 = vmatprep.mubr.f32.mxu0 0.0
      %3456 = vmatmul.mubr.f32.gmra.mrb[0].mxu0 %v3362
      %v3457 = vpop.f32.mrb[0].mxu0
      %v3458 = vadd.f32 %v3372, %v3457
      %v3459 = vpop.f32.mrb[0].mxu0
      %3460 = vmatprep.mubr.f32.mxu0 0.0
      %3461 = vmatmul.mubr.f32.gmra.mrb[0].mxu0 %v3363
      %v3462 = vpop.f32.mrb[0].mxu0
      %v3463 = vadd.f32 %v3376, %v3462
      %v3464 = vpop.f32.mrb[0].mxu0
      %3465 = vmatprep.mubr.f32.mxu0 0.0
      %3466 = vmatmul.mubr.f32.gmra.mrb[0].mxu0 %v3364
      %v3467 = vpop.f32.mrb[0].mxu0
      %v3468 = vadd.f32 %v3380, %v3467
      %v3469 = vpop.f32.mrb[0].mxu0
      %3470 = vmatprep.mubr.f32.mxu0 0.0
      %3471 = vmatmul.mubr.f32.gmra.mrb[0].mxu0 %v3365
      %v3472 = vpop.f32.mrb[0].mxu0
      %v3473 = vadd.f32 %v3384, %v3472
      %v3474 = vpop.f32.mrb[0].mxu0
      %3475 = vdwg.mxu0
      %vm3476 = vcmp.lt.s32.totalorder %v275, 24
      %v3477 = vmax.f32 %v3453, 0.0
      %v3478 = vmax.f32 %v3458, 0.0
      %v3479 = vmax.f32 %v3463, 0.0
      %v3480 = vmax.f32 %v3468, 0.0
      %v3481 = vmax.f32 %v3473, 0.0
      %v3482 = vsel %vm3476, 1, 0
      %vm3483 = vcmp.eq.s32.totalorder %v3482, 1
      %v3484 = vsel %vm3483, %v3477, 0.0
      %v3485 = vsel %vm3483, %v3478, 0.0
      %v3486 = vsel %vm3483, %v3479, 0.0
      %v3487 = vsel %vm3483, %v3480, 0.0
      %v3488 = vsel %vm3483, %v3481, 0.0
      %s3489 = scalar_lea.vmem %s1, 1200
      %v3490 = vld [vmem:[%s3489] sm:$0xff]
      %v3491 = vld [vmem:[%s3489 + $0x8] sm:$0xff]
      %v3492 = vld [vmem:[%s3489 + $0x10] sm:$0xff]
      %v3493 = vld [vmem:[%s3489 + $0x18] sm:$0xff]
      %v3494 = vld [vmem:[%s3489 + $0x20] sm:$0xff]
      %v3495 = vld [vmem:[%s3489 + $0x28] sm:$0xff]
      %v3496 = vld [vmem:[%s3489 + $0x30] sm:$0xff]
      %v3497 = vld [vmem:[%s3489 + $0x38] sm:$0xff]
      %v3498 = vld [vmem:[%s3489 + $0x40] sm:$0xff]
      %v3499 = vld [vmem:[%s3489 + $0x48] sm:$0xff]
      %v3500 = vld [vmem:[%s3489 + $0x50] sm:$0xff]
      %v3501 = vld [vmem:[%s3489 + $0x58] sm:$0xff]
      %v3502 = vld [vmem:[%s3489 + $0x60] sm:$0xff]
      %v3503 = vld [vmem:[%s3489 + $0x68] sm:$0xff]
      %v3504 = vld [vmem:[%s3489 + $0x70] sm:$0xff]
      %v3506 = vsel %vm573, %v3490, 0
      %v3509 = vsel %vm573, %v3491, 0
      %v3512 = vsel %vm573, %v3492, 0
      %v3515 = vsel %vm573, %v3493, 0
      %v3518 = vsel %vm573, %v3494, 0
      %v3521 = vsel %vm573, %v3495, 0
      %v3524 = vsel %vm573, %v3496, 0
      %v3527 = vsel %vm573, %v3497, 0
      %v3530 = vsel %vm573, %v3498, 0
      %v3533 = vsel %vm573, %v3499, 0
      %v3536 = vsel %vm573, %v3500, 0
      %v3539 = vsel %vm573, %v3501, 0
      %v3542 = vsel %vm573, %v3502, 0
      %v3545 = vsel %vm573, %v3503, 0
      %v3548 = vsel %vm573, %v3504, 0
      %3550 = vmatprep.subr.mxu0 0.0
      %3551 = vmatpush1.msra.mxu0 %v3484
      %3552 = vmatprep.subr.mxu0 0.0
      %3553 = vmatpush1.msra.mxu0 %v3485
      %3554 = vmatprep.subr.mxu0 0.0
      %3555 = vmatpush1.msra.mxu0 %v3486
      %3556 = vmatprep.subr.mxu0 0.0
      %3557 = vmatpush1.msra.mxu0 %v3487
      %3558 = vmatprep.subr.mxu0 0.0
      %3559 = vmatpush1.msra.mxu0 %v3488
      %3560 = vmatprep.subr.mxu0 0.0
      %3561 = vmatpush1.msra.mxu0 0.0
      %3562 = vmatprep.subr.mxu0 0.0
      %3563 = vmatpush1.msra.mxu0 0.0
      %3564 = vmatprep.subr.mxu0 0.0
      %3565 = vmatpush1.msra.mxu0 0.0
      %3566 = vmatprep.subr.mxu0 0.0
      %3567 = vmatpush1.msra.mxu0 0.0
      %3568 = vmatprep.subr.mxu0 0.0
      %3569 = vmatpush1.msra.mxu0 0.0
      %3570 = vmatprep.subr.mxu0 0.0
      %3571 = vmatpush1.msra.mxu0 0.0
      %3572 = vmatprep.subr.mxu0 0.0
      %3573 = vmatpush1.msra.mxu0 0.0
      %3574 = vmatprep.subr.mxu0 0.0
      %3575 = vmatpush1.msra.mxu0 0.0
      %3576 = vmatprep.subr.mxu0 0.0
      %3577 = vmatpush1.msra.mxu0 0.0
      %3578 = vmatprep.subr.mxu0 0.0
      %3579 = vmatpush1.msra.mxu0 0.0
      %3580 = vmatprep.subr.mxu0 0.0
      %3581 = vmatpush1.msra.mxu0 0.0
      %3582 = vmatprep.subr.mxu0 0.0
      %3583 = vmatpush1.msra.mxu0 0.0
      %3584 = vmatprep.subr.mxu0 0.0
      %3585 = vmatpush1.msra.mxu0 0.0
      %3586 = vmatprep.subr.mxu0 0.0
      %3587 = vmatpush1.msra.mxu0 0.0
      %3588 = vmatprep.subr.mxu0 0.0
      %3589 = vmatpush1.msra.mxu0 0.0
      %3590 = vmatprep.subr.mxu0 0.0
      %3591 = vmatpush1.msra.mxu0 0.0
      %3592 = vmatprep.subr.mxu0 0.0
      %3593 = vmatpush1.msra.mxu0 0.0
      %3594 = vmatprep.subr.mxu0 0.0
      %3595 = vmatpush1.msra.mxu0 0.0
      %3596 = vmatprep.subr.mxu0 0.0
      %3597 = vmatpush1.msra.mxu0 0.0
      %3598 = vmatprep.subr.mxu0 0.0
      %3599 = vmatpush1.msra.mxu0 0.0
      %3600 = vmatprep.subr.mxu0 0.0
      %3601 = vmatpush1.msra.mxu0 0.0
      %3602 = vmatprep.subr.mxu0 0.0
      %3603 = vmatpush1.msra.mxu0 0.0
      %3604 = vmatprep.subr.mxu0 0.0
      %3605 = vmatpush1.msra.mxu0 0.0
      %3606 = vmatprep.subr.mxu0 0.0
      %3607 = vmatpush1.msra.mxu0 0.0
      %3608 = vmatprep.subr.mxu0 0.0
      %3609 = vmatpush1.msra.mxu0 0.0
      %3610 = vmatprep.subr.mxu0 0.0
      %3611 = vmatpush1.msra.mxu0 0.0
      %3612 = vmatprep.subr.mxu0 0.0
      %3613 = vmatpush1.msra.mxu0 0.0
      %3614 = vmatprep.mubr.f32.mxu0 0.0
      %3615 = vmatmul.mubr.f32.gmra.mrb[0].mxu0 %v3506
      %v3616 = vpop.f32.mrb[0].mxu0
      %v3617 = vadd.f32 0.0, %v3616
      %v3618 = vpop.f32.mrb[0].mxu0
      %3619 = vmatprep.mubr.f32.mxu0 0.0
      %3620 = vmatmul.mubr.f32.gmra.mrb[0].mxu0 %v3509
      %v3621 = vpop.f32.mrb[0].mxu0
      %v3622 = vadd.f32 0.0, %v3621
      %v3623 = vpop.f32.mrb[0].mxu0
      %3624 = vmatprep.mubr.f32.mxu0 0.0
      %3625 = vmatmul.mubr.f32.gmra.mrb[0].mxu0 %v3512
      %v3626 = vpop.f32.mrb[0].mxu0
      %v3627 = vadd.f32 0.0, %v3626
      %v3628 = vpop.f32.mrb[0].mxu0
      %3629 = vmatprep.mubr.f32.mxu0 0.0
      %3630 = vmatmul.mubr.f32.gmra.mrb[0].mxu0 %v3515
      %v3631 = vpop.f32.mrb[0].mxu0
      %v3632 = vadd.f32 0.0, %v3631
      %v3633 = vpop.f32.mrb[0].mxu0
      %3634 = vmatprep.mubr.f32.mxu0 0.0
      %3635 = vmatmul.mubr.f32.gmra.mrb[0].mxu0 %v3518
      %v3636 = vpop.f32.mrb[0].mxu0
      %v3637 = vadd.f32 0.0, %v3636
      %v3638 = vpop.f32.mrb[0].mxu0
      %3639 = vmatprep.mubr.f32.mxu0 0.0
      %3640 = vmatmul.mubr.f32.gmra.mrb[0].mxu0 %v3521
      %v3641 = vpop.f32.mrb[0].mxu0
      %v3642 = vadd.f32 0.0, %v3641
      %v3643 = vpop.f32.mrb[0].mxu0
      %3644 = vmatprep.mubr.f32.mxu0 0.0
      %3645 = vmatmul.mubr.f32.gmra.mrb[0].mxu0 %v3524
      %v3646 = vpop.f32.mrb[0].mxu0
      %v3647 = vadd.f32 0.0, %v3646
      %v3648 = vpop.f32.mrb[0].mxu0
      %3649 = vmatprep.mubr.f32.mxu0 0.0
      %3650 = vmatmul.mubr.f32.gmra.mrb[0].mxu0 %v3527
      %v3651 = vpop.f32.mrb[0].mxu0
      %v3652 = vadd.f32 0.0, %v3651
      %v3653 = vpop.f32.mrb[0].mxu0
      %3654 = vmatprep.mubr.f32.mxu0 0.0
      %3655 = vmatmul.mubr.f32.gmra.mrb[0].mxu0 %v3530
      %v3656 = vpop.f32.mrb[0].mxu0
      %v3657 = vadd.f32 0.0, %v3656
      %v3658 = vpop.f32.mrb[0].mxu0
      %3659 = vmatprep.mubr.f32.mxu0 0.0
      %3660 = vmatmul.mubr.f32.gmra.mrb[0].mxu0 %v3533
      %v3661 = vpop.f32.mrb[0].mxu0
      %v3662 = vadd.f32 0.0, %v3661
      %v3663 = vpop.f32.mrb[0].mxu0
      %3664 = vmatprep.mubr.f32.mxu0 0.0
      %3665 = vmatmul.mubr.f32.gmra.mrb[0].mxu0 %v3536
      %v3666 = vpop.f32.mrb[0].mxu0
      %v3667 = vadd.f32 0.0, %v3666
      %v3668 = vpop.f32.mrb[0].mxu0
      %3669 = vmatprep.mubr.f32.mxu0 0.0
      %3670 = vmatmul.mubr.f32.gmra.mrb[0].mxu0 %v3539
      %v3671 = vpop.f32.mrb[0].mxu0
      %v3672 = vadd.f32 0.0, %v3671
      %v3673 = vpop.f32.mrb[0].mxu0
      %3674 = vmatprep.mubr.f32.mxu0 0.0
      %3675 = vmatmul.mubr.f32.gmra.mrb[0].mxu0 %v3542
      %v3676 = vpop.f32.mrb[0].mxu0
      %v3677 = vadd.f32 0.0, %v3676
      %v3678 = vpop.f32.mrb[0].mxu0
      %3679 = vmatprep.mubr.f32.mxu0 0.0
      %3680 = vmatmul.mubr.f32.gmra.mrb[0].mxu0 %v3545
      %v3681 = vpop.f32.mrb[0].mxu0
      %v3682 = vadd.f32 0.0, %v3681
      %v3683 = vpop.f32.mrb[0].mxu0
      %3684 = vmatprep.mubr.f32.mxu0 0.0
      %3685 = vmatmul.mubr.f32.gmra.mrb[0].mxu0 %v3548
      %v3686 = vpop.f32.mrb[0].mxu0
      %v3687 = vadd.f32 0.0, %v3686
      %v3688 = vpop.f32.mrb[0].mxu0
      %3689 = vdwg.mxu0
      %3690 = vrot.lane.b32.xlu0 %v3617, 1
      %v3691 = vpop.permute.xlu0 %3690
      %3692 = vrot.lane.b32.xlu0 %v3622, 1
      %v3693 = vpop.permute.xlu0 %3692
      %3694 = vrot.lane.b32.xlu0 %v3627, 1
      %v3695 = vpop.permute.xlu0 %3694
      %3696 = vrot.lane.b32.xlu0 %v3632, 1
      %v3697 = vpop.permute.xlu0 %3696
      %3698 = vrot.lane.b32.xlu0 %v3637, 1
      %v3699 = vpop.permute.xlu0 %3698
      %v3700 = vadd.f32 %v3691, %v3642
      %v3701 = vadd.f32 %v3693, %v3647
      %v3702 = vadd.f32 %v3695, %v3652
      %v3703 = vadd.f32 %v3697, %v3657
      %v3704 = vadd.f32 %v3699, %v3662
      %3705 = vrot.lane.b32.xlu0 %v3667, 127
      %v3706 = vpop.permute.xlu0 %3705
      %3707 = vrot.lane.b32.xlu0 %v3672, 127
      %v3708 = vpop.permute.xlu0 %3707
      %3709 = vrot.lane.b32.xlu0 %v3677, 127
      %v3710 = vpop.permute.xlu0 %3709
      %3711 = vrot.lane.b32.xlu0 %v3682, 127
      %v3712 = vpop.permute.xlu0 %3711
      %3713 = vrot.lane.b32.xlu0 %v3687, 127
      %v3714 = vpop.permute.xlu0 %3713
      %v3715 = vadd.f32 %v3700, %v3706
      %v3716 = vadd.f32 %v3701, %v3708
      %v3717 = vadd.f32 %v3702, %v3710
      %v3718 = vadd.f32 %v3703, %v3712
      %v3719 = vadd.f32 %v3704, %v3714
      %3720 = vset.pattern.permute.xlu0 10
      %3721 = vperm.xlu0 %3720, %v491
      %v3722 = vpop.permute.xlu0 %3721
      %3724 = vset.pattern.permute.xlu0 10
      %3725 = vperm.xlu0 %3724, %v492
      %v3726 = vpop.permute.xlu0 %3725
      %3728 = vset.pattern.permute.xlu0 10
      %3729 = vperm.xlu0 %3728, %v493
      %v3730 = vpop.permute.xlu0 %3729
      %3732 = vset.pattern.permute.xlu0 10
      %3733 = vperm.xlu0 %3732, %v494
      %v3734 = vpop.permute.xlu0 %3733
      %3736 = vset.pattern.permute.xlu0 10
      %3737 = vperm.xlu0 %3736, %v495
      %v3738 = vpop.permute.xlu0 %3737
      %v3740 = vadd.f32 %v3715, %v3722
      %v3741 = vadd.f32 %v3716, %v3726
      %v3742 = vadd.f32 %v3717, %v3730
      %v3743 = vadd.f32 %v3718, %v3734
      %v3744 = vadd.f32 %v3719, %v3738
      %v3745 = vmax.f32 %v3740, 0.0
      %v3746 = vmax.f32 %v3741, 0.0
      %v3747 = vmax.f32 %v3742, 0.0
      %v3748 = vmax.f32 %v3743, 0.0
      %v3749 = vmax.f32 %v3744, 0.0
      %v3750 = vsel %vm3483, %v3745, 0.0
      %v3751 = vsel %vm3483, %v3746, 0.0
      %v3752 = vsel %vm3483, %v3747, 0.0
      %v3753 = vsel %vm3483, %v3748, 0.0
      %v3754 = vsel %vm3483, %v3749, 0.0
      %s3755 = scalar_lea.vmem %s1, 1320
      %v3756 = vld [vmem:[%s3755] sm:$0xff]
      %v3757 = vld [vmem:[%s3755 + $0x8] sm:$0xff]
      %v3758 = vld [vmem:[%s3755 + $0x10] sm:$0xff]
      %v3759 = vld [vmem:[%s3755 + $0x18] sm:$0xff]
      %v3760 = vld [vmem:[%s3755 + $0x20] sm:$0xff]
      %v3761 = vld [vmem:[%s3755 + $0x28] sm:$0xff]
      %v3762 = vld [vmem:[%s3755 + $0x30] sm:$0xff]
      %v3763 = vld [vmem:[%s3755 + $0x38] sm:$0xff]
      %v3764 = vld [vmem:[%s3755 + $0x40] sm:$0xff]
      %v3765 = vld [vmem:[%s3755 + $0x48] sm:$0xff]
      %v3766 = vld [vmem:[%s3755 + $0x50] sm:$0xff]
      %v3767 = vld [vmem:[%s3755 + $0x58] sm:$0xff]
      %v3768 = vld [vmem:[%s3755 + $0x60] sm:$0xff]
      %v3769 = vld [vmem:[%s3755 + $0x68] sm:$0xff]
      %v3770 = vld [vmem:[%s3755 + $0x70] sm:$0xff]
      %v3772 = vsel %vm573, %v3756, 0
      %v3775 = vsel %vm573, %v3757, 0
      %v3778 = vsel %vm573, %v3758, 0
      %v3781 = vsel %vm573, %v3759, 0
      %v3784 = vsel %vm573, %v3760, 0
      %v3787 = vsel %vm573, %v3761, 0
      %v3790 = vsel %vm573, %v3762, 0
      %v3793 = vsel %vm573, %v3763, 0
      %v3796 = vsel %vm573, %v3764, 0
      %v3799 = vsel %vm573, %v3765, 0
      %v3802 = vsel %vm573, %v3766, 0
      %v3805 = vsel %vm573, %v3767, 0
      %v3808 = vsel %vm573, %v3768, 0
      %v3811 = vsel %vm573, %v3769, 0
      %v3814 = vsel %vm573, %v3770, 0
      %3816 = vmatprep.subr.mxu0 0.0
      %3817 = vmatpush1.msra.mxu0 %v3750
      %3818 = vmatprep.subr.mxu0 0.0
      %3819 = vmatpush1.msra.mxu0 %v3751
      %3820 = vmatprep.subr.mxu0 0.0
      %3821 = vmatpush1.msra.mxu0 %v3752
      %3822 = vmatprep.subr.mxu0 0.0
      %3823 = vmatpush1.msra.mxu0 %v3753
      %3824 = vmatprep.subr.mxu0 0.0
      %3825 = vmatpush1.msra.mxu0 %v3754
      %3826 = vmatprep.subr.mxu0 0.0
      %3827 = vmatpush1.msra.mxu0 0.0
      %3828 = vmatprep.subr.mxu0 0.0
      %3829 = vmatpush1.msra.mxu0 0.0
      %3830 = vmatprep.subr.mxu0 0.0
      %3831 = vmatpush1.msra.mxu0 0.0
      %3832 = vmatprep.subr.mxu0 0.0
      %3833 = vmatpush1.msra.mxu0 0.0
      %3834 = vmatprep.subr.mxu0 0.0
      %3835 = vmatpush1.msra.mxu0 0.0
      %3836 = vmatprep.subr.mxu0 0.0
      %3837 = vmatpush1.msra.mxu0 0.0
      %3838 = vmatprep.subr.mxu0 0.0
      %3839 = vmatpush1.msra.mxu0 0.0
      %3840 = vmatprep.subr.mxu0 0.0
      %3841 = vmatpush1.msra.mxu0 0.0
      %3842 = vmatprep.subr.mxu0 0.0
      %3843 = vmatpush1.msra.mxu0 0.0
      %3844 = vmatprep.subr.mxu0 0.0
      %3845 = vmatpush1.msra.mxu0 0.0
      %3846 = vmatprep.subr.mxu0 0.0
      %3847 = vmatpush1.msra.mxu0 0.0
      %3848 = vmatprep.subr.mxu0 0.0
      %3849 = vmatpush1.msra.mxu0 0.0
      %3850 = vmatprep.subr.mxu0 0.0
      %3851 = vmatpush1.msra.mxu0 0.0
      %3852 = vmatprep.subr.mxu0 0.0
      %3853 = vmatpush1.msra.mxu0 0.0
      %3854 = vmatprep.subr.mxu0 0.0
      %3855 = vmatpush1.msra.mxu0 0.0
      %3856 = vmatprep.subr.mxu0 0.0
      %3857 = vmatpush1.msra.mxu0 0.0
      %3858 = vmatprep.subr.mxu0 0.0
      %3859 = vmatpush1.msra.mxu0 0.0
      %3860 = vmatprep.subr.mxu0 0.0
      %3861 = vmatpush1.msra.mxu0 0.0
      %3862 = vmatprep.subr.mxu0 0.0
      %3863 = vmatpush1.msra.mxu0 0.0
      %3864 = vmatprep.subr.mxu0 0.0
      %3865 = vmatpush1.msra.mxu0 0.0
      %3866 = vmatprep.subr.mxu0 0.0
      %3867 = vmatpush1.msra.mxu0 0.0
      %3868 = vmatprep.subr.mxu0 0.0
      %3869 = vmatpush1.msra.mxu0 0.0
      %3870 = vmatprep.subr.mxu0 0.0
      %3871 = vmatpush1.msra.mxu0 0.0
      %3872 = vmatprep.subr.mxu0 0.0
      %3873 = vmatpush1.msra.mxu0 0.0
      %3874 = vmatprep.subr.mxu0 0.0
      %3875 = vmatpush1.msra.mxu0 0.0
      %3876 = vmatprep.subr.mxu0 0.0
      %3877 = vmatpush1.msra.mxu0 0.0
      %3878 = vmatprep.subr.mxu0 0.0
      %3879 = vmatpush1.msra.mxu0 0.0
      %3880 = vmatprep.mubr.f32.mxu0 0.0
      %3881 = vmatmul.mubr.f32.gmra.mrb[0].mxu0 %v3772
      %v3882 = vpop.f32.mrb[0].mxu0
      %v3883 = vadd.f32 0.0, %v3882
      %v3884 = vpop.f32.mrb[0].mxu0
      %3885 = vmatprep.mubr.f32.mxu0 0.0
      %3886 = vmatmul.mubr.f32.gmra.mrb[0].mxu0 %v3775
      %v3887 = vpop.f32.mrb[0].mxu0
      %v3888 = vadd.f32 0.0, %v3887
      %v3889 = vpop.f32.mrb[0].mxu0
      %3890 = vmatprep.mubr.f32.mxu0 0.0
      %3891 = vmatmul.mubr.f32.gmra.mrb[0].mxu0 %v3778
      %v3892 = vpop.f32.mrb[0].mxu0
      %v3893 = vadd.f32 0.0, %v3892
      %v3894 = vpop.f32.mrb[0].mxu0
      %3895 = vmatprep.mubr.f32.mxu0 0.0
      %3896 = vmatmul.mubr.f32.gmra.mrb[0].mxu0 %v3781
      %v3897 = vpop.f32.mrb[0].mxu0
      %v3898 = vadd.f32 0.0, %v3897
      %v3899 = vpop.f32.mrb[0].mxu0
      %3900 = vmatprep.mubr.f32.mxu0 0.0
      %3901 = vmatmul.mubr.f32.gmra.mrb[0].mxu0 %v3784
      %v3902 = vpop.f32.mrb[0].mxu0
      %v3903 = vadd.f32 0.0, %v3902
      %v3904 = vpop.f32.mrb[0].mxu0
      %3905 = vmatprep.mubr.f32.mxu0 0.0
      %3906 = vmatmul.mubr.f32.gmra.mrb[0].mxu0 %v3787
      %v3907 = vpop.f32.mrb[0].mxu0
      %v3908 = vadd.f32 0.0, %v3907
      %v3909 = vpop.f32.mrb[0].mxu0
      %3910 = vmatprep.mubr.f32.mxu0 0.0
      %3911 = vmatmul.mubr.f32.gmra.mrb[0].mxu0 %v3790
      %v3912 = vpop.f32.mrb[0].mxu0
      %v3913 = vadd.f32 0.0, %v3912
      %v3914 = vpop.f32.mrb[0].mxu0
      %3915 = vmatprep.mubr.f32.mxu0 0.0
      %3916 = vmatmul.mubr.f32.gmra.mrb[0].mxu0 %v3793
      %v3917 = vpop.f32.mrb[0].mxu0
      %v3918 = vadd.f32 0.0, %v3917
      %v3919 = vpop.f32.mrb[0].mxu0
      %3920 = vmatprep.mubr.f32.mxu0 0.0
      %3921 = vmatmul.mubr.f32.gmra.mrb[0].mxu0 %v3796
      %v3922 = vpop.f32.mrb[0].mxu0
      %v3923 = vadd.f32 0.0, %v3922
      %v3924 = vpop.f32.mrb[0].mxu0
      %3925 = vmatprep.mubr.f32.mxu0 0.0
      %3926 = vmatmul.mubr.f32.gmra.mrb[0].mxu0 %v3799
      %v3927 = vpop.f32.mrb[0].mxu0
      %v3928 = vadd.f32 0.0, %v3927
      %v3929 = vpop.f32.mrb[0].mxu0
      %3930 = vmatprep.mubr.f32.mxu0 0.0
      %3931 = vmatmul.mubr.f32.gmra.mrb[0].mxu0 %v3802
      %v3932 = vpop.f32.mrb[0].mxu0
      %v3933 = vadd.f32 0.0, %v3932
      %v3934 = vpop.f32.mrb[0].mxu0
      %3935 = vmatprep.mubr.f32.mxu0 0.0
      %3936 = vmatmul.mubr.f32.gmra.mrb[0].mxu0 %v3805
      %v3937 = vpop.f32.mrb[0].mxu0
      %v3938 = vadd.f32 0.0, %v3937
      %v3939 = vpop.f32.mrb[0].mxu0
      %3940 = vmatprep.mubr.f32.mxu0 0.0
      %3941 = vmatmul.mubr.f32.gmra.mrb[0].mxu0 %v3808
      %v3942 = vpop.f32.mrb[0].mxu0
      %v3943 = vadd.f32 0.0, %v3942
      %v3944 = vpop.f32.mrb[0].mxu0
      %3945 = vmatprep.mubr.f32.mxu0 0.0
      %3946 = vmatmul.mubr.f32.gmra.mrb[0].mxu0 %v3811
      %v3947 = vpop.f32.mrb[0].mxu0
      %v3948 = vadd.f32 0.0, %v3947
      %v3949 = vpop.f32.mrb[0].mxu0
      %3950 = vmatprep.mubr.f32.mxu0 0.0
      %3951 = vmatmul.mubr.f32.gmra.mrb[0].mxu0 %v3814
      %v3952 = vpop.f32.mrb[0].mxu0
      %v3953 = vadd.f32 0.0, %v3952
      %v3954 = vpop.f32.mrb[0].mxu0
      %3955 = vdwg.mxu0
      %3956 = vrot.lane.b32.xlu0 %v3883, 1
      %v3957 = vpop.permute.xlu0 %3956
      %3958 = vrot.lane.b32.xlu0 %v3888, 1
      %v3959 = vpop.permute.xlu0 %3958
      %3960 = vrot.lane.b32.xlu0 %v3893, 1
      %v3961 = vpop.permute.xlu0 %3960
      %3962 = vrot.lane.b32.xlu0 %v3898, 1
      %v3963 = vpop.permute.xlu0 %3962
      %3964 = vrot.lane.b32.xlu0 %v3903, 1
      %v3965 = vpop.permute.xlu0 %3964
      %v3966 = vadd.f32 %v3957, %v3908
      %v3967 = vadd.f32 %v3959, %v3913
      %v3968 = vadd.f32 %v3961, %v3918
      %v3969 = vadd.f32 %v3963, %v3923
      %v3970 = vadd.f32 %v3965, %v3928
      %3971 = vrot.lane.b32.xlu0 %v3933, 127
      %v3972 = vpop.permute.xlu0 %3971
      %3973 = vrot.lane.b32.xlu0 %v3938, 127
      %v3974 = vpop.permute.xlu0 %3973
      %3975 = vrot.lane.b32.xlu0 %v3943, 127
      %v3976 = vpop.permute.xlu0 %3975
      %3977 = vrot.lane.b32.xlu0 %v3948, 127
      %v3978 = vpop.permute.xlu0 %3977
      %3979 = vrot.lane.b32.xlu0 %v3953, 127
      %v3980 = vpop.permute.xlu0 %3979
      %v3981 = vadd.f32 %v3966, %v3972
      %v3982 = vadd.f32 %v3967, %v3974
      %v3983 = vadd.f32 %v3968, %v3976
      %v3984 = vadd.f32 %v3969, %v3978
      %v3985 = vadd.f32 %v3970, %v3980
      %3986 = vset.pattern.permute.xlu0 11
      %3987 = vperm.xlu0 %3986, %v491
      %v3988 = vpop.permute.xlu0 %3987
      %3990 = vset.pattern.permute.xlu0 11
      %3991 = vperm.xlu0 %3990, %v492
      %v3992 = vpop.permute.xlu0 %3991
      %3994 = vset.pattern.permute.xlu0 11
      %3995 = vperm.xlu0 %3994, %v493
      %v3996 = vpop.permute.xlu0 %3995
      %3998 = vset.pattern.permute.xlu0 11
      %3999 = vperm.xlu0 %3998, %v494
      %v4000 = vpop.permute.xlu0 %3999
      %4002 = vset.pattern.permute.xlu0 11
      %4003 = vperm.xlu0 %4002, %v495
      %v4004 = vpop.permute.xlu0 %4003
      %v4006 = vadd.f32 %v3981, %v3988
      %v4007 = vadd.f32 %v3982, %v3992
      %v4008 = vadd.f32 %v3983, %v3996
      %v4009 = vadd.f32 %v3984, %v4000
      %v4010 = vadd.f32 %v3985, %v4004
      %v4011 = vmax.f32 %v4006, 0.0
      %v4012 = vmax.f32 %v4007, 0.0
      %v4013 = vmax.f32 %v4008, 0.0
      %v4014 = vmax.f32 %v4009, 0.0
      %v4015 = vmax.f32 %v4010, 0.0
      %v4016 = vsel %vm3483, %v4011, 0.0
      %v4017 = vsel %vm3483, %v4012, 0.0
      %v4018 = vsel %vm3483, %v4013, 0.0
      %v4019 = vsel %vm3483, %v4014, 0.0
      %v4020 = vsel %vm3483, %v4015, 0.0
      %s4021 = scalar_lea.vmem %s1, 1440
      %v4022 = vld [vmem:[%s4021] sm:$0xff]
      %v4023 = vld [vmem:[%s4021 + $0x8] sm:$0xff]
      %v4024 = vld [vmem:[%s4021 + $0x10] sm:$0xff]
      %v4025 = vld [vmem:[%s4021 + $0x18] sm:$0xff]
      %v4026 = vld [vmem:[%s4021 + $0x20] sm:$0xff]
      %v4027 = vld [vmem:[%s4021 + $0x28] sm:$0xff]
      %v4028 = vld [vmem:[%s4021 + $0x30] sm:$0xff]
      %v4029 = vld [vmem:[%s4021 + $0x38] sm:$0xff]
      %v4030 = vld [vmem:[%s4021 + $0x40] sm:$0xff]
      %v4031 = vld [vmem:[%s4021 + $0x48] sm:$0xff]
      %v4032 = vld [vmem:[%s4021 + $0x50] sm:$0xff]
      %v4033 = vld [vmem:[%s4021 + $0x58] sm:$0xff]
      %v4034 = vld [vmem:[%s4021 + $0x60] sm:$0xff]
      %v4035 = vld [vmem:[%s4021 + $0x68] sm:$0xff]
      %v4036 = vld [vmem:[%s4021 + $0x70] sm:$0xff]
      %v4038 = vsel %vm573, %v4022, 0
      %v4041 = vsel %vm573, %v4023, 0
      %v4044 = vsel %vm573, %v4024, 0
      %v4047 = vsel %vm573, %v4025, 0
      %v4050 = vsel %vm573, %v4026, 0
      %v4053 = vsel %vm573, %v4027, 0
      %v4056 = vsel %vm573, %v4028, 0
      %v4059 = vsel %vm573, %v4029, 0
      %v4062 = vsel %vm573, %v4030, 0
      %v4065 = vsel %vm573, %v4031, 0
      %v4068 = vsel %vm573, %v4032, 0
      %v4071 = vsel %vm573, %v4033, 0
      %v4074 = vsel %vm573, %v4034, 0
      %v4077 = vsel %vm573, %v4035, 0
      %v4080 = vsel %vm573, %v4036, 0
      %4082 = vmatprep.subr.mxu0 0.0
      %4083 = vmatpush1.msra.mxu0 %v4016
      %4084 = vmatprep.subr.mxu0 0.0
      %4085 = vmatpush1.msra.mxu0 %v4017
      %4086 = vmatprep.subr.mxu0 0.0
      %4087 = vmatpush1.msra.mxu0 %v4018
      %4088 = vmatprep.subr.mxu0 0.0
      %4089 = vmatpush1.msra.mxu0 %v4019
      %4090 = vmatprep.subr.mxu0 0.0
      %4091 = vmatpush1.msra.mxu0 %v4020
      %4092 = vmatprep.subr.mxu0 0.0
      %4093 = vmatpush1.msra.mxu0 0.0
      %4094 = vmatprep.subr.mxu0 0.0
      %4095 = vmatpush1.msra.mxu0 0.0
      %4096 = vmatprep.subr.mxu0 0.0
      %4097 = vmatpush1.msra.mxu0 0.0
      %4098 = vmatprep.subr.mxu0 0.0
      %4099 = vmatpush1.msra.mxu0 0.0
      %4100 = vmatprep.subr.mxu0 0.0
      %4101 = vmatpush1.msra.mxu0 0.0
      %4102 = vmatprep.subr.mxu0 0.0
      %4103 = vmatpush1.msra.mxu0 0.0
      %4104 = vmatprep.subr.mxu0 0.0
      %4105 = vmatpush1.msra.mxu0 0.0
      %4106 = vmatprep.subr.mxu0 0.0
      %4107 = vmatpush1.msra.mxu0 0.0
      %4108 = vmatprep.subr.mxu0 0.0
      %4109 = vmatpush1.msra.mxu0 0.0
      %4110 = vmatprep.subr.mxu0 0.0
      %4111 = vmatpush1.msra.mxu0 0.0
      %4112 = vmatprep.subr.mxu0 0.0
      %4113 = vmatpush1.msra.mxu0 0.0
      %4114 = vmatprep.subr.mxu0 0.0
      %4115 = vmatpush1.msra.mxu0 0.0
      %4116 = vmatprep.subr.mxu0 0.0
      %4117 = vmatpush1.msra.mxu0 0.0
      %4118 = vmatprep.subr.mxu0 0.0
      %4119 = vmatpush1.msra.mxu0 0.0
      %4120 = vmatprep.subr.mxu0 0.0
      %4121 = vmatpush1.msra.mxu0 0.0
      %4122 = vmatprep.subr.mxu0 0.0
      %4123 = vmatpush1.msra.mxu0 0.0
      %4124 = vmatprep.subr.mxu0 0.0
      %4125 = vmatpush1.msra.mxu0 0.0
      %4126 = vmatprep.subr.mxu0 0.0
      %4127 = vmatpush1.msra.mxu0 0.0
      %4128 = vmatprep.subr.mxu0 0.0
      %4129 = vmatpush1.msra.mxu0 0.0
      %4130 = vmatprep.subr.mxu0 0.0
      %4131 = vmatpush1.msra.mxu0 0.0
      %4132 = vmatprep.subr.mxu0 0.0
      %4133 = vmatpush1.msra.mxu0 0.0
      %4134 = vmatprep.subr.mxu0 0.0
      %4135 = vmatpush1.msra.mxu0 0.0
      %4136 = vmatprep.subr.mxu0 0.0
      %4137 = vmatpush1.msra.mxu0 0.0
      %4138 = vmatprep.subr.mxu0 0.0
      %4139 = vmatpush1.msra.mxu0 0.0
      %4140 = vmatprep.subr.mxu0 0.0
      %4141 = vmatpush1.msra.mxu0 0.0
      %4142 = vmatprep.subr.mxu0 0.0
      %4143 = vmatpush1.msra.mxu0 0.0
      %4144 = vmatprep.subr.mxu0 0.0
      %4145 = vmatpush1.msra.mxu0 0.0
      %4146 = vmatprep.mubr.f32.mxu0 0.0
      %4147 = vmatmul.mubr.f32.gmra.mrb[0].mxu0 %v4038
      %v4148 = vpop.f32.mrb[0].mxu0
      %v4149 = vadd.f32 0.0, %v4148
      %v4150 = vpop.f32.mrb[0].mxu0
      %4151 = vmatprep.mubr.f32.mxu0 0.0
      %4152 = vmatmul.mubr.f32.gmra.mrb[0].mxu0 %v4041
      %v4153 = vpop.f32.mrb[0].mxu0
      %v4154 = vadd.f32 0.0, %v4153
      %v4155 = vpop.f32.mrb[0].mxu0
      %4156 = vmatprep.mubr.f32.mxu0 0.0
      %4157 = vmatmul.mubr.f32.gmra.mrb[0].mxu0 %v4044
      %v4158 = vpop.f32.mrb[0].mxu0
      %v4159 = vadd.f32 0.0, %v4158
      %v4160 = vpop.f32.mrb[0].mxu0
      %4161 = vmatprep.mubr.f32.mxu0 0.0
      %4162 = vmatmul.mubr.f32.gmra.mrb[0].mxu0 %v4047
      %v4163 = vpop.f32.mrb[0].mxu0
      %v4164 = vadd.f32 0.0, %v4163
      %v4165 = vpop.f32.mrb[0].mxu0
      %4166 = vmatprep.mubr.f32.mxu0 0.0
      %4167 = vmatmul.mubr.f32.gmra.mrb[0].mxu0 %v4050
      %v4168 = vpop.f32.mrb[0].mxu0
      %v4169 = vadd.f32 0.0, %v4168
      %v4170 = vpop.f32.mrb[0].mxu0
      %4171 = vmatprep.mubr.f32.mxu0 0.0
      %4172 = vmatmul.mubr.f32.gmra.mrb[0].mxu0 %v4053
      %v4173 = vpop.f32.mrb[0].mxu0
      %v4174 = vadd.f32 0.0, %v4173
      %v4175 = vpop.f32.mrb[0].mxu0
      %4176 = vmatprep.mubr.f32.mxu0 0.0
      %4177 = vmatmul.mubr.f32.gmra.mrb[0].mxu0 %v4056
      %v4178 = vpop.f32.mrb[0].mxu0
      %v4179 = vadd.f32 0.0, %v4178
      %v4180 = vpop.f32.mrb[0].mxu0
      %4181 = vmatprep.mubr.f32.mxu0 0.0
      %4182 = vmatmul.mubr.f32.gmra.mrb[0].mxu0 %v4059
      %v4183 = vpop.f32.mrb[0].mxu0
      %v4184 = vadd.f32 0.0, %v4183
      %v4185 = vpop.f32.mrb[0].mxu0
      %4186 = vmatprep.mubr.f32.mxu0 0.0
      %4187 = vmatmul.mubr.f32.gmra.mrb[0].mxu0 %v4062
      %v4188 = vpop.f32.mrb[0].mxu0
      %v4189 = vadd.f32 0.0, %v4188
      %v4190 = vpop.f32.mrb[0].mxu0
      %4191 = vmatprep.mubr.f32.mxu0 0.0
      %4192 = vmatmul.mubr.f32.gmra.mrb[0].mxu0 %v4065
      %v4193 = vpop.f32.mrb[0].mxu0
      %v4194 = vadd.f32 0.0, %v4193
      %v4195 = vpop.f32.mrb[0].mxu0
      %4196 = vmatprep.mubr.f32.mxu0 0.0
      %4197 = vmatmul.mubr.f32.gmra.mrb[0].mxu0 %v4068
      %v4198 = vpop.f32.mrb[0].mxu0
      %v4199 = vadd.f32 0.0, %v4198
      %v4200 = vpop.f32.mrb[0].mxu0
      %4201 = vmatprep.mubr.f32.mxu0 0.0
      %4202 = vmatmul.mubr.f32.gmra.mrb[0].mxu0 %v4071
      %v4203 = vpop.f32.mrb[0].mxu0
      %v4204 = vadd.f32 0.0, %v4203
      %v4205 = vpop.f32.mrb[0].mxu0
      %4206 = vmatprep.mubr.f32.mxu0 0.0
      %4207 = vmatmul.mubr.f32.gmra.mrb[0].mxu0 %v4074
      %v4208 = vpop.f32.mrb[0].mxu0
      %v4209 = vadd.f32 0.0, %v4208
      %v4210 = vpop.f32.mrb[0].mxu0
      %4211 = vmatprep.mubr.f32.mxu0 0.0
      %4212 = vmatmul.mubr.f32.gmra.mrb[0].mxu0 %v4077
      %v4213 = vpop.f32.mrb[0].mxu0
      %v4214 = vadd.f32 0.0, %v4213
      %v4215 = vpop.f32.mrb[0].mxu0
      %4216 = vmatprep.mubr.f32.mxu0 0.0
      %4217 = vmatmul.mubr.f32.gmra.mrb[0].mxu0 %v4080
      %v4218 = vpop.f32.mrb[0].mxu0
      %v4219 = vadd.f32 0.0, %v4218
      %v4220 = vpop.f32.mrb[0].mxu0
      %4221 = vdwg.mxu0
      %4222 = vrot.lane.b32.xlu0 %v4149, 1
      %v4223 = vpop.permute.xlu0 %4222
      %4224 = vrot.lane.b32.xlu0 %v4154, 1
      %v4225 = vpop.permute.xlu0 %4224
      %4226 = vrot.lane.b32.xlu0 %v4159, 1
      %v4227 = vpop.permute.xlu0 %4226
      %4228 = vrot.lane.b32.xlu0 %v4164, 1
      %v4229 = vpop.permute.xlu0 %4228
      %4230 = vrot.lane.b32.xlu0 %v4169, 1
      %v4231 = vpop.permute.xlu0 %4230
      %v4232 = vadd.f32 %v4223, %v4174
      %v4233 = vadd.f32 %v4225, %v4179
      %v4234 = vadd.f32 %v4227, %v4184
      %v4235 = vadd.f32 %v4229, %v4189
      %v4236 = vadd.f32 %v4231, %v4194
      %4237 = vrot.lane.b32.xlu0 %v4199, 127
      %v4238 = vpop.permute.xlu0 %4237
      %4239 = vrot.lane.b32.xlu0 %v4204, 127
      %v4240 = vpop.permute.xlu0 %4239
      %4241 = vrot.lane.b32.xlu0 %v4209, 127
      %v4242 = vpop.permute.xlu0 %4241
      %4243 = vrot.lane.b32.xlu0 %v4214, 127
      %v4244 = vpop.permute.xlu0 %4243
      %4245 = vrot.lane.b32.xlu0 %v4219, 127
      %v4246 = vpop.permute.xlu0 %4245
      %v4247 = vadd.f32 %v4232, %v4238
      %v4248 = vadd.f32 %v4233, %v4240
      %v4249 = vadd.f32 %v4234, %v4242
      %v4250 = vadd.f32 %v4235, %v4244
      %v4251 = vadd.f32 %v4236, %v4246
      %4252 = vset.pattern.permute.xlu0 12
      %4253 = vperm.xlu0 %4252, %v491
      %v4254 = vpop.permute.xlu0 %4253
      %4256 = vset.pattern.permute.xlu0 12
      %4257 = vperm.xlu0 %4256, %v492
      %v4258 = vpop.permute.xlu0 %4257
      %4260 = vset.pattern.permute.xlu0 12
      %4261 = vperm.xlu0 %4260, %v493
      %v4262 = vpop.permute.xlu0 %4261
      %4264 = vset.pattern.permute.xlu0 12
      %4265 = vperm.xlu0 %4264, %v494
      %v4266 = vpop.permute.xlu0 %4265
      %4268 = vset.pattern.permute.xlu0 12
      %4269 = vperm.xlu0 %4268, %v495
      %v4270 = vpop.permute.xlu0 %4269
      %4272 = vmatprep.subr.mxu0 0.0
      %4273 = vmatpush1.msra.mxu0 %v2464
      %4274 = vmatprep.subr.mxu0 0.0
      %4275 = vmatpush1.msra.mxu0 %v2465
      %4276 = vmatprep.subr.mxu0 0.0
      %4277 = vmatpush1.msra.mxu0 %v2466
      %4278 = vmatprep.subr.mxu0 0.0
      %4279 = vmatpush1.msra.mxu0 %v2467
      %4280 = vmatprep.subr.mxu0 0.0
      %4281 = vmatpush1.msra.mxu0 %v2468
      %4282 = vmatprep.subr.mxu0 0.0
      %4283 = vmatpush1.msra.mxu0 %v2469
      %4284 = vmatprep.subr.mxu0 0.0
      %4285 = vmatpush1.msra.mxu0 %v2470
      %4286 = vmatprep.subr.mxu0 0.0
      %4287 = vmatpush1.msra.mxu0 %v2471
      %4288 = vmatprep.subr.mxu0 0.0
      %4289 = vmatpush1.msra.mxu0 %v2472
      %4290 = vmatprep.subr.mxu0 0.0
      %4291 = vmatpush1.msra.mxu0 %v2473
      %4292 = vmatprep.subr.mxu0 0.0
      %4293 = vmatpush1.msra.mxu0 %v2474
      %4294 = vmatprep.subr.mxu0 0.0
      %4295 = vmatpush1.msra.mxu0 %v2475
      %4296 = vmatprep.subr.mxu0 0.0
      %4297 = vmatpush1.msra.mxu0 %v2476
      %4298 = vmatprep.subr.mxu0 0.0
      %4299 = vmatpush1.msra.mxu0 %v2477
      %4300 = vmatprep.subr.mxu0 0.0
      %4301 = vmatpush1.msra.mxu0 %v2478
      %4302 = vmatprep.subr.mxu0 0.0
      %4303 = vmatpush1.msra.mxu0 %v2479
      %4304 = vmatprep.subr.mxu0 0.0
      %4305 = vmatpush1.msra.mxu0 0.0
      %4306 = vmatprep.subr.mxu0 0.0
      %4307 = vmatpush1.msra.mxu0 0.0
      %4308 = vmatprep.subr.mxu0 0.0
      %4309 = vmatpush1.msra.mxu0 0.0
      %4310 = vmatprep.subr.mxu0 0.0
      %4311 = vmatpush1.msra.mxu0 0.0
      %4312 = vmatprep.subr.mxu0 0.0
      %4313 = vmatpush1.msra.mxu0 0.0
      %4314 = vmatprep.subr.mxu0 0.0
      %4315 = vmatpush1.msra.mxu0 0.0
      %4316 = vmatprep.subr.mxu0 0.0
      %4317 = vmatpush1.msra.mxu0 0.0
      %4318 = vmatprep.subr.mxu0 0.0
      %4319 = vmatpush1.msra.mxu0 0.0
      %4320 = vmatprep.subr.mxu0 0.0
      %4321 = vmatpush1.msra.mxu0 0.0
      %4322 = vmatprep.subr.mxu0 0.0
      %4323 = vmatpush1.msra.mxu0 0.0
      %4324 = vmatprep.subr.mxu0 0.0
      %4325 = vmatpush1.msra.mxu0 0.0
      %4326 = vmatprep.subr.mxu0 0.0
      %4327 = vmatpush1.msra.mxu0 0.0
      %4328 = vmatprep.subr.mxu0 0.0
      %4329 = vmatpush1.msra.mxu0 0.0
      %4330 = vmatprep.subr.mxu0 0.0
      %4331 = vmatpush1.msra.mxu0 0.0
      %4332 = vmatprep.subr.mxu0 0.0
      %4333 = vmatpush1.msra.mxu0 0.0
      %4334 = vmatprep.subr.mxu0 0.0
      %4335 = vmatpush1.msra.mxu0 0.0
      %4336 = vmatprep.mubr.f32.mxu0 0.0
      %4337 = vmatmul.mubr.f32.gmra.mrb[0].mxu0 %v4247
      %v4338 = vpop.f32.mrb[0].mxu0
      %v4339 = vadd.f32 %v4254, %v4338
      %v4340 = vpop.f32.mrb[0].mxu0
      %4341 = vmatprep.mubr.f32.mxu0 0.0
      %4342 = vmatmul.mubr.f32.gmra.mrb[0].mxu0 %v4248
      %v4343 = vpop.f32.mrb[0].mxu0
      %v4344 = vadd.f32 %v4258, %v4343
      %v4345 = vpop.f32.mrb[0].mxu0
      %4346 = vmatprep.mubr.f32.mxu0 0.0
      %4347 = vmatmul.mubr.f32.gmra.mrb[0].mxu0 %v4249
      %v4348 = vpop.f32.mrb[0].mxu0
      %v4349 = vadd.f32 %v4262, %v4348
      %v4350 = vpop.f32.mrb[0].mxu0
      %4351 = vmatprep.mubr.f32.mxu0 0.0
      %4352 = vmatmul.mubr.f32.gmra.mrb[0].mxu0 %v4250
      %v4353 = vpop.f32.mrb[0].mxu0
      %v4354 = vadd.f32 %v4266, %v4353
      %v4355 = vpop.f32.mrb[0].mxu0
      %4356 = vmatprep.mubr.f32.mxu0 0.0
      %4357 = vmatmul.mubr.f32.gmra.mrb[0].mxu0 %v4251
      %v4358 = vpop.f32.mrb[0].mxu0
      %v4359 = vadd.f32 %v4270, %v4358
      %v4360 = vpop.f32.mrb[0].mxu0
      %4361 = vdwg.mxu0
      %vm4362 = vcmp.lt.s32.totalorder %v275, 12
      %v4363 = vmax.f32 %v4339, 0.0
      %v4364 = vmax.f32 %v4344, 0.0
      %v4365 = vmax.f32 %v4349, 0.0
      %v4366 = vmax.f32 %v4354, 0.0
      %v4367 = vmax.f32 %v4359, 0.0
      %v4368 = vsel %vm4362, 1, 0
      %vm4369 = vcmp.eq.s32.totalorder %v4368, 1
      %v4370 = vsel %vm4369, %v4363, 0.0
      %v4371 = vsel %vm4369, %v4364, 0.0
      %v4372 = vsel %vm4369, %v4365, 0.0
      %v4373 = vsel %vm4369, %v4366, 0.0
      %v4374 = vsel %vm4369, %v4367, 0.0
      %s4375 = scalar_lea.vmem %s1, 1560
      %v4376 = vld [vmem:[%s4375] sm:$0xff]
      %v4377 = vld [vmem:[%s4375 + $0x8] sm:$0xff]
      %v4378 = vld [vmem:[%s4375 + $0x10] sm:$0xff]
      %v4379 = vld [vmem:[%s4375 + $0x18] sm:$0xff]
      %v4380 = vld [vmem:[%s4375 + $0x20] sm:$0xff]
      %v4381 = vld [vmem:[%s4375 + $0x28] sm:$0xff]
      %v4382 = vld [vmem:[%s4375 + $0x30] sm:$0xff]
      %v4383 = vld [vmem:[%s4375 + $0x38] sm:$0xff]
      %v4384 = vld [vmem:[%s4375 + $0x40] sm:$0xff]
      %v4385 = vld [vmem:[%s4375 + $0x48] sm:$0xff]
      %v4386 = vld [vmem:[%s4375 + $0x50] sm:$0xff]
      %v4387 = vld [vmem:[%s4375 + $0x58] sm:$0xff]
      %v4388 = vld [vmem:[%s4375 + $0x60] sm:$0xff]
      %v4389 = vld [vmem:[%s4375 + $0x68] sm:$0xff]
      %v4390 = vld [vmem:[%s4375 + $0x70] sm:$0xff]
      %v4392 = vsel %vm573, %v4376, 0
      %v4395 = vsel %vm573, %v4377, 0
      %v4398 = vsel %vm573, %v4378, 0
      %v4401 = vsel %vm573, %v4379, 0
      %v4404 = vsel %vm573, %v4380, 0
      %v4407 = vsel %vm573, %v4381, 0
      %v4410 = vsel %vm573, %v4382, 0
      %v4413 = vsel %vm573, %v4383, 0
      %v4416 = vsel %vm573, %v4384, 0
      %v4419 = vsel %vm573, %v4385, 0
      %v4422 = vsel %vm573, %v4386, 0
      %v4425 = vsel %vm573, %v4387, 0
      %v4428 = vsel %vm573, %v4388, 0
      %v4431 = vsel %vm573, %v4389, 0
      %v4434 = vsel %vm573, %v4390, 0
      %4436 = vmatprep.subr.mxu0 0.0
      %4437 = vmatpush1.msra.mxu0 %v4370
      %4438 = vmatprep.subr.mxu0 0.0
      %4439 = vmatpush1.msra.mxu0 %v4371
      %4440 = vmatprep.subr.mxu0 0.0
      %4441 = vmatpush1.msra.mxu0 %v4372
      %4442 = vmatprep.subr.mxu0 0.0
      %4443 = vmatpush1.msra.mxu0 %v4373
      %4444 = vmatprep.subr.mxu0 0.0
      %4445 = vmatpush1.msra.mxu0 %v4374
      %4446 = vmatprep.subr.mxu0 0.0
      %4447 = vmatpush1.msra.mxu0 0.0
      %4448 = vmatprep.subr.mxu0 0.0
      %4449 = vmatpush1.msra.mxu0 0.0
      %4450 = vmatprep.subr.mxu0 0.0
      %4451 = vmatpush1.msra.mxu0 0.0
      %4452 = vmatprep.subr.mxu0 0.0
      %4453 = vmatpush1.msra.mxu0 0.0
      %4454 = vmatprep.subr.mxu0 0.0
      %4455 = vmatpush1.msra.mxu0 0.0
      %4456 = vmatprep.subr.mxu0 0.0
      %4457 = vmatpush1.msra.mxu0 0.0
      %4458 = vmatprep.subr.mxu0 0.0
      %4459 = vmatpush1.msra.mxu0 0.0
      %4460 = vmatprep.subr.mxu0 0.0
      %4461 = vmatpush1.msra.mxu0 0.0
      %4462 = vmatprep.subr.mxu0 0.0
      %4463 = vmatpush1.msra.mxu0 0.0
      %4464 = vmatprep.subr.mxu0 0.0
      %4465 = vmatpush1.msra.mxu0 0.0
      %4466 = vmatprep.subr.mxu0 0.0
      %4467 = vmatpush1.msra.mxu0 0.0
      %4468 = vmatprep.subr.mxu0 0.0
      %4469 = vmatpush1.msra.mxu0 0.0
      %4470 = vmatprep.subr.mxu0 0.0
      %4471 = vmatpush1.msra.mxu0 0.0
      %4472 = vmatprep.subr.mxu0 0.0
      %4473 = vmatpush1.msra.mxu0 0.0
      %4474 = vmatprep.subr.mxu0 0.0
      %4475 = vmatpush1.msra.mxu0 0.0
      %4476 = vmatprep.subr.mxu0 0.0
      %4477 = vmatpush1.msra.mxu0 0.0
      %4478 = vmatprep.subr.mxu0 0.0
      %4479 = vmatpush1.msra.mxu0 0.0
      %4480 = vmatprep.subr.mxu0 0.0
      %4481 = vmatpush1.msra.mxu0 0.0
      %4482 = vmatprep.subr.mxu0 0.0
      %4483 = vmatpush1.msra.mxu0 0.0
      %4484 = vmatprep.subr.mxu0 0.0
      %4485 = vmatpush1.msra.mxu0 0.0
      %4486 = vmatprep.subr.mxu0 0.0
      %4487 = vmatpush1.msra.mxu0 0.0
      %4488 = vmatprep.subr.mxu0 0.0
      %4489 = vmatpush1.msra.mxu0 0.0
      %4490 = vmatprep.subr.mxu0 0.0
      %4491 = vmatpush1.msra.mxu0 0.0
      %4492 = vmatprep.subr.mxu0 0.0
      %4493 = vmatpush1.msra.mxu0 0.0
      %4494 = vmatprep.subr.mxu0 0.0
      %4495 = vmatpush1.msra.mxu0 0.0
      %4496 = vmatprep.subr.mxu0 0.0
      %4497 = vmatpush1.msra.mxu0 0.0
      %4498 = vmatprep.subr.mxu0 0.0
      %4499 = vmatpush1.msra.mxu0 0.0
      %4500 = vmatprep.mubr.f32.mxu0 0.0
      %4501 = vmatmul.mubr.f32.gmra.mrb[0].mxu0 %v4392
      %v4502 = vpop.f32.mrb[0].mxu0
      %v4503 = vadd.f32 0.0, %v4502
      %v4504 = vpop.f32.mrb[0].mxu0
      %4505 = vmatprep.mubr.f32.mxu0 0.0
      %4506 = vmatmul.mubr.f32.gmra.mrb[0].mxu0 %v4395
      %v4507 = vpop.f32.mrb[0].mxu0
      %v4508 = vadd.f32 0.0, %v4507
      %v4509 = vpop.f32.mrb[0].mxu0
      %4510 = vmatprep.mubr.f32.mxu0 0.0
      %4511 = vmatmul.mubr.f32.gmra.mrb[0].mxu0 %v4398
      %v4512 = vpop.f32.mrb[0].mxu0
      %v4513 = vadd.f32 0.0, %v4512
      %v4514 = vpop.f32.mrb[0].mxu0
      %4515 = vmatprep.mubr.f32.mxu0 0.0
      %4516 = vmatmul.mubr.f32.gmra.mrb[0].mxu0 %v4401
      %v4517 = vpop.f32.mrb[0].mxu0
      %v4518 = vadd.f32 0.0, %v4517
      %v4519 = vpop.f32.mrb[0].mxu0
      %4520 = vmatprep.mubr.f32.mxu0 0.0
      %4521 = vmatmul.mubr.f32.gmra.mrb[0].mxu0 %v4404
      %v4522 = vpop.f32.mrb[0].mxu0
      %v4523 = vadd.f32 0.0, %v4522
      %v4524 = vpop.f32.mrb[0].mxu0
      %4525 = vmatprep.mubr.f32.mxu0 0.0
      %4526 = vmatmul.mubr.f32.gmra.mrb[0].mxu0 %v4407
      %v4527 = vpop.f32.mrb[0].mxu0
      %v4528 = vadd.f32 0.0, %v4527
      %v4529 = vpop.f32.mrb[0].mxu0
      %4530 = vmatprep.mubr.f32.mxu0 0.0
      %4531 = vmatmul.mubr.f32.gmra.mrb[0].mxu0 %v4410
      %v4532 = vpop.f32.mrb[0].mxu0
      %v4533 = vadd.f32 0.0, %v4532
      %v4534 = vpop.f32.mrb[0].mxu0
      %4535 = vmatprep.mubr.f32.mxu0 0.0
      %4536 = vmatmul.mubr.f32.gmra.mrb[0].mxu0 %v4413
      %v4537 = vpop.f32.mrb[0].mxu0
      %v4538 = vadd.f32 0.0, %v4537
      %v4539 = vpop.f32.mrb[0].mxu0
      %4540 = vmatprep.mubr.f32.mxu0 0.0
      %4541 = vmatmul.mubr.f32.gmra.mrb[0].mxu0 %v4416
      %v4542 = vpop.f32.mrb[0].mxu0
      %v4543 = vadd.f32 0.0, %v4542
      %v4544 = vpop.f32.mrb[0].mxu0
      %4545 = vmatprep.mubr.f32.mxu0 0.0
      %4546 = vmatmul.mubr.f32.gmra.mrb[0].mxu0 %v4419
      %v4547 = vpop.f32.mrb[0].mxu0
      %v4548 = vadd.f32 0.0, %v4547
      %v4549 = vpop.f32.mrb[0].mxu0
      %4550 = vmatprep.mubr.f32.mxu0 0.0
      %4551 = vmatmul.mubr.f32.gmra.mrb[0].mxu0 %v4422
      %v4552 = vpop.f32.mrb[0].mxu0
      %v4553 = vadd.f32 0.0, %v4552
      %v4554 = vpop.f32.mrb[0].mxu0
      %4555 = vmatprep.mubr.f32.mxu0 0.0
      %4556 = vmatmul.mubr.f32.gmra.mrb[0].mxu0 %v4425
      %v4557 = vpop.f32.mrb[0].mxu0
      %v4558 = vadd.f32 0.0, %v4557
      %v4559 = vpop.f32.mrb[0].mxu0
      %4560 = vmatprep.mubr.f32.mxu0 0.0
      %4561 = vmatmul.mubr.f32.gmra.mrb[0].mxu0 %v4428
      %v4562 = vpop.f32.mrb[0].mxu0
      %v4563 = vadd.f32 0.0, %v4562
      %v4564 = vpop.f32.mrb[0].mxu0
      %4565 = vmatprep.mubr.f32.mxu0 0.0
      %4566 = vmatmul.mubr.f32.gmra.mrb[0].mxu0 %v4431
      %v4567 = vpop.f32.mrb[0].mxu0
      %v4568 = vadd.f32 0.0, %v4567
      %v4569 = vpop.f32.mrb[0].mxu0
      %4570 = vmatprep.mubr.f32.mxu0 0.0
      %4571 = vmatmul.mubr.f32.gmra.mrb[0].mxu0 %v4434
      %v4572 = vpop.f32.mrb[0].mxu0
      %v4573 = vadd.f32 0.0, %v4572
      %v4574 = vpop.f32.mrb[0].mxu0
      %4575 = vdwg.mxu0
      %4576 = vrot.lane.b32.xlu0 %v4503, 1
      %v4577 = vpop.permute.xlu0 %4576
      %4578 = vrot.lane.b32.xlu0 %v4508, 1
      %v4579 = vpop.permute.xlu0 %4578
      %4580 = vrot.lane.b32.xlu0 %v4513, 1
      %v4581 = vpop.permute.xlu0 %4580
      %4582 = vrot.lane.b32.xlu0 %v4518, 1
      %v4583 = vpop.permute.xlu0 %4582
      %4584 = vrot.lane.b32.xlu0 %v4523, 1
      %v4585 = vpop.permute.xlu0 %4584
      %v4586 = vadd.f32 %v4577, %v4528
      %v4587 = vadd.f32 %v4579, %v4533
      %v4588 = vadd.f32 %v4581, %v4538
      %v4589 = vadd.f32 %v4583, %v4543
      %v4590 = vadd.f32 %v4585, %v4548
      %4591 = vrot.lane.b32.xlu0 %v4553, 127
      %v4592 = vpop.permute.xlu0 %4591
      %4593 = vrot.lane.b32.xlu0 %v4558, 127
      %v4594 = vpop.permute.xlu0 %4593
      %4595 = vrot.lane.b32.xlu0 %v4563, 127
      %v4596 = vpop.permute.xlu0 %4595
      %4597 = vrot.lane.b32.xlu0 %v4568, 127
      %v4598 = vpop.permute.xlu0 %4597
      %4599 = vrot.lane.b32.xlu0 %v4573, 127
      %v4600 = vpop.permute.xlu0 %4599
      %v4601 = vadd.f32 %v4586, %v4592
      %v4602 = vadd.f32 %v4587, %v4594
      %v4603 = vadd.f32 %v4588, %v4596
      %v4604 = vadd.f32 %v4589, %v4598
      %v4605 = vadd.f32 %v4590, %v4600
      %4606 = vset.pattern.permute.xlu0 13
      %4607 = vperm.xlu0 %4606, %v491
      %v4608 = vpop.permute.xlu0 %4607
      %4610 = vset.pattern.permute.xlu0 13
      %4611 = vperm.xlu0 %4610, %v492
      %v4612 = vpop.permute.xlu0 %4611
      %4614 = vset.pattern.permute.xlu0 13
      %4615 = vperm.xlu0 %4614, %v493
      %v4616 = vpop.permute.xlu0 %4615
      %4618 = vset.pattern.permute.xlu0 13
      %4619 = vperm.xlu0 %4618, %v494
      %v4620 = vpop.permute.xlu0 %4619
      %4622 = vset.pattern.permute.xlu0 13
      %4623 = vperm.xlu0 %4622, %v495
      %v4624 = vpop.permute.xlu0 %4623
      %v4626 = vadd.f32 %v4601, %v4608
      %v4627 = vadd.f32 %v4602, %v4612
      %v4628 = vadd.f32 %v4603, %v4616
      %v4629 = vadd.f32 %v4604, %v4620
      %v4630 = vadd.f32 %v4605, %v4624
      %v4631 = vmax.f32 %v4626, 0.0
      %v4632 = vmax.f32 %v4627, 0.0
      %v4633 = vmax.f32 %v4628, 0.0
      %v4634 = vmax.f32 %v4629, 0.0
      %v4635 = vmax.f32 %v4630, 0.0
      %v4636 = vsel %vm4369, %v4631, 0.0
      %v4637 = vsel %vm4369, %v4632, 0.0
      %v4638 = vsel %vm4369, %v4633, 0.0
      %v4639 = vsel %vm4369, %v4634, 0.0
      %v4640 = vsel %vm4369, %v4635, 0.0
      %s4641 = scalar_lea.vmem %s1, 1680
      %v4642 = vld [vmem:[%s4641] sm:$0xff]
      %v4643 = vld [vmem:[%s4641 + $0x8] sm:$0xff]
      %v4644 = vld [vmem:[%s4641 + $0x10] sm:$0xff]
      %v4645 = vld [vmem:[%s4641 + $0x18] sm:$0xff]
      %v4646 = vld [vmem:[%s4641 + $0x20] sm:$0xff]
      %v4647 = vld [vmem:[%s4641 + $0x28] sm:$0xff]
      %v4648 = vld [vmem:[%s4641 + $0x30] sm:$0xff]
      %v4649 = vld [vmem:[%s4641 + $0x38] sm:$0xff]
      %v4650 = vld [vmem:[%s4641 + $0x40] sm:$0xff]
      %v4651 = vld [vmem:[%s4641 + $0x48] sm:$0xff]
      %v4652 = vld [vmem:[%s4641 + $0x50] sm:$0xff]
      %v4653 = vld [vmem:[%s4641 + $0x58] sm:$0xff]
      %v4654 = vld [vmem:[%s4641 + $0x60] sm:$0xff]
      %v4655 = vld [vmem:[%s4641 + $0x68] sm:$0xff]
      %v4656 = vld [vmem:[%s4641 + $0x70] sm:$0xff]
      %v4658 = vsel %vm573, %v4642, 0
      %v4661 = vsel %vm573, %v4643, 0
      %v4664 = vsel %vm573, %v4644, 0
      %v4667 = vsel %vm573, %v4645, 0
      %v4670 = vsel %vm573, %v4646, 0
      %v4673 = vsel %vm573, %v4647, 0
      %v4676 = vsel %vm573, %v4648, 0
      %v4679 = vsel %vm573, %v4649, 0
      %v4682 = vsel %vm573, %v4650, 0
      %v4685 = vsel %vm573, %v4651, 0
      %v4688 = vsel %vm573, %v4652, 0
      %v4691 = vsel %vm573, %v4653, 0
      %v4694 = vsel %vm573, %v4654, 0
      %v4697 = vsel %vm573, %v4655, 0
      %v4700 = vsel %vm573, %v4656, 0
      %4702 = vmatprep.subr.mxu0 0.0
      %4703 = vmatpush1.msra.mxu0 %v4636
      %4704 = vmatprep.subr.mxu0 0.0
      %4705 = vmatpush1.msra.mxu0 %v4637
      %4706 = vmatprep.subr.mxu0 0.0
      %4707 = vmatpush1.msra.mxu0 %v4638
      %4708 = vmatprep.subr.mxu0 0.0
      %4709 = vmatpush1.msra.mxu0 %v4639
      %4710 = vmatprep.subr.mxu0 0.0
      %4711 = vmatpush1.msra.mxu0 %v4640
      %4712 = vmatprep.subr.mxu0 0.0
      %4713 = vmatpush1.msra.mxu0 0.0
      %4714 = vmatprep.subr.mxu0 0.0
      %4715 = vmatpush1.msra.mxu0 0.0
      %4716 = vmatprep.subr.mxu0 0.0
      %4717 = vmatpush1.msra.mxu0 0.0
      %4718 = vmatprep.subr.mxu0 0.0
      %4719 = vmatpush1.msra.mxu0 0.0
      %4720 = vmatprep.subr.mxu0 0.0
      %4721 = vmatpush1.msra.mxu0 0.0
      %4722 = vmatprep.subr.mxu0 0.0
      %4723 = vmatpush1.msra.mxu0 0.0
      %4724 = vmatprep.subr.mxu0 0.0
      %4725 = vmatpush1.msra.mxu0 0.0
      %4726 = vmatprep.subr.mxu0 0.0
      %4727 = vmatpush1.msra.mxu0 0.0
      %4728 = vmatprep.subr.mxu0 0.0
      %4729 = vmatpush1.msra.mxu0 0.0
      %4730 = vmatprep.subr.mxu0 0.0
      %4731 = vmatpush1.msra.mxu0 0.0
      %4732 = vmatprep.subr.mxu0 0.0
      %4733 = vmatpush1.msra.mxu0 0.0
      %4734 = vmatprep.subr.mxu0 0.0
      %4735 = vmatpush1.msra.mxu0 0.0
      %4736 = vmatprep.subr.mxu0 0.0
      %4737 = vmatpush1.msra.mxu0 0.0
      %4738 = vmatprep.subr.mxu0 0.0
      %4739 = vmatpush1.msra.mxu0 0.0
      %4740 = vmatprep.subr.mxu0 0.0
      %4741 = vmatpush1.msra.mxu0 0.0
      %4742 = vmatprep.subr.mxu0 0.0
      %4743 = vmatpush1.msra.mxu0 0.0
      %4744 = vmatprep.subr.mxu0 0.0
      %4745 = vmatpush1.msra.mxu0 0.0
      %4746 = vmatprep.subr.mxu0 0.0
      %4747 = vmatpush1.msra.mxu0 0.0
      %4748 = vmatprep.subr.mxu0 0.0
      %4749 = vmatpush1.msra.mxu0 0.0
      %4750 = vmatprep.subr.mxu0 0.0
      %4751 = vmatpush1.msra.mxu0 0.0
      %4752 = vmatprep.subr.mxu0 0.0
      %4753 = vmatpush1.msra.mxu0 0.0
      %4754 = vmatprep.subr.mxu0 0.0
      %4755 = vmatpush1.msra.mxu0 0.0
      %4756 = vmatprep.subr.mxu0 0.0
      %4757 = vmatpush1.msra.mxu0 0.0
      %4758 = vmatprep.subr.mxu0 0.0
      %4759 = vmatpush1.msra.mxu0 0.0
      %4760 = vmatprep.subr.mxu0 0.0
      %4761 = vmatpush1.msra.mxu0 0.0
      %4762 = vmatprep.subr.mxu0 0.0
      %4763 = vmatpush1.msra.mxu0 0.0
      %4764 = vmatprep.subr.mxu0 0.0
      %4765 = vmatpush1.msra.mxu0 0.0
      %4766 = vmatprep.mubr.f32.mxu0 0.0
      %4767 = vmatmul.mubr.f32.gmra.mrb[0].mxu0 %v4658
      %v4768 = vpop.f32.mrb[0].mxu0
      %v4769 = vadd.f32 0.0, %v4768
      %v4770 = vpop.f32.mrb[0].mxu0
      %4771 = vmatprep.mubr.f32.mxu0 0.0
      %4772 = vmatmul.mubr.f32.gmra.mrb[0].mxu0 %v4661
      %v4773 = vpop.f32.mrb[0].mxu0
      %v4774 = vadd.f32 0.0, %v4773
      %v4775 = vpop.f32.mrb[0].mxu0
      %4776 = vmatprep.mubr.f32.mxu0 0.0
      %4777 = vmatmul.mubr.f32.gmra.mrb[0].mxu0 %v4664
      %v4778 = vpop.f32.mrb[0].mxu0
      %v4779 = vadd.f32 0.0, %v4778
      %v4780 = vpop.f32.mrb[0].mxu0
      %4781 = vmatprep.mubr.f32.mxu0 0.0
      %4782 = vmatmul.mubr.f32.gmra.mrb[0].mxu0 %v4667
      %v4783 = vpop.f32.mrb[0].mxu0
      %v4784 = vadd.f32 0.0, %v4783
      %v4785 = vpop.f32.mrb[0].mxu0
      %4786 = vmatprep.mubr.f32.mxu0 0.0
      %4787 = vmatmul.mubr.f32.gmra.mrb[0].mxu0 %v4670
      %v4788 = vpop.f32.mrb[0].mxu0
      %v4789 = vadd.f32 0.0, %v4788
      %v4790 = vpop.f32.mrb[0].mxu0
      %4791 = vmatprep.mubr.f32.mxu0 0.0
      %4792 = vmatmul.mubr.f32.gmra.mrb[0].mxu0 %v4673
      %v4793 = vpop.f32.mrb[0].mxu0
      %v4794 = vadd.f32 0.0, %v4793
      %v4795 = vpop.f32.mrb[0].mxu0
      %4796 = vmatprep.mubr.f32.mxu0 0.0
      %4797 = vmatmul.mubr.f32.gmra.mrb[0].mxu0 %v4676
      %v4798 = vpop.f32.mrb[0].mxu0
      %v4799 = vadd.f32 0.0, %v4798
      %v4800 = vpop.f32.mrb[0].mxu0
      %4801 = vmatprep.mubr.f32.mxu0 0.0
      %4802 = vmatmul.mubr.f32.gmra.mrb[0].mxu0 %v4679
      %v4803 = vpop.f32.mrb[0].mxu0
      %v4804 = vadd.f32 0.0, %v4803
      %v4805 = vpop.f32.mrb[0].mxu0
      %4806 = vmatprep.mubr.f32.mxu0 0.0
      %4807 = vmatmul.mubr.f32.gmra.mrb[0].mxu0 %v4682
      %v4808 = vpop.f32.mrb[0].mxu0
      %v4809 = vadd.f32 0.0, %v4808
      %v4810 = vpop.f32.mrb[0].mxu0
      %4811 = vmatprep.mubr.f32.mxu0 0.0
      %4812 = vmatmul.mubr.f32.gmra.mrb[0].mxu0 %v4685
      %v4813 = vpop.f32.mrb[0].mxu0
      %v4814 = vadd.f32 0.0, %v4813
      %v4815 = vpop.f32.mrb[0].mxu0
      %4816 = vmatprep.mubr.f32.mxu0 0.0
      %4817 = vmatmul.mubr.f32.gmra.mrb[0].mxu0 %v4688
      %v4818 = vpop.f32.mrb[0].mxu0
      %v4819 = vadd.f32 0.0, %v4818
      %v4820 = vpop.f32.mrb[0].mxu0
      %4821 = vmatprep.mubr.f32.mxu0 0.0
      %4822 = vmatmul.mubr.f32.gmra.mrb[0].mxu0 %v4691
      %v4823 = vpop.f32.mrb[0].mxu0
      %v4824 = vadd.f32 0.0, %v4823
      %v4825 = vpop.f32.mrb[0].mxu0
      %4826 = vmatprep.mubr.f32.mxu0 0.0
      %4827 = vmatmul.mubr.f32.gmra.mrb[0].mxu0 %v4694
      %v4828 = vpop.f32.mrb[0].mxu0
      %v4829 = vadd.f32 0.0, %v4828
      %v4830 = vpop.f32.mrb[0].mxu0
      %4831 = vmatprep.mubr.f32.mxu0 0.0
      %4832 = vmatmul.mubr.f32.gmra.mrb[0].mxu0 %v4697
      %v4833 = vpop.f32.mrb[0].mxu0
      %v4834 = vadd.f32 0.0, %v4833
      %v4835 = vpop.f32.mrb[0].mxu0
      %4836 = vmatprep.mubr.f32.mxu0 0.0
      %4837 = vmatmul.mubr.f32.gmra.mrb[0].mxu0 %v4700
      %v4838 = vpop.f32.mrb[0].mxu0
      %v4839 = vadd.f32 0.0, %v4838
      %v4840 = vpop.f32.mrb[0].mxu0
      %4841 = vdwg.mxu0
      %4842 = vrot.lane.b32.xlu0 %v4769, 1
      %v4843 = vpop.permute.xlu0 %4842
      %4844 = vrot.lane.b32.xlu0 %v4774, 1
      %v4845 = vpop.permute.xlu0 %4844
      %4846 = vrot.lane.b32.xlu0 %v4779, 1
      %v4847 = vpop.permute.xlu0 %4846
      %4848 = vrot.lane.b32.xlu0 %v4784, 1
      %v4849 = vpop.permute.xlu0 %4848
      %4850 = vrot.lane.b32.xlu0 %v4789, 1
      %v4851 = vpop.permute.xlu0 %4850
      %v4852 = vadd.f32 %v4843, %v4794
      %v4853 = vadd.f32 %v4845, %v4799
      %v4854 = vadd.f32 %v4847, %v4804
      %v4855 = vadd.f32 %v4849, %v4809
      %v4856 = vadd.f32 %v4851, %v4814
      %4857 = vrot.lane.b32.xlu0 %v4819, 127
      %v4858 = vpop.permute.xlu0 %4857
      %4859 = vrot.lane.b32.xlu0 %v4824, 127
      %v4860 = vpop.permute.xlu0 %4859
      %4861 = vrot.lane.b32.xlu0 %v4829, 127
      %v4862 = vpop.permute.xlu0 %4861
      %4863 = vrot.lane.b32.xlu0 %v4834, 127
      %v4864 = vpop.permute.xlu0 %4863
      %4865 = vrot.lane.b32.xlu0 %v4839, 127
      %v4866 = vpop.permute.xlu0 %4865
      %v4867 = vadd.f32 %v4852, %v4858
      %v4868 = vadd.f32 %v4853, %v4860
      %v4869 = vadd.f32 %v4854, %v4862
      %v4870 = vadd.f32 %v4855, %v4864
      %v4871 = vadd.f32 %v4856, %v4866
      %4872 = vset.pattern.permute.xlu0 14
      %4873 = vperm.xlu0 %4872, %v491
      %v4874 = vpop.permute.xlu0 %4873
      %4876 = vset.pattern.permute.xlu0 14
      %4877 = vperm.xlu0 %4876, %v492
      %v4878 = vpop.permute.xlu0 %4877
      %4880 = vset.pattern.permute.xlu0 14
      %4881 = vperm.xlu0 %4880, %v493
      %v4882 = vpop.permute.xlu0 %4881
      %4884 = vset.pattern.permute.xlu0 14
      %4885 = vperm.xlu0 %4884, %v494
      %v4886 = vpop.permute.xlu0 %4885
      %4888 = vset.pattern.permute.xlu0 14
      %4889 = vperm.xlu0 %4888, %v495
      %v4890 = vpop.permute.xlu0 %4889
      %v4892 = vadd.f32 %v4867, %v4874
      %v4893 = vadd.f32 %v4868, %v4878
      %v4894 = vadd.f32 %v4869, %v4882
      %v4895 = vadd.f32 %v4870, %v4886
      %v4896 = vadd.f32 %v4871, %v4890
      %v4897 = vmax.f32 %v4892, 0.0
      %v4898 = vmax.f32 %v4893, 0.0
      %v4899 = vmax.f32 %v4894, 0.0
      %v4900 = vmax.f32 %v4895, 0.0
      %v4901 = vmax.f32 %v4896, 0.0
      %v4902 = vsel %vm4369, %v4897, 0.0
      %v4903 = vsel %vm4369, %v4898, 0.0
      %v4904 = vsel %vm4369, %v4899, 0.0
      %v4905 = vsel %vm4369, %v4900, 0.0
      %v4906 = vsel %vm4369, %v4901, 0.0
      %s4907 = scalar_lea.vmem %s1, 1800
      %v4908 = vld [vmem:[%s4907] sm:$0xff]
      %v4909 = vld [vmem:[%s4907 + $0x8] sm:$0xff]
      %v4910 = vld [vmem:[%s4907 + $0x10] sm:$0xff]
      %v4911 = vld [vmem:[%s4907 + $0x18] sm:$0xff]
      %v4912 = vld [vmem:[%s4907 + $0x20] sm:$0xff]
      %v4913 = vld [vmem:[%s4907 + $0x28] sm:$0xff]
      %v4914 = vld [vmem:[%s4907 + $0x30] sm:$0xff]
      %v4915 = vld [vmem:[%s4907 + $0x38] sm:$0xff]
      %v4916 = vld [vmem:[%s4907 + $0x40] sm:$0xff]
      %v4917 = vld [vmem:[%s4907 + $0x48] sm:$0xff]
      %v4918 = vld [vmem:[%s4907 + $0x50] sm:$0xff]
      %v4919 = vld [vmem:[%s4907 + $0x58] sm:$0xff]
      %v4920 = vld [vmem:[%s4907 + $0x60] sm:$0xff]
      %v4921 = vld [vmem:[%s4907 + $0x68] sm:$0xff]
      %v4922 = vld [vmem:[%s4907 + $0x70] sm:$0xff]
      %v4924 = vsel %vm573, %v4908, 0
      %v4927 = vsel %vm573, %v4909, 0
      %v4930 = vsel %vm573, %v4910, 0
      %v4933 = vsel %vm573, %v4911, 0
      %v4936 = vsel %vm573, %v4912, 0
      %v4939 = vsel %vm573, %v4913, 0
      %v4942 = vsel %vm573, %v4914, 0
      %v4945 = vsel %vm573, %v4915, 0
      %v4948 = vsel %vm573, %v4916, 0
      %v4951 = vsel %vm573, %v4917, 0
      %v4954 = vsel %vm573, %v4918, 0
      %v4957 = vsel %vm573, %v4919, 0
      %v4960 = vsel %vm573, %v4920, 0
      %v4963 = vsel %vm573, %v4921, 0
      %v4966 = vsel %vm573, %v4922, 0
      %4968 = vmatprep.subr.mxu0 0.0
      %4969 = vmatpush1.msra.mxu0 %v4902
      %4970 = vmatprep.subr.mxu0 0.0
      %4971 = vmatpush1.msra.mxu0 %v4903
      %4972 = vmatprep.subr.mxu0 0.0
      %4973 = vmatpush1.msra.mxu0 %v4904
      %4974 = vmatprep.subr.mxu0 0.0
      %4975 = vmatpush1.msra.mxu0 %v4905
      %4976 = vmatprep.subr.mxu0 0.0
      %4977 = vmatpush1.msra.mxu0 %v4906
      %4978 = vmatprep.subr.mxu0 0.0
      %4979 = vmatpush1.msra.mxu0 0.0
      %4980 = vmatprep.subr.mxu0 0.0
      %4981 = vmatpush1.msra.mxu0 0.0
      %4982 = vmatprep.subr.mxu0 0.0
      %4983 = vmatpush1.msra.mxu0 0.0
      %4984 = vmatprep.subr.mxu0 0.0
      %4985 = vmatpush1.msra.mxu0 0.0
      %4986 = vmatprep.subr.mxu0 0.0
      %4987 = vmatpush1.msra.mxu0 0.0
      %4988 = vmatprep.subr.mxu0 0.0
      %4989 = vmatpush1.msra.mxu0 0.0
      %4990 = vmatprep.subr.mxu0 0.0
      %4991 = vmatpush1.msra.mxu0 0.0
      %4992 = vmatprep.subr.mxu0 0.0
      %4993 = vmatpush1.msra.mxu0 0.0
      %4994 = vmatprep.subr.mxu0 0.0
      %4995 = vmatpush1.msra.mxu0 0.0
      %4996 = vmatprep.subr.mxu0 0.0
      %4997 = vmatpush1.msra.mxu0 0.0
      %4998 = vmatprep.subr.mxu0 0.0
      %4999 = vmatpush1.msra.mxu0 0.0
      %5000 = vmatprep.subr.mxu0 0.0
      %5001 = vmatpush1.msra.mxu0 0.0
      %5002 = vmatprep.subr.mxu0 0.0
      %5003 = vmatpush1.msra.mxu0 0.0
      %5004 = vmatprep.subr.mxu0 0.0
      %5005 = vmatpush1.msra.mxu0 0.0
      %5006 = vmatprep.subr.mxu0 0.0
      %5007 = vmatpush1.msra.mxu0 0.0
      %5008 = vmatprep.subr.mxu0 0.0
      %5009 = vmatpush1.msra.mxu0 0.0
      %5010 = vmatprep.subr.mxu0 0.0
      %5011 = vmatpush1.msra.mxu0 0.0
      %5012 = vmatprep.subr.mxu0 0.0
      %5013 = vmatpush1.msra.mxu0 0.0
      %5014 = vmatprep.subr.mxu0 0.0
      %5015 = vmatpush1.msra.mxu0 0.0
      %5016 = vmatprep.subr.mxu0 0.0
      %5017 = vmatpush1.msra.mxu0 0.0
      %5018 = vmatprep.subr.mxu0 0.0
      %5019 = vmatpush1.msra.mxu0 0.0
      %5020 = vmatprep.subr.mxu0 0.0
      %5021 = vmatpush1.msra.mxu0 0.0
      %5022 = vmatprep.subr.mxu0 0.0
      %5023 = vmatpush1.msra.mxu0 0.0
      %5024 = vmatprep.subr.mxu0 0.0
      %5025 = vmatpush1.msra.mxu0 0.0
      %5026 = vmatprep.subr.mxu0 0.0
      %5027 = vmatpush1.msra.mxu0 0.0
      %5028 = vmatprep.subr.mxu0 0.0
      %5029 = vmatpush1.msra.mxu0 0.0
      %5030 = vmatprep.subr.mxu0 0.0
      %5031 = vmatpush1.msra.mxu0 0.0
      %5032 = vmatprep.mubr.f32.mxu0 0.0
      %5033 = vmatmul.mubr.f32.gmra.mrb[0].mxu0 %v4924
      %v5034 = vpop.f32.mrb[0].mxu0
      %v5035 = vadd.f32 0.0, %v5034
      %v5036 = vpop.f32.mrb[0].mxu0
      %5037 = vmatprep.mubr.f32.mxu0 0.0
      %5038 = vmatmul.mubr.f32.gmra.mrb[0].mxu0 %v4927
      %v5039 = vpop.f32.mrb[0].mxu0
      %v5040 = vadd.f32 0.0, %v5039
      %v5041 = vpop.f32.mrb[0].mxu0
      %5042 = vmatprep.mubr.f32.mxu0 0.0
      %5043 = vmatmul.mubr.f32.gmra.mrb[0].mxu0 %v4930
      %v5044 = vpop.f32.mrb[0].mxu0
      %v5045 = vadd.f32 0.0, %v5044
      %v5046 = vpop.f32.mrb[0].mxu0
      %5047 = vmatprep.mubr.f32.mxu0 0.0
      %5048 = vmatmul.mubr.f32.gmra.mrb[0].mxu0 %v4933
      %v5049 = vpop.f32.mrb[0].mxu0
      %v5050 = vadd.f32 0.0, %v5049
      %v5051 = vpop.f32.mrb[0].mxu0
      %5052 = vmatprep.mubr.f32.mxu0 0.0
      %5053 = vmatmul.mubr.f32.gmra.mrb[0].mxu0 %v4936
      %v5054 = vpop.f32.mrb[0].mxu0
      %v5055 = vadd.f32 0.0, %v5054
      %v5056 = vpop.f32.mrb[0].mxu0
      %5057 = vmatprep.mubr.f32.mxu0 0.0
      %5058 = vmatmul.mubr.f32.gmra.mrb[0].mxu0 %v4939
      %v5059 = vpop.f32.mrb[0].mxu0
      %v5060 = vadd.f32 0.0, %v5059
      %v5061 = vpop.f32.mrb[0].mxu0
      %5062 = vmatprep.mubr.f32.mxu0 0.0
      %5063 = vmatmul.mubr.f32.gmra.mrb[0].mxu0 %v4942
      %v5064 = vpop.f32.mrb[0].mxu0
      %v5065 = vadd.f32 0.0, %v5064
      %v5066 = vpop.f32.mrb[0].mxu0
      %5067 = vmatprep.mubr.f32.mxu0 0.0
      %5068 = vmatmul.mubr.f32.gmra.mrb[0].mxu0 %v4945
      %v5069 = vpop.f32.mrb[0].mxu0
      %v5070 = vadd.f32 0.0, %v5069
      %v5071 = vpop.f32.mrb[0].mxu0
      %5072 = vmatprep.mubr.f32.mxu0 0.0
      %5073 = vmatmul.mubr.f32.gmra.mrb[0].mxu0 %v4948
      %v5074 = vpop.f32.mrb[0].mxu0
      %v5075 = vadd.f32 0.0, %v5074
      %v5076 = vpop.f32.mrb[0].mxu0
      %5077 = vmatprep.mubr.f32.mxu0 0.0
      %5078 = vmatmul.mubr.f32.gmra.mrb[0].mxu0 %v4951
      %v5079 = vpop.f32.mrb[0].mxu0
      %v5080 = vadd.f32 0.0, %v5079
      %v5081 = vpop.f32.mrb[0].mxu0
      %5082 = vmatprep.mubr.f32.mxu0 0.0
      %5083 = vmatmul.mubr.f32.gmra.mrb[0].mxu0 %v4954
      %v5084 = vpop.f32.mrb[0].mxu0
      %v5085 = vadd.f32 0.0, %v5084
      %v5086 = vpop.f32.mrb[0].mxu0
      %5087 = vmatprep.mubr.f32.mxu0 0.0
      %5088 = vmatmul.mubr.f32.gmra.mrb[0].mxu0 %v4957
      %v5089 = vpop.f32.mrb[0].mxu0
      %v5090 = vadd.f32 0.0, %v5089
      %v5091 = vpop.f32.mrb[0].mxu0
      %5092 = vmatprep.mubr.f32.mxu0 0.0
      %5093 = vmatmul.mubr.f32.gmra.mrb[0].mxu0 %v4960
      %v5094 = vpop.f32.mrb[0].mxu0
      %v5095 = vadd.f32 0.0, %v5094
      %v5096 = vpop.f32.mrb[0].mxu0
      %5097 = vmatprep.mubr.f32.mxu0 0.0
      %5098 = vmatmul.mubr.f32.gmra.mrb[0].mxu0 %v4963
      %v5099 = vpop.f32.mrb[0].mxu0
      %v5100 = vadd.f32 0.0, %v5099
      %v5101 = vpop.f32.mrb[0].mxu0
      %5102 = vmatprep.mubr.f32.mxu0 0.0
      %5103 = vmatmul.mubr.f32.gmra.mrb[0].mxu0 %v4966
      %v5104 = vpop.f32.mrb[0].mxu0
      %v5105 = vadd.f32 0.0, %v5104
      %v5106 = vpop.f32.mrb[0].mxu0
      %5107 = vdwg.mxu0
      %5108 = vrot.lane.b32.xlu0 %v5035, 1
      %v5109 = vpop.permute.xlu0 %5108
      %5110 = vrot.lane.b32.xlu0 %v5040, 1
      %v5111 = vpop.permute.xlu0 %5110
      %5112 = vrot.lane.b32.xlu0 %v5045, 1
      %v5113 = vpop.permute.xlu0 %5112
      %5114 = vrot.lane.b32.xlu0 %v5050, 1
      %v5115 = vpop.permute.xlu0 %5114
      %5116 = vrot.lane.b32.xlu0 %v5055, 1
      %v5117 = vpop.permute.xlu0 %5116
      %v5118 = vadd.f32 %v5109, %v5060
      %v5119 = vadd.f32 %v5111, %v5065
      %v5120 = vadd.f32 %v5113, %v5070
      %v5121 = vadd.f32 %v5115, %v5075
      %v5122 = vadd.f32 %v5117, %v5080
      %5123 = vrot.lane.b32.xlu0 %v5085, 127
      %v5124 = vpop.permute.xlu0 %5123
      %5125 = vrot.lane.b32.xlu0 %v5090, 127
      %v5126 = vpop.permute.xlu0 %5125
      %5127 = vrot.lane.b32.xlu0 %v5095, 127
      %v5128 = vpop.permute.xlu0 %5127
      %5129 = vrot.lane.b32.xlu0 %v5100, 127
      %v5130 = vpop.permute.xlu0 %5129
      %5131 = vrot.lane.b32.xlu0 %v5105, 127
      %v5132 = vpop.permute.xlu0 %5131
      %v5133 = vadd.f32 %v5118, %v5124
      %v5134 = vadd.f32 %v5119, %v5126
      %v5135 = vadd.f32 %v5120, %v5128
      %v5136 = vadd.f32 %v5121, %v5130
      %v5137 = vadd.f32 %v5122, %v5132
      %5138 = vset.pattern.permute.xlu0 15
      %5139 = vperm.xlu0 %5138, %v491
      %v5140 = vpop.permute.xlu0 %5139
      %5142 = vset.pattern.permute.xlu0 15
      %5143 = vperm.xlu0 %5142, %v492
      %v5144 = vpop.permute.xlu0 %5143
      %5146 = vset.pattern.permute.xlu0 15
      %5147 = vperm.xlu0 %5146, %v493
      %v5148 = vpop.permute.xlu0 %5147
      %5150 = vset.pattern.permute.xlu0 15
      %5151 = vperm.xlu0 %5150, %v494
      %v5152 = vpop.permute.xlu0 %5151
      %5154 = vset.pattern.permute.xlu0 15
      %5155 = vperm.xlu0 %5154, %v495
      %v5156 = vpop.permute.xlu0 %5155
      %5158 = vmatprep.subr.mxu0 0.0
      %5159 = vmatpush1.msra.mxu0 %v2464
      %5160 = vmatprep.subr.mxu0 0.0
      %5161 = vmatpush1.msra.mxu0 %v2465
      %5162 = vmatprep.subr.mxu0 0.0
      %5163 = vmatpush1.msra.mxu0 %v2466
      %5164 = vmatprep.subr.mxu0 0.0
      %5165 = vmatpush1.msra.mxu0 %v2467
      %5166 = vmatprep.subr.mxu0 0.0
      %5167 = vmatpush1.msra.mxu0 %v2468
      %5168 = vmatprep.subr.mxu0 0.0
      %5169 = vmatpush1.msra.mxu0 %v2469
      %5170 = vmatprep.subr.mxu0 0.0
      %5171 = vmatpush1.msra.mxu0 %v2470
      %5172 = vmatprep.subr.mxu0 0.0
      %5173 = vmatpush1.msra.mxu0 %v2471
      %5174 = vmatprep.subr.mxu0 0.0
      %5175 = vmatpush1.msra.mxu0 %v2472
      %5176 = vmatprep.subr.mxu0 0.0
      %5177 = vmatpush1.msra.mxu0 %v2473
      %5178 = vmatprep.subr.mxu0 0.0
      %5179 = vmatpush1.msra.mxu0 %v2474
      %5180 = vmatprep.subr.mxu0 0.0
      %5181 = vmatpush1.msra.mxu0 %v2475
      %5182 = vmatprep.subr.mxu0 0.0
      %5183 = vmatpush1.msra.mxu0 %v2476
      %5184 = vmatprep.subr.mxu0 0.0
      %5185 = vmatpush1.msra.mxu0 %v2477
      %5186 = vmatprep.subr.mxu0 0.0
      %5187 = vmatpush1.msra.mxu0 %v2478
      %5188 = vmatprep.subr.mxu0 0.0
      %5189 = vmatpush1.msra.mxu0 %v2479
      %5190 = vmatprep.subr.mxu0 0.0
      %5191 = vmatpush1.msra.mxu0 0.0
      %5192 = vmatprep.subr.mxu0 0.0
      %5193 = vmatpush1.msra.mxu0 0.0
      %5194 = vmatprep.subr.mxu0 0.0
      %5195 = vmatpush1.msra.mxu0 0.0
      %5196 = vmatprep.subr.mxu0 0.0
      %5197 = vmatpush1.msra.mxu0 0.0
      %5198 = vmatprep.subr.mxu0 0.0
      %5199 = vmatpush1.msra.mxu0 0.0
      %5200 = vmatprep.subr.mxu0 0.0
      %5201 = vmatpush1.msra.mxu0 0.0
      %5202 = vmatprep.subr.mxu0 0.0
      %5203 = vmatpush1.msra.mxu0 0.0
      %5204 = vmatprep.subr.mxu0 0.0
      %5205 = vmatpush1.msra.mxu0 0.0
      %5206 = vmatprep.subr.mxu0 0.0
      %5207 = vmatpush1.msra.mxu0 0.0
      %5208 = vmatprep.subr.mxu0 0.0
      %5209 = vmatpush1.msra.mxu0 0.0
      %5210 = vmatprep.subr.mxu0 0.0
      %5211 = vmatpush1.msra.mxu0 0.0
      %5212 = vmatprep.subr.mxu0 0.0
      %5213 = vmatpush1.msra.mxu0 0.0
      %5214 = vmatprep.subr.mxu0 0.0
      %5215 = vmatpush1.msra.mxu0 0.0
      %5216 = vmatprep.subr.mxu0 0.0
      %5217 = vmatpush1.msra.mxu0 0.0
      %5218 = vmatprep.subr.mxu0 0.0
      %5219 = vmatpush1.msra.mxu0 0.0
      %5220 = vmatprep.subr.mxu0 0.0
      %5221 = vmatpush1.msra.mxu0 0.0
      %5222 = vmatprep.mubr.f32.mxu0 0.0
      %5223 = vmatmul.mubr.f32.gmra.mrb[0].mxu0 %v5133
      %v5224 = vpop.f32.mrb[0].mxu0
      %v5225 = vadd.f32 %v5140, %v5224
      %v5226 = vpop.f32.mrb[0].mxu0
      %5227 = vmatprep.mubr.f32.mxu0 0.0
      %5228 = vmatmul.mubr.f32.gmra.mrb[0].mxu0 %v5134
      %v5229 = vpop.f32.mrb[0].mxu0
      %v5230 = vadd.f32 %v5144, %v5229
      %v5231 = vpop.f32.mrb[0].mxu0
      %5232 = vmatprep.mubr.f32.mxu0 0.0
      %5233 = vmatmul.mubr.f32.gmra.mrb[0].mxu0 %v5135
      %v5234 = vpop.f32.mrb[0].mxu0
      %v5235 = vadd.f32 %v5148, %v5234
      %v5236 = vpop.f32.mrb[0].mxu0
      %5237 = vmatprep.mubr.f32.mxu0 0.0
      %5238 = vmatmul.mubr.f32.gmra.mrb[0].mxu0 %v5136
      %v5239 = vpop.f32.mrb[0].mxu0
      %v5240 = vadd.f32 %v5152, %v5239
      %v5241 = vpop.f32.mrb[0].mxu0
      %5242 = vmatprep.mubr.f32.mxu0 0.0
      %5243 = vmatmul.mubr.f32.gmra.mrb[0].mxu0 %v5137
      %v5244 = vpop.f32.mrb[0].mxu0
      %v5245 = vadd.f32 %v5156, %v5244
      %v5246 = vpop.f32.mrb[0].mxu0
      %5247 = vdwg.mxu0
      %vm5248 = vcmp.lt.s32.totalorder %v275, 6
      %v5249 = vmax.f32 %v5225, 0.0
      %v5250 = vmax.f32 %v5230, 0.0
      %v5251 = vmax.f32 %v5235, 0.0
      %v5252 = vmax.f32 %v5240, 0.0
      %v5253 = vmax.f32 %v5245, 0.0
      %v5254 = vsel %vm5248, 1, 0
      %vm5255 = vcmp.eq.s32.totalorder %v5254, 1
      %v5256 = vsel %vm5255, %v5249, 0.0
      %v5257 = vsel %vm5255, %v5250, 0.0
      %v5258 = vsel %vm5255, %v5251, 0.0
      %v5259 = vsel %vm5255, %v5252, 0.0
      %v5260 = vsel %vm5255, %v5253, 0.0
      %v5261 = vld [vmem:[%s5] sm:$0xff]
      %v5262 = vld [vmem:[%s5 + $0x8] sm:$0xff]
      %v5263 = vld [vmem:[%s5 + $0x10] sm:$0xff]
      %v5264 = vld [vmem:[%s5 + $0x18] sm:$0xff]
      %v5265 = vld [vmem:[%s5 + $0x20] sm:$0xff]
      %v5266 = vmul.f32 %v5256, %v5261
      %v5267 = vmul.f32 %v5257, %v5262
      %v5268 = vmul.f32 %v5258, %v5263
      %v5269 = vmul.f32 %v5259, %v5264
      %v5270 = vmul.f32 %v5260, %v5265
      %5271 = vadd.xlane.f32.xlu0 %v5266
      %v5272 = vpop.xlane.xlu0 %5271
      %5273 = vadd.xlane.f32.xlu0 %v5267
      %v5274 = vpop.xlane.xlu0 %5273
      %5275 = vadd.xlane.f32.xlu0 %v5268
      %v5276 = vpop.xlane.xlu0 %5275
      %5277 = vadd.xlane.f32.xlu0 %v5269
      %v5278 = vpop.xlane.xlu0 %5277
      %5279 = vadd.xlane.f32.xlu0 %v5270
      %v5280 = vpop.xlane.xlu0 %5279
      %v5281 = vadd.f32 %v5272, %v5274
      %v5282 = vadd.f32 %v5281, %v5276
      %v5283 = vadd.f32 %v5282, %v5278
      %v5284 = vadd.f32 %v5283, %v5280
      %v5285 = vrot.slane %v5284, 4
      %v5286 = vadd.f32 %v5284, %v5285
      %v5287 = vrot.slane %v5286, 2
      %v5288 = vadd.f32 %v5286, %v5287
      %v5289 = vrot.slane %v5288, 1
      %v5290 = vadd.f32 %v5288, %v5289
      %v5291 = vld [vmem:[#allocation2] sm:$0x1]
      %v5292 = vadd.f32 %v5290, %v5291
      %v5293 = vsub.f32 0.0, %v5292
      %v5294 = vmul.f32 %v5293, 1.442695
      %v5295 = vpow.pop %v5294
      %v5296 = vadd.f32 %v5295, 1.0
      %v5297 = vrcp.pop %v5296
      %v5298 = vmul.f32 1.0, %v5297
      %vm5299 = vcmask 0
      %5300 = vst.msk [vmem:[%s273] sm:$0x1] %vm5299, %v5298
      %p5301 = scmp.lt.s32.totalorder %s20, 1
      %s5302 = scalar_select %p5301, %s20, 1
      %s5303 = scalar_lea.vmem %s7, %s5302
      // Predicated region
      $region49: #{cnnd_forward.1} parent=47 // pred_check
        %p5304 = pneg %p190
      $region50: #{cnnd_forward.1} parent=47 // pred_check_branch
        %5306 = sbr.rel (%p5304) target = $region52
      $region51: #{cnnd_forward.1} parent=47 // pred_region
        _
      $region52: #{cnnd_forward.1} parent=47 // pred_fallthru
        _
    $region48: #{cnnd_forward.1} parent=5 // pred_fallthru
      _
    %p5307 = scmp.le.s32.totalorder 2, %s15
    // Predicated region
    $region53: #{cnnd_forward.1} parent=5 // pred_check
      %p5308 = pneg %p5307
    $region54: #{cnnd_forward.1} parent=5 // pred_check_branch
      %5310 = sbr.rel (%p5308) target = $region56
    $region55: #{cnnd_forward.1} parent=5 // pred_region
      %s5311 = ssub.s32 %s15, 2
      // Predicated region
      $region57: #{cnnd_forward.1} parent=55 // pred_check
        %p5312 = pneg %p196
      $region58: #{cnnd_forward.1} parent=55 // pred_check_branch
        %5314 = sbr.rel (%p5312) target = $region60
      $region59: #{cnnd_forward.1} parent=55 // pred_region
        %p5315 = scmp.lt.s32.totalorder %s21, 1
        %s5316 = scalar_select %p5315, %s21, 1
        %s5317 = scalar_lea.vmem %s7, %s5316
      $region60: #{cnnd_forward.1} parent=55 // pred_fallthru
        _
    $region56: #{cnnd_forward.1} parent=5 // pred_fallthru
      _
  $region6: #{cnnd_forward.1} parent=0 // loop_footer
    %s19 = sadd.s32 1, %s15
  $region7: #{cnnd_forward.1} parent=0 // loop_footer_branch
    %14 = sbr.rel target = $region3
  $region8: #{cnnd_forward.1} parent=0 // loop_exit
    _

</llo_original>
